<compile_context>
chip_gen: v7x
topology: tpu7x:2x2x1
jax: 0.10.0
libtpu: 0.0.40
codegen_flags: <defaults>
</compile_context>

<pallas_src>
import functools

import jax
import jax.numpy as jnp
from jax import lax
from jax.experimental import pallas as pl
from jax.experimental.pallas import tpu as pltpu

NEG = -1.0e20
ALPHA = 1.5  # deterministic "parameter" of the module (nn.Module __init__ arg)


def _bdtw_kernel(trips_ref, w_ref, mask_ref, mu_ref, pi0_ref, pi1_ref, pi2_ref,
                 *, alpha, nb, static_trips):
    na, lanes = w_ref.shape           # (Na, Bt*nb): Bt batches packed along lanes
    W = w_ref[...].astype(jnp.float32)
    msk = mask_ref[...].astype(jnp.float32)
    aW = alpha * W

    # Per-sub-block border masks.  Batch sub-blocks are nb lanes wide, so the
    # "first column" test is (col % nb == 0); this same NEG masking also kills
    # the values that pltpu.roll wraps across packed-batch boundaries.
    row = lax.broadcasted_iota(jnp.int32, (na, lanes), 0)
    col = lax.broadcasted_iota(jnp.int32, (na, lanes), 1)
    first_row = row == 0
    first_col = (col % nb) == 0
    border = first_row | first_col
    corner = first_row & first_col

    # Loop-invariant constant planes (hoisted: JAX does not CSE broadcasts).
    neg_plane = jnp.full((na, lanes), NEG, jnp.float32)
    c_border = jnp.where(corner, 0.0, neg_plane)   # diag parent on the border

    def parents(mu_in):
        # a[i, j] = mu_full[i, j + 1]   (top parent); reuse r0 for the diag roll
        r0 = pltpu.roll(mu_in, shift=1, axis=0)
        a = jnp.where(first_row, neg_plane, r0)
        # b[i, j] = mu_full[i + 1, j]   (left parent)
        b = jnp.where(first_col, neg_plane, pltpu.roll(mu_in, shift=1, axis=1))
        # c[i, j] = mu_full[i, j]       (diag parent)
        c = jnp.where(border, c_border, pltpu.roll(r0, shift=1, axis=1))
        return a, b, c

    def step(_, mu_in):
        a, b, c = parents(mu_in)
        # logsumexp over the 3 parents; exp(max - m) == 1 exactly, so only the
        # two non-max terms hit the EUP (2 exp + 1 log per sweep instead of 3+1).
        hi = jnp.maximum(a, b)
        lo = jnp.minimum(a, b)
        m = jnp.maximum(hi, c)
        mid = jnp.minimum(hi, jnp.maximum(lo, c))
        low = jnp.minimum(lo, c)
        return aW + m + jnp.log(1.0 + jnp.exp(mid - m) + jnp.exp(low - m))

    # torch zero-initializes the interior of mu.
    mu0 = jnp.zeros((na, lanes), jnp.float32)
    if static_trips is not None:
        # Full unroll only when the mu plane fits in a handful of vregs;
        # otherwise unroll=4 to keep LLO interleaving without spill blowup.
        plane_vregs = pl.cdiv(na * lanes, 8 * 128)
        unroll = True if (static_trips <= 64 and plane_vregs <= 8) else 4
        mu_in = lax.fori_loop(0, static_trips, step, mu0, unroll=unroll)
    else:
        # Dynamic per-tile sweep count (scalar prefetch).  Round up to a
        # multiple of 4 (extra sweeps are a fixed point, so harmless) and run a
        # 4-step body so the scheduler can still overlap the EUP chain.
        trips = trips_ref[pl.program_id(0)]
        n4 = (trips + 3) // 4

        def step4(_, m_in):
            for _ in range(4):
                m_in = step(0, m_in)
            return m_in

        mu_in = lax.fori_loop(0, n4, step4, mu0)
    mu_ref[...] = mu_in.astype(mu_ref.dtype)

    # pi = softmax over (top, left, diag) parent scores, masked.  The shared
    # +alpha*W term cancels inside the softmax, so it is dropped here.
    a, b, c = parents(mu_in)
    m = jnp.maximum(jnp.maximum(a, b), c)
    ea = jnp.exp(a - m)
    eb = jnp.exp(b - m)
    ec = jnp.exp(c - m)
    inv = 1.0 / (ea + eb + ec)        # exact; runs once so approx saves nothing
    pi0_ref[...] = (ea * inv * msk).astype(pi0_ref.dtype)
    pi1_ref[...] = (eb * inv * msk).astype(pi1_ref.dtype)
    pi2_ref[...] = (ec * inv * msk).astype(pi2_ref.dtype)


def _lane_pad(nb):
    """Smallest nb' >= nb such that nb' divides 128 or is a multiple of 128."""
    if nb % 128 == 0 or 128 % nb == 0:
        return nb
    if nb < 128:
        return pl.next_power_of_2(nb)      # power of two <= 128 -> divides 128
    return -(-nb // 128) * 128


def _pick_batch_tile(B, Na, nb_lane, step_cap_bytes=16 << 20):
    """Batches per grid step.

    Keeps the lane width (Bt*nb_lane) a multiple of 128, keeps the per-step f32
    footprint (~24 live planes) under `step_cap_bytes`, minimizes padded
    (dummy-batch) work, and prefers an even grid with >= 2 steps so v7x's two
    TensorCores stay balanced (harmless on single-TC v5e/v6e).
    """
    base = max(1, 128 // nb_lane)
    plane = Na * nb_lane * 4
    max_bt_vmem = max(base, step_cap_bytes // (plane * 24))
    max_bt = min(max_bt_vmem, -(-B // base) * base)

    best_bt, best_score = base, None
    bt = base
    while bt <= max(base, max_bt):
        steps = -(-B // bt)
        waste = steps * bt - B                       # dummy padded batches
        grid_pen = 0 if (steps >= 2 and steps % 2 == 0) else (1 if steps > 1 else 2)
        score = (waste, grid_pen, steps)
        if best_score is None or score < best_score:
            best_bt, best_score = bt, score
        bt += base
    return best_bt


def bayesian_dtw_forward(W, mask, alpha=ALPHA, x_length=None, y_length=None,
                         stack_pi=True, pi_dtype=jnp.float32):
    """mu, pi = BayesianDTW(alpha).forward(W, mask).

    If x_length / y_length are given, each lane-tile only runs
    max(x_len + y_len - 1) sweeps (scalar-prefetched trip counts).  pi*mask and
    mu[b, x_len, y_len] are exact; mu cells outside the masked region may not be
    fully converged.  Leave them None for bit-for-bit torch-forward semantics.
    """
    B, Na, Nb = W.shape
    nb_lane = _lane_pad(Nb)
    Bt = _pick_batch_tile(B, Na, nb_lane)
    Bp = -(-B // Bt) * Bt
    n_tiles = Bp // Bt

    Wp, mp = W, mask
    if nb_lane != Nb:                 # keep lane-dense stores even for odd Nb
        pad_n = ((0, 0), (0, 0), (0, nb_lane - Nb))
        Wp, mp = jnp.pad(Wp, pad_n), jnp.pad(mp, pad_n)
    if Bp != B:
        pad_b = ((0, Bp - B), (0, 0), (0, 0))
        Wp, mp = jnp.pad(Wp, pad_b), jnp.pad(mp, pad_b)

    # Pack batches into lanes: (Bp, Na, nb_lane) -> (Na, Bp*nb_lane), batch-major.
    W2 = jnp.transpose(Wp, (1, 0, 2)).reshape(Na, Bp * nb_lane)
    m2 = jnp.transpose(mp, (1, 0, 2)).reshape(Na, Bp * nb_lane)

    full_trips = Na + Nb - 1
    dynamic = (x_length is not None) and (y_length is not None)
    if dynamic:
        need = jnp.asarray(x_length, jnp.int32) + jnp.asarray(y_length, jnp.int32) - 1
        need = jnp.clip(need, 1, full_trips)
        need = jnp.pad(need, (0, Bp - B), constant_values=1)
        trips = need.reshape(n_tiles, Bt).max(axis=1).astype(jnp.int32)
        static_trips = None
    else:
        trips = jnp.full((n_tiles,), full_trips, jnp.int32)
        static_trips = full_trips

    lanes = Bt * nb_lane
    blk = pl.BlockSpec((Na, lanes), lambda g, trips_ref: (0, g))
    kernel = functools.partial(_bdtw_kernel, alpha=float(alpha),
                               nb=nb_lane, static_trips=static_trips)

    # VMEM request from actual needs: (2 in + 4 out) double-buffered + ~14 temp
    # planes + 1 MiB margin; cap at 48 MiB so v7x (64 MiB/TC) keeps headroom.
    plane_bytes = Na * lanes * 4
    vmem_limit = int(min(48 << 20, max(plane_bytes * 26 + (1 << 20), 16 << 20)))

    out_shapes = (jax.ShapeDtypeStruct((Na, Bp * nb_lane), jnp.float32),) + tuple(
        jax.ShapeDtypeStruct((Na, Bp * nb_lane), pi_dtype) for _ in range(3))

    mu2, p0, p1, p2 = pl.pallas_call(
        kernel,
        out_shape=out_shapes,
        grid_spec=pltpu.PrefetchScalarGridSpec(
            num_scalar_prefetch=1,
            grid=(n_tiles,),
            in_specs=[blk, blk],
            out_specs=[blk, blk, blk, blk],
        ),
        compiler_params=pltpu.CompilerParams(
            dimension_semantics=("parallel",),
            vmem_limit_bytes=vmem_limit,
        ),
    )(trips, W2, m2)

    def unpack(x):                    # (Na, Bp*nb_lane) -> (B, Na, Nb)
        return jnp.transpose(x.reshape(Na, Bp, nb_lane), (1, 0, 2))[:B, :, :Nb]

    # Glue: re-attach the constant (Na+1, Nb+1) border of mu.
    mu = jnp.pad(unpack(mu2), ((0, 0), (1, 0), (1, 0)), constant_values=NEG)
    mu = mu.at[:, 0, 0].set(0.0)

    pi_planes = (unpack(p0), unpack(p1), unpack(p2))
    if stack_pi:
        # Matches the torch forward's (B, Na, Nb, 3); set stack_pi=False for TPU
        # consumers that can take the three lane-dense planes (cheaper layout).
        pi = jnp.stack(pi_planes, axis=-1)
    else:
        pi = pi_planes
    return mu, pi


def _reference(W, mask, alpha=ALPHA):
    """Pure-JAX replica of the PyTorch forward (compute_location_new + compute_pi_new)."""
    B, Na, Nb = W.shape
    aW = alpha * W
    mu = jnp.zeros((B, Na + 1, Nb + 1), jnp.float32)
    mu = mu.at[:, 0, :].set(NEG).at[:, :, 0].set(NEG).at[:, 0, 0].set(0.0)
    for _ in range(Na + Nb - 1):
        prev = jnp.stack((mu[:, :-1, 1:], mu[:, 1:, :-1], mu[:, :-1, :-1]), axis=3)
        out = jax.scipy.special.logsumexp(prev + aW[..., None], axis=-1)
        mu = jnp.pad(out, ((0, 0), (1, 0), (1, 0)), constant_values=NEG)
        mu = mu.at[:, 0, 0].set(0.0)
    mu_stack = jnp.stack((mu[:, :-1, 1:], mu[:, 1:, :-1], mu[:, :-1, :-1]), axis=3)
    pi = jax.nn.softmax(mu_stack + aW[..., None], axis=-1) * mask[..., None]
    return mu, pi


if __name__ == "__main__":
    key = jax.random.PRNGKey(0)
    B, Na, Nb = 10, 16, 16
    W = jax.random.normal(key, (B, Na, Nb), dtype=jnp.float32)

    # parallelogram-style mask from lengths (stand-in for get_2d_mask_from_lengths)
    x_length = jnp.array([16, 12, 16, 9, 16, 14, 16, 11, 16, 13], dtype=jnp.int32)
    y_length = jnp.array([16, 10, 13, 16, 15, 16, 12, 16, 14, 16], dtype=jnp.int32)
    ri = jnp.arange(Na)[None, :, None]
    cj = jnp.arange(Nb)[None, None, :]
    mask = ((ri < x_length[:, None, None]) & (cj < y_length[:, None, None])).astype(jnp.float32)

    mu_ref, pi_ref = _reference(W, mask)

    # 1) Exact-semantics path (static Na+Nb-1 sweeps) -- matches torch forward().
    mu, pi = bayesian_dtw_forward(W, mask)
    jax.block_until_ready((mu, pi))
    assert mu.shape == (B, Na + 1, Nb + 1) and pi.shape == (B, Na, Nb, 3)
    assert jnp.allclose(mu, mu_ref, rtol=2e-4, atol=2e-4)
    assert jnp.allclose(pi, pi_ref, rtol=5e-3, atol=1e-3)

    # 2) Dynamic per-tile sweep count (scalar prefetch): pi*mask and the terminal
    #    mu[b, x_len, y_len] cells (everything the module consumes) still match.
    mu_d, pi_d = bayesian_dtw_forward(W, mask, x_length=x_length, y_length=y_length)
    jax.block_until_ready((mu_d, pi_d))
    bi = jnp.arange(B)
    assert jnp.allclose(mu_d[bi, x_length, y_length], mu_ref[bi, x_length, y_length],
                        rtol=2e-4, atol=2e-4)
    assert jnp.allclose(pi_d, pi_ref, rtol=5e-3, atol=1e-3)

    print("KERNEL_OK")
</pallas_src>

<mosaic_0001>
module attributes {stable_mosaic.version = 11 : i64} {
  func.func @_bdtw_kernel(%arg0: i32, %arg1: memref<2xi32, #tpu.memory_space<smem>>, %arg2: memref<16x128xf32, #tpu.memory_space<vmem>>, %arg3: memref<16x128xf32, #tpu.memory_space<vmem>>, %arg4: memref<16x128xf32, #tpu.memory_space<vmem>>, %arg5: memref<16x128xf32, #tpu.memory_space<vmem>>, %arg6: memref<16x128xf32, #tpu.memory_space<vmem>>, %arg7: memref<16x128xf32, #tpu.memory_space<vmem>>) attributes {dimension_semantics = [#tpu.dimension_semantics<parallel>], iteration_bounds = array<i64: 2>, scalar_prefetch = 1 : i64, scratch_operands = 0 : i64, tpu.core_type = #tpu.core_type<tc>, window_params = [{transform_indices = @transform_0, window_bounds = array<i64: 16, 128>}, {transform_indices = @transform_1, window_bounds = array<i64: 16, 128>}, {transform_indices = @transform_2, window_bounds = array<i64: 16, 128>}, {transform_indices = @transform_3, window_bounds = array<i64: 16, 128>}, {transform_indices = @transform_4, window_bounds = array<i64: 16, 128>}, {transform_indices = @transform_5, window_bounds = array<i64: 16, 128>}]} {
    %c0 = arith.constant 0 : index
    %c0_0 = arith.constant 0 : index
    %0 = vector.load %arg2[%c0, %c0_0] : memref<16x128xf32, #tpu.memory_space<vmem>>, vector<16x128xf32>
    %c0_1 = arith.constant 0 : index
    %c0_2 = arith.constant 0 : index
    %1 = vector.load %arg3[%c0_1, %c0_2] : memref<16x128xf32, #tpu.memory_space<vmem>>, vector<16x128xf32>
    %cst = arith.constant 1.500000e+00 : f32
    %2 = vector.broadcast %cst : f32 to vector<16x128xf32>
    %3 = arith.mulf %2, %0 : vector<16x128xf32>
    %4 = tpu.iota {dimensions = array<i32: 0>} : vector<16x128xi32>
    %5 = tpu.iota {dimensions = array<i32: 1>} : vector<16x128xi32>
    %c0_i32 = arith.constant 0 : i32
    %6 = vector.broadcast %c0_i32 : i32 to vector<16x128xi32>
    %7 = arith.cmpi eq, %4, %6 : vector<16x128xi32>
    %c16_i32 = arith.constant 16 : i32
    %c0_i32_3 = arith.constant 0 : i32
    %8 = arith.cmpi eq, %c16_i32, %c0_i32_3 : i32
    %c1_i32 = arith.constant 1 : i32
    %9 = arith.select %8, %c1_i32, %c16_i32 : i32
    %10 = vector.broadcast %9 : i32 to vector<16x128xi32>
    %11 = arith.remsi %5, %10 : vector<16x128xi32>
    %c0_i32_4 = arith.constant 0 : i32
    %12 = vector.broadcast %c0_i32_4 : i32 to vector<16x128xi32>
    %13 = arith.cmpi ne, %11, %12 : vector<16x128xi32>
    %c0_i32_5 = arith.constant 0 : i32
    %14 = vector.broadcast %c0_i32_5 : i32 to vector<16x128xi32>
    %15 = arith.cmpi slt, %11, %14 : vector<16x128xi32>
    %c0_i32_6 = arith.constant 0 : i32
    %16 = arith.cmpi slt, %9, %c0_i32_6 : i32
    %17 = vector.broadcast %16 : i1 to vector<16x128xi1>
    %18 = vector.broadcast %17 : vector<16x128xi1> to vector<16x128xi1>
    %19 = arith.xori %15, %18 : vector<16x128xi1>
    %20 = arith.andi %19, %13 : vector<16x128xi1>
    %21 = vector.broadcast %9 : i32 to vector<16x128xi32>
    %22 = arith.addi %11, %21 : vector<16x128xi32>
    %23 = arith.select %20, %22, %11 : vector<16x128xi1>, vector<16x128xi32>
    %c0_i32_7 = arith.constant 0 : i32
    %24 = vector.broadcast %c0_i32_7 : i32 to vector<16x128xi32>
    %25 = arith.cmpi eq, %23, %24 : vector<16x128xi32>
    %26 = arith.ori %7, %25 : vector<16x128xi1>
    %27 = arith.andi %7, %25 : vector<16x128xi1>
    %cst_8 = arith.constant -1.000000e+20 : f32
    %28 = vector.broadcast %cst_8 : f32 to vector<16x128xf32>
    %cst_9 = arith.constant 0.000000e+00 : f32
    %29 = vector.broadcast %cst_9 : f32 to vector<16x128xf32>
    %30 = arith.select %27, %29, %28 : vector<16x128xi1>, vector<16x128xf32>
    %cst_10 = arith.constant 0.000000e+00 : f32
    %31 = vector.broadcast %cst_10 : f32 to vector<16x128xf32>
    %c0_i32_11 = arith.constant 0 : i32
    %c1_i32_12 = arith.constant 1 : i32
    %32 = tpu.dynamic_rotate %31 by %c1_i32_12 dim 0 : vector<16x128xf32>, i32 -> vector<16x128xf32>
    %33 = arith.select %7, %28, %32 : vector<16x128xi1>, vector<16x128xf32>
    %c1_i32_13 = arith.constant 1 : i32
    %34 = tpu.dynamic_rotate %31 by %c1_i32_13 dim 1 : vector<16x128xf32>, i32 -> vector<16x128xf32>
    %35 = arith.select %25, %28, %34 : vector<16x128xi1>, vector<16x128xf32>
    %c1_i32_14 = arith.constant 1 : i32
    %36 = tpu.dynamic_rotate %32 by %c1_i32_14 dim 1 : vector<16x128xf32>, i32 -> vector<16x128xf32>
    %37 = arith.select %26, %30, %36 : vector<16x128xi1>, vector<16x128xf32>
    %38 = arith.maximumf %33, %35 : vector<16x128xf32>
    %39 = arith.minimumf %33, %35 : vector<16x128xf32>
    %40 = arith.maximumf %38, %37 : vector<16x128xf32>
    %41 = arith.maximumf %39, %37 : vector<16x128xf32>
    %42 = arith.minimumf %38, %41 : vector<16x128xf32>
    %43 = arith.minimumf %39, %37 : vector<16x128xf32>
    %44 = arith.addf %3, %40 : vector<16x128xf32>
    %45 = arith.subf %42, %40 : vector<16x128xf32>
    %46 = math.exp %45 : vector<16x128xf32>
    %cst_15 = arith.constant 1.000000e+00 : f32
    %47 = vector.broadcast %cst_15 : f32 to vector<16x128xf32>
    %48 = arith.addf %47, %46 : vector<16x128xf32>
    %49 = arith.subf %43, %40 : vector<16x128xf32>
    %50 = math.exp %49 : vector<16x128xf32>
    %51 = arith.addf %48, %50 : vector<16x128xf32>
    %52 = math.log %51 : vector<16x128xf32>
    %53 = arith.addf %44, %52 : vector<16x128xf32>
    %c1_i32_16 = arith.constant 1 : i32
    %c1_i32_17 = arith.constant 1 : i32
    %54 = tpu.dynamic_rotate %53 by %c1_i32_17 dim 0 : vector<16x128xf32>, i32 -> vector<16x128xf32>
    %55 = arith.select %7, %28, %54 : vector<16x128xi1>, vector<16x128xf32>
    %c1_i32_18 = arith.constant 1 : i32
    %56 = tpu.dynamic_rotate %53 by %c1_i32_18 dim 1 : vector<16x128xf32>, i32 -> vector<16x128xf32>
    %57 = arith.select %25, %28, %56 : vector<16x128xi1>, vector<16x128xf32>
    %c1_i32_19 = arith.constant 1 : i32
    %58 = tpu.dynamic_rotate %54 by %c1_i32_19 dim 1 : vector<16x128xf32>, i32 -> vector<16x128xf32>
    %59 = arith.select %26, %30, %58 : vector<16x128xi1>, vector<16x128xf32>
    %60 = arith.maximumf %55, %57 : vector<16x128xf32>
    %61 = arith.minimumf %55, %57 : vector<16x128xf32>
    %62 = arith.maximumf %60, %59 : vector<16x128xf32>
    %63 = arith.maximumf %61, %59 : vector<16x128xf32>
    %64 = arith.minimumf %60, %63 : vector<16x128xf32>
    %65 = arith.minimumf %61, %59 : vector<16x128xf32>
    %66 = arith.addf %3, %62 : vector<16x128xf32>
    %67 = arith.subf %64, %62 : vector<16x128xf32>
    %68 = math.exp %67 : vector<16x128xf32>
    %cst_20 = arith.constant 1.000000e+00 : f32
    %69 = vector.broadcast %cst_20 : f32 to vector<16x128xf32>
    %70 = arith.addf %69, %68 : vector<16x128xf32>
    %71 = arith.subf %65, %62 : vector<16x128xf32>
    %72 = math.exp %71 : vector<16x128xf32>
    %73 = arith.addf %70, %72 : vector<16x128xf32>
    %74 = math.log %73 : vector<16x128xf32>
    %75 = arith.addf %66, %74 : vector<16x128xf32>
    %c2_i32 = arith.constant 2 : i32
    %c1_i32_21 = arith.constant 1 : i32
    %76 = tpu.dynamic_rotate %75 by %c1_i32_21 dim 0 : vector<16x128xf32>, i32 -> vector<16x128xf32>
    %77 = arith.select %7, %28, %76 : vector<16x128xi1>, vector<16x128xf32>
    %c1_i32_22 = arith.constant 1 : i32
    %78 = tpu.dynamic_rotate %75 by %c1_i32_22 dim 1 : vector<16x128xf32>, i32 -> vector<16x128xf32>
    %79 = arith.select %25, %28, %78 : vector<16x128xi1>, vector<16x128xf32>
    %c1_i32_23 = arith.constant 1 : i32
    %80 = tpu.dynamic_rotate %76 by %c1_i32_23 dim 1 : vector<16x128xf32>, i32 -> vector<16x128xf32>
    %81 = arith.select %26, %30, %80 : vector<16x128xi1>, vector<16x128xf32>
    %82 = arith.maximumf %77, %79 : vector<16x128xf32>
    %83 = arith.minimumf %77, %79 : vector<16x128xf32>
    %84 = arith.maximumf %82, %81 : vector<16x128xf32>
    %85 = arith.maximumf %83, %81 : vector<16x128xf32>
    %86 = arith.minimumf %82, %85 : vector<16x128xf32>
    %87 = arith.minimumf %83, %81 : vector<16x128xf32>
    %88 = arith.addf %3, %84 : vector<16x128xf32>
    %89 = arith.subf %86, %84 : vector<16x128xf32>
    %90 = math.exp %89 : vector<16x128xf32>
    %cst_24 = arith.constant 1.000000e+00 : f32
    %91 = vector.broadcast %cst_24 : f32 to vector<16x128xf32>
    %92 = arith.addf %91, %90 : vector<16x128xf32>
    %93 = arith.subf %87, %84 : vector<16x128xf32>
    %94 = math.exp %93 : vector<16x128xf32>
    %95 = arith.addf %92, %94 : vector<16x128xf32>
    %96 = math.log %95 : vector<16x128xf32>
    %97 = arith.addf %88, %96 : vector<16x128xf32>
    %c3_i32 = arith.constant 3 : i32
    %c1_i32_25 = arith.constant 1 : i32
    %98 = tpu.dynamic_rotate %97 by %c1_i32_25 dim 0 : vector<16x128xf32>, i32 -> vector<16x128xf32>
    %99 = arith.select %7, %28, %98 : vector<16x128xi1>, vector<16x128xf32>
    %c1_i32_26 = arith.constant 1 : i32
    %100 = tpu.dynamic_rotate %97 by %c1_i32_26 dim 1 : vector<16x128xf32>, i32 -> vector<16x128xf32>
    %101 = arith.select %25, %28, %100 : vector<16x128xi1>, vector<16x128xf32>
    %c1_i32_27 = arith.constant 1 : i32
    %102 = tpu.dynamic_rotate %98 by %c1_i32_27 dim 1 : vector<16x128xf32>, i32 -> vector<16x128xf32>
    %103 = arith.select %26, %30, %102 : vector<16x128xi1>, vector<16x128xf32>
    %104 = arith.maximumf %99, %101 : vector<16x128xf32>
    %105 = arith.minimumf %99, %101 : vector<16x128xf32>
    %106 = arith.maximumf %104, %103 : vector<16x128xf32>
    %107 = arith.maximumf %105, %103 : vector<16x128xf32>
    %108 = arith.minimumf %104, %107 : vector<16x128xf32>
    %109 = arith.minimumf %105, %103 : vector<16x128xf32>
    %110 = arith.addf %3, %106 : vector<16x128xf32>
    %111 = arith.subf %108, %106 : vector<16x128xf32>
    %112 = math.exp %111 : vector<16x128xf32>
    %cst_28 = arith.constant 1.000000e+00 : f32
    %113 = vector.broadcast %cst_28 : f32 to vector<16x128xf32>
    %114 = arith.addf %113, %112 : vector<16x128xf32>
    %115 = arith.subf %109, %106 : vector<16x128xf32>
    %116 = math.exp %115 : vector<16x128xf32>
    %117 = arith.addf %114, %116 : vector<16x128xf32>
    %118 = math.log %117 : vector<16x128xf32>
    %119 = arith.addf %110, %118 : vector<16x128xf32>
    %c4_i32 = arith.constant 4 : i32
    %c1_i32_29 = arith.constant 1 : i32
    %120 = tpu.dynamic_rotate %119 by %c1_i32_29 dim 0 : vector<16x128xf32>, i32 -> vector<16x128xf32>
    %121 = arith.select %7, %28, %120 : vector<16x128xi1>, vector<16x128xf32>
    %c1_i32_30 = arith.constant 1 : i32
    %122 = tpu.dynamic_rotate %119 by %c1_i32_30 dim 1 : vector<16x128xf32>, i32 -> vector<16x128xf32>
    %123 = arith.select %25, %28, %122 : vector<16x128xi1>, vector<16x128xf32>
    %c1_i32_31 = arith.constant 1 : i32
    %124 = tpu.dynamic_rotate %120 by %c1_i32_31 dim 1 : vector<16x128xf32>, i32 -> vector<16x128xf32>
    %125 = arith.select %26, %30, %124 : vector<16x128xi1>, vector<16x128xf32>
    %126 = arith.maximumf %121, %123 : vector<16x128xf32>
    %127 = arith.minimumf %121, %123 : vector<16x128xf32>
    %128 = arith.maximumf %126, %125 : vector<16x128xf32>
    %129 = arith.maximumf %127, %125 : vector<16x128xf32>
    %130 = arith.minimumf %126, %129 : vector<16x128xf32>
    %131 = arith.minimumf %127, %125 : vector<16x128xf32>
    %132 = arith.addf %3, %128 : vector<16x128xf32>
    %133 = arith.subf %130, %128 : vector<16x128xf32>
    %134 = math.exp %133 : vector<16x128xf32>
    %cst_32 = arith.constant 1.000000e+00 : f32
    %135 = vector.broadcast %cst_32 : f32 to vector<16x128xf32>
    %136 = arith.addf %135, %134 : vector<16x128xf32>
    %137 = arith.subf %131, %128 : vector<16x128xf32>
    %138 = math.exp %137 : vector<16x128xf32>
    %139 = arith.addf %136, %138 : vector<16x128xf32>
    %140 = math.log %139 : vector<16x128xf32>
    %141 = arith.addf %132, %140 : vector<16x128xf32>
    %c5_i32 = arith.constant 5 : i32
    %c1_i32_33 = arith.constant 1 : i32
    %142 = tpu.dynamic_rotate %141 by %c1_i32_33 dim 0 : vector<16x128xf32>, i32 -> vector<16x128xf32>
    %143 = arith.select %7, %28, %142 : vector<16x128xi1>, vector<16x128xf32>
    %c1_i32_34 = arith.constant 1 : i32
    %144 = tpu.dynamic_rotate %141 by %c1_i32_34 dim 1 : vector<16x128xf32>, i32 -> vector<16x128xf32>
    %145 = arith.select %25, %28, %144 : vector<16x128xi1>, vector<16x128xf32>
    %c1_i32_35 = arith.constant 1 : i32
    %146 = tpu.dynamic_rotate %142 by %c1_i32_35 dim 1 : vector<16x128xf32>, i32 -> vector<16x128xf32>
    %147 = arith.select %26, %30, %146 : vector<16x128xi1>, vector<16x128xf32>
    %148 = arith.maximumf %143, %145 : vector<16x128xf32>
    %149 = arith.minimumf %143, %145 : vector<16x128xf32>
    %150 = arith.maximumf %148, %147 : vector<16x128xf32>
    %151 = arith.maximumf %149, %147 : vector<16x128xf32>
    %152 = arith.minimumf %148, %151 : vector<16x128xf32>
    %153 = arith.minimumf %149, %147 : vector<16x128xf32>
    %154 = arith.addf %3, %150 : vector<16x128xf32>
    %155 = arith.subf %152, %150 : vector<16x128xf32>
    %156 = math.exp %155 : vector<16x128xf32>
    %cst_36 = arith.constant 1.000000e+00 : f32
    %157 = vector.broadcast %cst_36 : f32 to vector<16x128xf32>
    %158 = arith.addf %157, %156 : vector<16x128xf32>
    %159 = arith.subf %153, %150 : vector<16x128xf32>
    %160 = math.exp %159 : vector<16x128xf32>
    %161 = arith.addf %158, %160 : vector<16x128xf32>
    %162 = math.log %161 : vector<16x128xf32>
    %163 = arith.addf %154, %162 : vector<16x128xf32>
    %c6_i32 = arith.constant 6 : i32
    %c1_i32_37 = arith.constant 1 : i32
    %164 = tpu.dynamic_rotate %163 by %c1_i32_37 dim 0 : vector<16x128xf32>, i32 -> vector<16x128xf32>
    %165 = arith.select %7, %28, %164 : vector<16x128xi1>, vector<16x128xf32>
    %c1_i32_38 = arith.constant 1 : i32
    %166 = tpu.dynamic_rotate %163 by %c1_i32_38 dim 1 : vector<16x128xf32>, i32 -> vector<16x128xf32>
    %167 = arith.select %25, %28, %166 : vector<16x128xi1>, vector<16x128xf32>
    %c1_i32_39 = arith.constant 1 : i32
    %168 = tpu.dynamic_rotate %164 by %c1_i32_39 dim 1 : vector<16x128xf32>, i32 -> vector<16x128xf32>
    %169 = arith.select %26, %30, %168 : vector<16x128xi1>, vector<16x128xf32>
    %170 = arith.maximumf %165, %167 : vector<16x128xf32>
    %171 = arith.minimumf %165, %167 : vector<16x128xf32>
    %172 = arith.maximumf %170, %169 : vector<16x128xf32>
    %173 = arith.maximumf %171, %169 : vector<16x128xf32>
    %174 = arith.minimumf %170, %173 : vector<16x128xf32>
    %175 = arith.minimumf %171, %169 : vector<16x128xf32>
    %176 = arith.addf %3, %172 : vector<16x128xf32>
    %177 = arith.subf %174, %172 : vector<16x128xf32>
    %178 = math.exp %177 : vector<16x128xf32>
    %cst_40 = arith.constant 1.000000e+00 : f32
    %179 = vector.broadcast %cst_40 : f32 to vector<16x128xf32>
    %180 = arith.addf %179, %178 : vector<16x128xf32>
    %181 = arith.subf %175, %172 : vector<16x128xf32>
    %182 = math.exp %181 : vector<16x128xf32>
    %183 = arith.addf %180, %182 : vector<16x128xf32>
    %184 = math.log %183 : vector<16x128xf32>
    %185 = arith.addf %176, %184 : vector<16x128xf32>
    %c7_i32 = arith.constant 7 : i32
    %c1_i32_41 = arith.constant 1 : i32
    %186 = tpu.dynamic_rotate %185 by %c1_i32_41 dim 0 : vector<16x128xf32>, i32 -> vector<16x128xf32>
    %187 = arith.select %7, %28, %186 : vector<16x128xi1>, vector<16x128xf32>
    %c1_i32_42 = arith.constant 1 : i32
    %188 = tpu.dynamic_rotate %185 by %c1_i32_42 dim 1 : vector<16x128xf32>, i32 -> vector<16x128xf32>
    %189 = arith.select %25, %28, %188 : vector<16x128xi1>, vector<16x128xf32>
    %c1_i32_43 = arith.constant 1 : i32
    %190 = tpu.dynamic_rotate %186 by %c1_i32_43 dim 1 : vector<16x128xf32>, i32 -> vector<16x128xf32>
    %191 = arith.select %26, %30, %190 : vector<16x128xi1>, vector<16x128xf32>
    %192 = arith.maximumf %187, %189 : vector<16x128xf32>
    %193 = arith.minimumf %187, %189 : vector<16x128xf32>
    %194 = arith.maximumf %192, %191 : vector<16x128xf32>
    %195 = arith.maximumf %193, %191 : vector<16x128xf32>
    %196 = arith.minimumf %192, %195 : vector<16x128xf32>
    %197 = arith.minimumf %193, %191 : vector<16x128xf32>
    %198 = arith.addf %3, %194 : vector<16x128xf32>
    %199 = arith.subf %196, %194 : vector<16x128xf32>
    %200 = math.exp %199 : vector<16x128xf32>
    %cst_44 = arith.constant 1.000000e+00 : f32
    %201 = vector.broadcast %cst_44 : f32 to vector<16x128xf32>
    %202 = arith.addf %201, %200 : vector<16x128xf32>
    %203 = arith.subf %197, %194 : vector<16x128xf32>
    %204 = math.exp %203 : vector<16x128xf32>
    %205 = arith.addf %202, %204 : vector<16x128xf32>
    %206 = math.log %205 : vector<16x128xf32>
    %207 = arith.addf %198, %206 : vector<16x128xf32>
    %c8_i32 = arith.constant 8 : i32
    %c1_i32_45 = arith.constant 1 : i32
    %208 = tpu.dynamic_rotate %207 by %c1_i32_45 dim 0 : vector<16x128xf32>, i32 -> vector<16x128xf32>
    %209 = arith.select %7, %28, %208 : vector<16x128xi1>, vector<16x128xf32>
    %c1_i32_46 = arith.constant 1 : i32
    %210 = tpu.dynamic_rotate %207 by %c1_i32_46 dim 1 : vector<16x128xf32>, i32 -> vector<16x128xf32>
    %211 = arith.select %25, %28, %210 : vector<16x128xi1>, vector<16x128xf32>
    %c1_i32_47 = arith.constant 1 : i32
    %212 = tpu.dynamic_rotate %208 by %c1_i32_47 dim 1 : vector<16x128xf32>, i32 -> vector<16x128xf32>
    %213 = arith.select %26, %30, %212 : vector<16x128xi1>, vector<16x128xf32>
    %214 = arith.maximumf %209, %211 : vector<16x128xf32>
    %215 = arith.minimumf %209, %211 : vector<16x128xf32>
    %216 = arith.maximumf %214, %213 : vector<16x128xf32>
    %217 = arith.maximumf %215, %213 : vector<16x128xf32>
    %218 = arith.minimumf %214, %217 : vector<16x128xf32>
    %219 = arith.minimumf %215, %213 : vector<16x128xf32>
    %220 = arith.addf %3, %216 : vector<16x128xf32>
    %221 = arith.subf %218, %216 : vector<16x128xf32>
    %222 = math.exp %221 : vector<16x128xf32>
    %cst_48 = arith.constant 1.000000e+00 : f32
    %223 = vector.broadcast %cst_48 : f32 to vector<16x128xf32>
    %224 = arith.addf %223, %222 : vector<16x128xf32>
    %225 = arith.subf %219, %216 : vector<16x128xf32>
    %226 = math.exp %225 : vector<16x128xf32>
    %227 = arith.addf %224, %226 : vector<16x128xf32>
    %228 = math.log %227 : vector<16x128xf32>
    %229 = arith.addf %220, %228 : vector<16x128xf32>
    %c9_i32 = arith.constant 9 : i32
    %c1_i32_49 = arith.constant 1 : i32
    %230 = tpu.dynamic_rotate %229 by %c1_i32_49 dim 0 : vector<16x128xf32>, i32 -> vector<16x128xf32>
    %231 = arith.select %7, %28, %230 : vector<16x128xi1>, vector<16x128xf32>
    %c1_i32_50 = arith.constant 1 : i32
    %232 = tpu.dynamic_rotate %229 by %c1_i32_50 dim 1 : vector<16x128xf32>, i32 -> vector<16x128xf32>
    %233 = arith.select %25, %28, %232 : vector<16x128xi1>, vector<16x128xf32>
    %c1_i32_51 = arith.constant 1 : i32
    %234 = tpu.dynamic_rotate %230 by %c1_i32_51 dim 1 : vector<16x128xf32>, i32 -> vector<16x128xf32>
    %235 = arith.select %26, %30, %234 : vector<16x128xi1>, vector<16x128xf32>
    %236 = arith.maximumf %231, %233 : vector<16x128xf32>
    %237 = arith.minimumf %231, %233 : vector<16x128xf32>
    %238 = arith.maximumf %236, %235 : vector<16x128xf32>
    %239 = arith.maximumf %237, %235 : vector<16x128xf32>
    %240 = arith.minimumf %236, %239 : vector<16x128xf32>
    %241 = arith.minimumf %237, %235 : vector<16x128xf32>
    %242 = arith.addf %3, %238 : vector<16x128xf32>
    %243 = arith.subf %240, %238 : vector<16x128xf32>
    %244 = math.exp %243 : vector<16x128xf32>
    %cst_52 = arith.constant 1.000000e+00 : f32
    %245 = vector.broadcast %cst_52 : f32 to vector<16x128xf32>
    %246 = arith.addf %245, %244 : vector<16x128xf32>
    %247 = arith.subf %241, %238 : vector<16x128xf32>
    %248 = math.exp %247 : vector<16x128xf32>
    %249 = arith.addf %246, %248 : vector<16x128xf32>
    %250 = math.log %249 : vector<16x128xf32>
    %251 = arith.addf %242, %250 : vector<16x128xf32>
    %c10_i32 = arith.constant 10 : i32
    %c1_i32_53 = arith.constant 1 : i32
    %252 = tpu.dynamic_rotate %251 by %c1_i32_53 dim 0 : vector<16x128xf32>, i32 -> vector<16x128xf32>
    %253 = arith.select %7, %28, %252 : vector<16x128xi1>, vector<16x128xf32>
    %c1_i32_54 = arith.constant 1 : i32
    %254 = tpu.dynamic_rotate %251 by %c1_i32_54 dim 1 : vector<16x128xf32>, i32 -> vector<16x128xf32>
    %255 = arith.select %25, %28, %254 : vector<16x128xi1>, vector<16x128xf32>
    %c1_i32_55 = arith.constant 1 : i32
    %256 = tpu.dynamic_rotate %252 by %c1_i32_55 dim 1 : vector<16x128xf32>, i32 -> vector<16x128xf32>
    %257 = arith.select %26, %30, %256 : vector<16x128xi1>, vector<16x128xf32>
    %258 = arith.maximumf %253, %255 : vector<16x128xf32>
    %259 = arith.minimumf %253, %255 : vector<16x128xf32>
    %260 = arith.maximumf %258, %257 : vector<16x128xf32>
    %261 = arith.maximumf %259, %257 : vector<16x128xf32>
    %262 = arith.minimumf %258, %261 : vector<16x128xf32>
    %263 = arith.minimumf %259, %257 : vector<16x128xf32>
    %264 = arith.addf %3, %260 : vector<16x128xf32>
    %265 = arith.subf %262, %260 : vector<16x128xf32>
    %266 = math.exp %265 : vector<16x128xf32>
    %cst_56 = arith.constant 1.000000e+00 : f32
    %267 = vector.broadcast %cst_56 : f32 to vector<16x128xf32>
    %268 = arith.addf %267, %266 : vector<16x128xf32>
    %269 = arith.subf %263, %260 : vector<16x128xf32>
    %270 = math.exp %269 : vector<16x128xf32>
    %271 = arith.addf %268, %270 : vector<16x128xf32>
    %272 = math.log %271 : vector<16x128xf32>
    %273 = arith.addf %264, %272 : vector<16x128xf32>
    %c11_i32 = arith.constant 11 : i32
    %c1_i32_57 = arith.constant 1 : i32
    %274 = tpu.dynamic_rotate %273 by %c1_i32_57 dim 0 : vector<16x128xf32>, i32 -> vector<16x128xf32>
    %275 = arith.select %7, %28, %274 : vector<16x128xi1>, vector<16x128xf32>
    %c1_i32_58 = arith.constant 1 : i32
    %276 = tpu.dynamic_rotate %273 by %c1_i32_58 dim 1 : vector<16x128xf32>, i32 -> vector<16x128xf32>
    %277 = arith.select %25, %28, %276 : vector<16x128xi1>, vector<16x128xf32>
    %c1_i32_59 = arith.constant 1 : i32
    %278 = tpu.dynamic_rotate %274 by %c1_i32_59 dim 1 : vector<16x128xf32>, i32 -> vector<16x128xf32>
    %279 = arith.select %26, %30, %278 : vector<16x128xi1>, vector<16x128xf32>
    %280 = arith.maximumf %275, %277 : vector<16x128xf32>
    %281 = arith.minimumf %275, %277 : vector<16x128xf32>
    %282 = arith.maximumf %280, %279 : vector<16x128xf32>
    %283 = arith.maximumf %281, %279 : vector<16x128xf32>
    %284 = arith.minimumf %280, %283 : vector<16x128xf32>
    %285 = arith.minimumf %281, %279 : vector<16x128xf32>
    %286 = arith.addf %3, %282 : vector<16x128xf32>
    %287 = arith.subf %284, %282 : vector<16x128xf32>
    %288 = math.exp %287 : vector<16x128xf32>
    %cst_60 = arith.constant 1.000000e+00 : f32
    %289 = vector.broadcast %cst_60 : f32 to vector<16x128xf32>
    %290 = arith.addf %289, %288 : vector<16x128xf32>
    %291 = arith.subf %285, %282 : vector<16x128xf32>
    %292 = math.exp %291 : vector<16x128xf32>
    %293 = arith.addf %290, %292 : vector<16x128xf32>
    %294 = math.log %293 : vector<16x128xf32>
    %295 = arith.addf %286, %294 : vector<16x128xf32>
    %c12_i32 = arith.constant 12 : i32
    %c1_i32_61 = arith.constant 1 : i32
    %296 = tpu.dynamic_rotate %295 by %c1_i32_61 dim 0 : vector<16x128xf32>, i32 -> vector<16x128xf32>
    %297 = arith.select %7, %28, %296 : vector<16x128xi1>, vector<16x128xf32>
    %c1_i32_62 = arith.constant 1 : i32
    %298 = tpu.dynamic_rotate %295 by %c1_i32_62 dim 1 : vector<16x128xf32>, i32 -> vector<16x128xf32>
    %299 = arith.select %25, %28, %298 : vector<16x128xi1>, vector<16x128xf32>
    %c1_i32_63 = arith.constant 1 : i32
    %300 = tpu.dynamic_rotate %296 by %c1_i32_63 dim 1 : vector<16x128xf32>, i32 -> vector<16x128xf32>
    %301 = arith.select %26, %30, %300 : vector<16x128xi1>, vector<16x128xf32>
    %302 = arith.maximumf %297, %299 : vector<16x128xf32>
    %303 = arith.minimumf %297, %299 : vector<16x128xf32>
    %304 = arith.maximumf %302, %301 : vector<16x128xf32>
    %305 = arith.maximumf %303, %301 : vector<16x128xf32>
    %306 = arith.minimumf %302, %305 : vector<16x128xf32>
    %307 = arith.minimumf %303, %301 : vector<16x128xf32>
    %308 = arith.addf %3, %304 : vector<16x128xf32>
    %309 = arith.subf %306, %304 : vector<16x128xf32>
    %310 = math.exp %309 : vector<16x128xf32>
    %cst_64 = arith.constant 1.000000e+00 : f32
    %311 = vector.broadcast %cst_64 : f32 to vector<16x128xf32>
    %312 = arith.addf %311, %310 : vector<16x128xf32>
    %313 = arith.subf %307, %304 : vector<16x128xf32>
    %314 = math.exp %313 : vector<16x128xf32>
    %315 = arith.addf %312, %314 : vector<16x128xf32>
    %316 = math.log %315 : vector<16x128xf32>
    %317 = arith.addf %308, %316 : vector<16x128xf32>
    %c13_i32 = arith.constant 13 : i32
    %c1_i32_65 = arith.constant 1 : i32
    %318 = tpu.dynamic_rotate %317 by %c1_i32_65 dim 0 : vector<16x128xf32>, i32 -> vector<16x128xf32>
    %319 = arith.select %7, %28, %318 : vector<16x128xi1>, vector<16x128xf32>
    %c1_i32_66 = arith.constant 1 : i32
    %320 = tpu.dynamic_rotate %317 by %c1_i32_66 dim 1 : vector<16x128xf32>, i32 -> vector<16x128xf32>
    %321 = arith.select %25, %28, %320 : vector<16x128xi1>, vector<16x128xf32>
    %c1_i32_67 = arith.constant 1 : i32
    %322 = tpu.dynamic_rotate %318 by %c1_i32_67 dim 1 : vector<16x128xf32>, i32 -> vector<16x128xf32>
    %323 = arith.select %26, %30, %322 : vector<16x128xi1>, vector<16x128xf32>
    %324 = arith.maximumf %319, %321 : vector<16x128xf32>
    %325 = arith.minimumf %319, %321 : vector<16x128xf32>
    %326 = arith.maximumf %324, %323 : vector<16x128xf32>
    %327 = arith.maximumf %325, %323 : vector<16x128xf32>
    %328 = arith.minimumf %324, %327 : vector<16x128xf32>
    %329 = arith.minimumf %325, %323 : vector<16x128xf32>
    %330 = arith.addf %3, %326 : vector<16x128xf32>
    %331 = arith.subf %328, %326 : vector<16x128xf32>
    %332 = math.exp %331 : vector<16x128xf32>
    %cst_68 = arith.constant 1.000000e+00 : f32
    %333 = vector.broadcast %cst_68 : f32 to vector<16x128xf32>
    %334 = arith.addf %333, %332 : vector<16x128xf32>
    %335 = arith.subf %329, %326 : vector<16x128xf32>
    %336 = math.exp %335 : vector<16x128xf32>
    %337 = arith.addf %334, %336 : vector<16x128xf32>
    %338 = math.log %337 : vector<16x128xf32>
    %339 = arith.addf %330, %338 : vector<16x128xf32>
    %c14_i32 = arith.constant 14 : i32
    %c1_i32_69 = arith.constant 1 : i32
    %340 = tpu.dynamic_rotate %339 by %c1_i32_69 dim 0 : vector<16x128xf32>, i32 -> vector<16x128xf32>
    %341 = arith.select %7, %28, %340 : vector<16x128xi1>, vector<16x128xf32>
    %c1_i32_70 = arith.constant 1 : i32
    %342 = tpu.dynamic_rotate %339 by %c1_i32_70 dim 1 : vector<16x128xf32>, i32 -> vector<16x128xf32>
    %343 = arith.select %25, %28, %342 : vector<16x128xi1>, vector<16x128xf32>
    %c1_i32_71 = arith.constant 1 : i32
    %344 = tpu.dynamic_rotate %340 by %c1_i32_71 dim 1 : vector<16x128xf32>, i32 -> vector<16x128xf32>
    %345 = arith.select %26, %30, %344 : vector<16x128xi1>, vector<16x128xf32>
    %346 = arith.maximumf %341, %343 : vector<16x128xf32>
    %347 = arith.minimumf %341, %343 : vector<16x128xf32>
    %348 = arith.maximumf %346, %345 : vector<16x128xf32>
    %349 = arith.maximumf %347, %345 : vector<16x128xf32>
    %350 = arith.minimumf %346, %349 : vector<16x128xf32>
    %351 = arith.minimumf %347, %345 : vector<16x128xf32>
    %352 = arith.addf %3, %348 : vector<16x128xf32>
    %353 = arith.subf %350, %348 : vector<16x128xf32>
    %354 = math.exp %353 : vector<16x128xf32>
    %cst_72 = arith.constant 1.000000e+00 : f32
    %355 = vector.broadcast %cst_72 : f32 to vector<16x128xf32>
    %356 = arith.addf %355, %354 : vector<16x128xf32>
    %357 = arith.subf %351, %348 : vector<16x128xf32>
    %358 = math.exp %357 : vector<16x128xf32>
    %359 = arith.addf %356, %358 : vector<16x128xf32>
    %360 = math.log %359 : vector<16x128xf32>
    %361 = arith.addf %352, %360 : vector<16x128xf32>
    %c15_i32 = arith.constant 15 : i32
    %c1_i32_73 = arith.constant 1 : i32
    %362 = tpu.dynamic_rotate %361 by %c1_i32_73 dim 0 : vector<16x128xf32>, i32 -> vector<16x128xf32>
    %363 = arith.select %7, %28, %362 : vector<16x128xi1>, vector<16x128xf32>
    %c1_i32_74 = arith.constant 1 : i32
    %364 = tpu.dynamic_rotate %361 by %c1_i32_74 dim 1 : vector<16x128xf32>, i32 -> vector<16x128xf32>
    %365 = arith.select %25, %28, %364 : vector<16x128xi1>, vector<16x128xf32>
    %c1_i32_75 = arith.constant 1 : i32
    %366 = tpu.dynamic_rotate %362 by %c1_i32_75 dim 1 : vector<16x128xf32>, i32 -> vector<16x128xf32>
    %367 = arith.select %26, %30, %366 : vector<16x128xi1>, vector<16x128xf32>
    %368 = arith.maximumf %363, %365 : vector<16x128xf32>
    %369 = arith.minimumf %363, %365 : vector<16x128xf32>
    %370 = arith.maximumf %368, %367 : vector<16x128xf32>
    %371 = arith.maximumf %369, %367 : vector<16x128xf32>
    %372 = arith.minimumf %368, %371 : vector<16x128xf32>
    %373 = arith.minimumf %369, %367 : vector<16x128xf32>
    %374 = arith.addf %3, %370 : vector<16x128xf32>
    %375 = arith.subf %372, %370 : vector<16x128xf32>
    %376 = math.exp %375 : vector<16x128xf32>
    %cst_76 = arith.constant 1.000000e+00 : f32
    %377 = vector.broadcast %cst_76 : f32 to vector<16x128xf32>
    %378 = arith.addf %377, %376 : vector<16x128xf32>
    %379 = arith.subf %373, %370 : vector<16x128xf32>
    %380 = math.exp %379 : vector<16x128xf32>
    %381 = arith.addf %378, %380 : vector<16x128xf32>
    %382 = math.log %381 : vector<16x128xf32>
    %383 = arith.addf %374, %382 : vector<16x128xf32>
    %c16_i32_77 = arith.constant 16 : i32
    %c1_i32_78 = arith.constant 1 : i32
    %384 = tpu.dynamic_rotate %383 by %c1_i32_78 dim 0 : vector<16x128xf32>, i32 -> vector<16x128xf32>
    %385 = arith.select %7, %28, %384 : vector<16x128xi1>, vector<16x128xf32>
    %c1_i32_79 = arith.constant 1 : i32
    %386 = tpu.dynamic_rotate %383 by %c1_i32_79 dim 1 : vector<16x128xf32>, i32 -> vector<16x128xf32>
    %387 = arith.select %25, %28, %386 : vector<16x128xi1>, vector<16x128xf32>
    %c1_i32_80 = arith.constant 1 : i32
    %388 = tpu.dynamic_rotate %384 by %c1_i32_80 dim 1 : vector<16x128xf32>, i32 -> vector<16x128xf32>
    %389 = arith.select %26, %30, %388 : vector<16x128xi1>, vector<16x128xf32>
    %390 = arith.maximumf %385, %387 : vector<16x128xf32>
    %391 = arith.minimumf %385, %387 : vector<16x128xf32>
    %392 = arith.maximumf %390, %389 : vector<16x128xf32>
    %393 = arith.maximumf %391, %389 : vector<16x128xf32>
    %394 = arith.minimumf %390, %393 : vector<16x128xf32>
    %395 = arith.minimumf %391, %389 : vector<16x128xf32>
    %396 = arith.addf %3, %392 : vector<16x128xf32>
    %397 = arith.subf %394, %392 : vector<16x128xf32>
    %398 = math.exp %397 : vector<16x128xf32>
    %cst_81 = arith.constant 1.000000e+00 : f32
    %399 = vector.broadcast %cst_81 : f32 to vector<16x128xf32>
    %400 = arith.addf %399, %398 : vector<16x128xf32>
    %401 = arith.subf %395, %392 : vector<16x128xf32>
    %402 = math.exp %401 : vector<16x128xf32>
    %403 = arith.addf %400, %402 : vector<16x128xf32>
    %404 = math.log %403 : vector<16x128xf32>
    %405 = arith.addf %396, %404 : vector<16x128xf32>
    %c17_i32 = arith.constant 17 : i32
    %c1_i32_82 = arith.constant 1 : i32
    %406 = tpu.dynamic_rotate %405 by %c1_i32_82 dim 0 : vector<16x128xf32>, i32 -> vector<16x128xf32>
    %407 = arith.select %7, %28, %406 : vector<16x128xi1>, vector<16x128xf32>
    %c1_i32_83 = arith.constant 1 : i32
    %408 = tpu.dynamic_rotate %405 by %c1_i32_83 dim 1 : vector<16x128xf32>, i32 -> vector<16x128xf32>
    %409 = arith.select %25, %28, %408 : vector<16x128xi1>, vector<16x128xf32>
    %c1_i32_84 = arith.constant 1 : i32
    %410 = tpu.dynamic_rotate %406 by %c1_i32_84 dim 1 : vector<16x128xf32>, i32 -> vector<16x128xf32>
    %411 = arith.select %26, %30, %410 : vector<16x128xi1>, vector<16x128xf32>
    %412 = arith.maximumf %407, %409 : vector<16x128xf32>
    %413 = arith.minimumf %407, %409 : vector<16x128xf32>
    %414 = arith.maximumf %412, %411 : vector<16x128xf32>
    %415 = arith.maximumf %413, %411 : vector<16x128xf32>
    %416 = arith.minimumf %412, %415 : vector<16x128xf32>
    %417 = arith.minimumf %413, %411 : vector<16x128xf32>
    %418 = arith.addf %3, %414 : vector<16x128xf32>
    %419 = arith.subf %416, %414 : vector<16x128xf32>
    %420 = math.exp %419 : vector<16x128xf32>
    %cst_85 = arith.constant 1.000000e+00 : f32
    %421 = vector.broadcast %cst_85 : f32 to vector<16x128xf32>
    %422 = arith.addf %421, %420 : vector<16x128xf32>
    %423 = arith.subf %417, %414 : vector<16x128xf32>
    %424 = math.exp %423 : vector<16x128xf32>
    %425 = arith.addf %422, %424 : vector<16x128xf32>
    %426 = math.log %425 : vector<16x128xf32>
    %427 = arith.addf %418, %426 : vector<16x128xf32>
    %c18_i32 = arith.constant 18 : i32
    %c1_i32_86 = arith.constant 1 : i32
    %428 = tpu.dynamic_rotate %427 by %c1_i32_86 dim 0 : vector<16x128xf32>, i32 -> vector<16x128xf32>
    %429 = arith.select %7, %28, %428 : vector<16x128xi1>, vector<16x128xf32>
    %c1_i32_87 = arith.constant 1 : i32
    %430 = tpu.dynamic_rotate %427 by %c1_i32_87 dim 1 : vector<16x128xf32>, i32 -> vector<16x128xf32>
    %431 = arith.select %25, %28, %430 : vector<16x128xi1>, vector<16x128xf32>
    %c1_i32_88 = arith.constant 1 : i32
    %432 = tpu.dynamic_rotate %428 by %c1_i32_88 dim 1 : vector<16x128xf32>, i32 -> vector<16x128xf32>
    %433 = arith.select %26, %30, %432 : vector<16x128xi1>, vector<16x128xf32>
    %434 = arith.maximumf %429, %431 : vector<16x128xf32>
    %435 = arith.minimumf %429, %431 : vector<16x128xf32>
    %436 = arith.maximumf %434, %433 : vector<16x128xf32>
    %437 = arith.maximumf %435, %433 : vector<16x128xf32>
    %438 = arith.minimumf %434, %437 : vector<16x128xf32>
    %439 = arith.minimumf %435, %433 : vector<16x128xf32>
    %440 = arith.addf %3, %436 : vector<16x128xf32>
    %441 = arith.subf %438, %436 : vector<16x128xf32>
    %442 = math.exp %441 : vector<16x128xf32>
    %cst_89 = arith.constant 1.000000e+00 : f32
    %443 = vector.broadcast %cst_89 : f32 to vector<16x128xf32>
    %444 = arith.addf %443, %442 : vector<16x128xf32>
    %445 = arith.subf %439, %436 : vector<16x128xf32>
    %446 = math.exp %445 : vector<16x128xf32>
    %447 = arith.addf %444, %446 : vector<16x128xf32>
    %448 = math.log %447 : vector<16x128xf32>
    %449 = arith.addf %440, %448 : vector<16x128xf32>
    %c19_i32 = arith.constant 19 : i32
    %c1_i32_90 = arith.constant 1 : i32
    %450 = tpu.dynamic_rotate %449 by %c1_i32_90 dim 0 : vector<16x128xf32>, i32 -> vector<16x128xf32>
    %451 = arith.select %7, %28, %450 : vector<16x128xi1>, vector<16x128xf32>
    %c1_i32_91 = arith.constant 1 : i32
    %452 = tpu.dynamic_rotate %449 by %c1_i32_91 dim 1 : vector<16x128xf32>, i32 -> vector<16x128xf32>
    %453 = arith.select %25, %28, %452 : vector<16x128xi1>, vector<16x128xf32>
    %c1_i32_92 = arith.constant 1 : i32
    %454 = tpu.dynamic_rotate %450 by %c1_i32_92 dim 1 : vector<16x128xf32>, i32 -> vector<16x128xf32>
    %455 = arith.select %26, %30, %454 : vector<16x128xi1>, vector<16x128xf32>
    %456 = arith.maximumf %451, %453 : vector<16x128xf32>
    %457 = arith.minimumf %451, %453 : vector<16x128xf32>
    %458 = arith.maximumf %456, %455 : vector<16x128xf32>
    %459 = arith.maximumf %457, %455 : vector<16x128xf32>
    %460 = arith.minimumf %456, %459 : vector<16x128xf32>
    %461 = arith.minimumf %457, %455 : vector<16x128xf32>
    %462 = arith.addf %3, %458 : vector<16x128xf32>
    %463 = arith.subf %460, %458 : vector<16x128xf32>
    %464 = math.exp %463 : vector<16x128xf32>
    %cst_93 = arith.constant 1.000000e+00 : f32
    %465 = vector.broadcast %cst_93 : f32 to vector<16x128xf32>
    %466 = arith.addf %465, %464 : vector<16x128xf32>
    %467 = arith.subf %461, %458 : vector<16x128xf32>
    %468 = math.exp %467 : vector<16x128xf32>
    %469 = arith.addf %466, %468 : vector<16x128xf32>
    %470 = math.log %469 : vector<16x128xf32>
    %471 = arith.addf %462, %470 : vector<16x128xf32>
    %c20_i32 = arith.constant 20 : i32
    %c1_i32_94 = arith.constant 1 : i32
    %472 = tpu.dynamic_rotate %471 by %c1_i32_94 dim 0 : vector<16x128xf32>, i32 -> vector<16x128xf32>
    %473 = arith.select %7, %28, %472 : vector<16x128xi1>, vector<16x128xf32>
    %c1_i32_95 = arith.constant 1 : i32
    %474 = tpu.dynamic_rotate %471 by %c1_i32_95 dim 1 : vector<16x128xf32>, i32 -> vector<16x128xf32>
    %475 = arith.select %25, %28, %474 : vector<16x128xi1>, vector<16x128xf32>
    %c1_i32_96 = arith.constant 1 : i32
    %476 = tpu.dynamic_rotate %472 by %c1_i32_96 dim 1 : vector<16x128xf32>, i32 -> vector<16x128xf32>
    %477 = arith.select %26, %30, %476 : vector<16x128xi1>, vector<16x128xf32>
    %478 = arith.maximumf %473, %475 : vector<16x128xf32>
    %479 = arith.minimumf %473, %475 : vector<16x128xf32>
    %480 = arith.maximumf %478, %477 : vector<16x128xf32>
    %481 = arith.maximumf %479, %477 : vector<16x128xf32>
    %482 = arith.minimumf %478, %481 : vector<16x128xf32>
    %483 = arith.minimumf %479, %477 : vector<16x128xf32>
    %484 = arith.addf %3, %480 : vector<16x128xf32>
    %485 = arith.subf %482, %480 : vector<16x128xf32>
    %486 = math.exp %485 : vector<16x128xf32>
    %cst_97 = arith.constant 1.000000e+00 : f32
    %487 = vector.broadcast %cst_97 : f32 to vector<16x128xf32>
    %488 = arith.addf %487, %486 : vector<16x128xf32>
    %489 = arith.subf %483, %480 : vector<16x128xf32>
    %490 = math.exp %489 : vector<16x128xf32>
    %491 = arith.addf %488, %490 : vector<16x128xf32>
    %492 = math.log %491 : vector<16x128xf32>
    %493 = arith.addf %484, %492 : vector<16x128xf32>
    %c21_i32 = arith.constant 21 : i32
    %c1_i32_98 = arith.constant 1 : i32
    %494 = tpu.dynamic_rotate %493 by %c1_i32_98 dim 0 : vector<16x128xf32>, i32 -> vector<16x128xf32>
    %495 = arith.select %7, %28, %494 : vector<16x128xi1>, vector<16x128xf32>
    %c1_i32_99 = arith.constant 1 : i32
    %496 = tpu.dynamic_rotate %493 by %c1_i32_99 dim 1 : vector<16x128xf32>, i32 -> vector<16x128xf32>
    %497 = arith.select %25, %28, %496 : vector<16x128xi1>, vector<16x128xf32>
    %c1_i32_100 = arith.constant 1 : i32
    %498 = tpu.dynamic_rotate %494 by %c1_i32_100 dim 1 : vector<16x128xf32>, i32 -> vector<16x128xf32>
    %499 = arith.select %26, %30, %498 : vector<16x128xi1>, vector<16x128xf32>
    %500 = arith.maximumf %495, %497 : vector<16x128xf32>
    %501 = arith.minimumf %495, %497 : vector<16x128xf32>
    %502 = arith.maximumf %500, %499 : vector<16x128xf32>
    %503 = arith.maximumf %501, %499 : vector<16x128xf32>
    %504 = arith.minimumf %500, %503 : vector<16x128xf32>
    %505 = arith.minimumf %501, %499 : vector<16x128xf32>
    %506 = arith.addf %3, %502 : vector<16x128xf32>
    %507 = arith.subf %504, %502 : vector<16x128xf32>
    %508 = math.exp %507 : vector<16x128xf32>
    %cst_101 = arith.constant 1.000000e+00 : f32
    %509 = vector.broadcast %cst_101 : f32 to vector<16x128xf32>
    %510 = arith.addf %509, %508 : vector<16x128xf32>
    %511 = arith.subf %505, %502 : vector<16x128xf32>
    %512 = math.exp %511 : vector<16x128xf32>
    %513 = arith.addf %510, %512 : vector<16x128xf32>
    %514 = math.log %513 : vector<16x128xf32>
    %515 = arith.addf %506, %514 : vector<16x128xf32>
    %c22_i32 = arith.constant 22 : i32
    %c1_i32_102 = arith.constant 1 : i32
    %516 = tpu.dynamic_rotate %515 by %c1_i32_102 dim 0 : vector<16x128xf32>, i32 -> vector<16x128xf32>
    %517 = arith.select %7, %28, %516 : vector<16x128xi1>, vector<16x128xf32>
    %c1_i32_103 = arith.constant 1 : i32
    %518 = tpu.dynamic_rotate %515 by %c1_i32_103 dim 1 : vector<16x128xf32>, i32 -> vector<16x128xf32>
    %519 = arith.select %25, %28, %518 : vector<16x128xi1>, vector<16x128xf32>
    %c1_i32_104 = arith.constant 1 : i32
    %520 = tpu.dynamic_rotate %516 by %c1_i32_104 dim 1 : vector<16x128xf32>, i32 -> vector<16x128xf32>
    %521 = arith.select %26, %30, %520 : vector<16x128xi1>, vector<16x128xf32>
    %522 = arith.maximumf %517, %519 : vector<16x128xf32>
    %523 = arith.minimumf %517, %519 : vector<16x128xf32>
    %524 = arith.maximumf %522, %521 : vector<16x128xf32>
    %525 = arith.maximumf %523, %521 : vector<16x128xf32>
    %526 = arith.minimumf %522, %525 : vector<16x128xf32>
    %527 = arith.minimumf %523, %521 : vector<16x128xf32>
    %528 = arith.addf %3, %524 : vector<16x128xf32>
    %529 = arith.subf %526, %524 : vector<16x128xf32>
    %530 = math.exp %529 : vector<16x128xf32>
    %cst_105 = arith.constant 1.000000e+00 : f32
    %531 = vector.broadcast %cst_105 : f32 to vector<16x128xf32>
    %532 = arith.addf %531, %530 : vector<16x128xf32>
    %533 = arith.subf %527, %524 : vector<16x128xf32>
    %534 = math.exp %533 : vector<16x128xf32>
    %535 = arith.addf %532, %534 : vector<16x128xf32>
    %536 = math.log %535 : vector<16x128xf32>
    %537 = arith.addf %528, %536 : vector<16x128xf32>
    %c23_i32 = arith.constant 23 : i32
    %c1_i32_106 = arith.constant 1 : i32
    %538 = tpu.dynamic_rotate %537 by %c1_i32_106 dim 0 : vector<16x128xf32>, i32 -> vector<16x128xf32>
    %539 = arith.select %7, %28, %538 : vector<16x128xi1>, vector<16x128xf32>
    %c1_i32_107 = arith.constant 1 : i32
    %540 = tpu.dynamic_rotate %537 by %c1_i32_107 dim 1 : vector<16x128xf32>, i32 -> vector<16x128xf32>
    %541 = arith.select %25, %28, %540 : vector<16x128xi1>, vector<16x128xf32>
    %c1_i32_108 = arith.constant 1 : i32
    %542 = tpu.dynamic_rotate %538 by %c1_i32_108 dim 1 : vector<16x128xf32>, i32 -> vector<16x128xf32>
    %543 = arith.select %26, %30, %542 : vector<16x128xi1>, vector<16x128xf32>
    %544 = arith.maximumf %539, %541 : vector<16x128xf32>
    %545 = arith.minimumf %539, %541 : vector<16x128xf32>
    %546 = arith.maximumf %544, %543 : vector<16x128xf32>
    %547 = arith.maximumf %545, %543 : vector<16x128xf32>
    %548 = arith.minimumf %544, %547 : vector<16x128xf32>
    %549 = arith.minimumf %545, %543 : vector<16x128xf32>
    %550 = arith.addf %3, %546 : vector<16x128xf32>
    %551 = arith.subf %548, %546 : vector<16x128xf32>
    %552 = math.exp %551 : vector<16x128xf32>
    %cst_109 = arith.constant 1.000000e+00 : f32
    %553 = vector.broadcast %cst_109 : f32 to vector<16x128xf32>
    %554 = arith.addf %553, %552 : vector<16x128xf32>
    %555 = arith.subf %549, %546 : vector<16x128xf32>
    %556 = math.exp %555 : vector<16x128xf32>
    %557 = arith.addf %554, %556 : vector<16x128xf32>
    %558 = math.log %557 : vector<16x128xf32>
    %559 = arith.addf %550, %558 : vector<16x128xf32>
    %c24_i32 = arith.constant 24 : i32
    %c1_i32_110 = arith.constant 1 : i32
    %560 = tpu.dynamic_rotate %559 by %c1_i32_110 dim 0 : vector<16x128xf32>, i32 -> vector<16x128xf32>
    %561 = arith.select %7, %28, %560 : vector<16x128xi1>, vector<16x128xf32>
    %c1_i32_111 = arith.constant 1 : i32
    %562 = tpu.dynamic_rotate %559 by %c1_i32_111 dim 1 : vector<16x128xf32>, i32 -> vector<16x128xf32>
    %563 = arith.select %25, %28, %562 : vector<16x128xi1>, vector<16x128xf32>
    %c1_i32_112 = arith.constant 1 : i32
    %564 = tpu.dynamic_rotate %560 by %c1_i32_112 dim 1 : vector<16x128xf32>, i32 -> vector<16x128xf32>
    %565 = arith.select %26, %30, %564 : vector<16x128xi1>, vector<16x128xf32>
    %566 = arith.maximumf %561, %563 : vector<16x128xf32>
    %567 = arith.minimumf %561, %563 : vector<16x128xf32>
    %568 = arith.maximumf %566, %565 : vector<16x128xf32>
    %569 = arith.maximumf %567, %565 : vector<16x128xf32>
    %570 = arith.minimumf %566, %569 : vector<16x128xf32>
    %571 = arith.minimumf %567, %565 : vector<16x128xf32>
    %572 = arith.addf %3, %568 : vector<16x128xf32>
    %573 = arith.subf %570, %568 : vector<16x128xf32>
    %574 = math.exp %573 : vector<16x128xf32>
    %cst_113 = arith.constant 1.000000e+00 : f32
    %575 = vector.broadcast %cst_113 : f32 to vector<16x128xf32>
    %576 = arith.addf %575, %574 : vector<16x128xf32>
    %577 = arith.subf %571, %568 : vector<16x128xf32>
    %578 = math.exp %577 : vector<16x128xf32>
    %579 = arith.addf %576, %578 : vector<16x128xf32>
    %580 = math.log %579 : vector<16x128xf32>
    %581 = arith.addf %572, %580 : vector<16x128xf32>
    %c25_i32 = arith.constant 25 : i32
    %c1_i32_114 = arith.constant 1 : i32
    %582 = tpu.dynamic_rotate %581 by %c1_i32_114 dim 0 : vector<16x128xf32>, i32 -> vector<16x128xf32>
    %583 = arith.select %7, %28, %582 : vector<16x128xi1>, vector<16x128xf32>
    %c1_i32_115 = arith.constant 1 : i32
    %584 = tpu.dynamic_rotate %581 by %c1_i32_115 dim 1 : vector<16x128xf32>, i32 -> vector<16x128xf32>
    %585 = arith.select %25, %28, %584 : vector<16x128xi1>, vector<16x128xf32>
    %c1_i32_116 = arith.constant 1 : i32
    %586 = tpu.dynamic_rotate %582 by %c1_i32_116 dim 1 : vector<16x128xf32>, i32 -> vector<16x128xf32>
    %587 = arith.select %26, %30, %586 : vector<16x128xi1>, vector<16x128xf32>
    %588 = arith.maximumf %583, %585 : vector<16x128xf32>
    %589 = arith.minimumf %583, %585 : vector<16x128xf32>
    %590 = arith.maximumf %588, %587 : vector<16x128xf32>
    %591 = arith.maximumf %589, %587 : vector<16x128xf32>
    %592 = arith.minimumf %588, %591 : vector<16x128xf32>
    %593 = arith.minimumf %589, %587 : vector<16x128xf32>
    %594 = arith.addf %3, %590 : vector<16x128xf32>
    %595 = arith.subf %592, %590 : vector<16x128xf32>
    %596 = math.exp %595 : vector<16x128xf32>
    %cst_117 = arith.constant 1.000000e+00 : f32
    %597 = vector.broadcast %cst_117 : f32 to vector<16x128xf32>
    %598 = arith.addf %597, %596 : vector<16x128xf32>
    %599 = arith.subf %593, %590 : vector<16x128xf32>
    %600 = math.exp %599 : vector<16x128xf32>
    %601 = arith.addf %598, %600 : vector<16x128xf32>
    %602 = math.log %601 : vector<16x128xf32>
    %603 = arith.addf %594, %602 : vector<16x128xf32>
    %c26_i32 = arith.constant 26 : i32
    %c1_i32_118 = arith.constant 1 : i32
    %604 = tpu.dynamic_rotate %603 by %c1_i32_118 dim 0 : vector<16x128xf32>, i32 -> vector<16x128xf32>
    %605 = arith.select %7, %28, %604 : vector<16x128xi1>, vector<16x128xf32>
    %c1_i32_119 = arith.constant 1 : i32
    %606 = tpu.dynamic_rotate %603 by %c1_i32_119 dim 1 : vector<16x128xf32>, i32 -> vector<16x128xf32>
    %607 = arith.select %25, %28, %606 : vector<16x128xi1>, vector<16x128xf32>
    %c1_i32_120 = arith.constant 1 : i32
    %608 = tpu.dynamic_rotate %604 by %c1_i32_120 dim 1 : vector<16x128xf32>, i32 -> vector<16x128xf32>
    %609 = arith.select %26, %30, %608 : vector<16x128xi1>, vector<16x128xf32>
    %610 = arith.maximumf %605, %607 : vector<16x128xf32>
    %611 = arith.minimumf %605, %607 : vector<16x128xf32>
    %612 = arith.maximumf %610, %609 : vector<16x128xf32>
    %613 = arith.maximumf %611, %609 : vector<16x128xf32>
    %614 = arith.minimumf %610, %613 : vector<16x128xf32>
    %615 = arith.minimumf %611, %609 : vector<16x128xf32>
    %616 = arith.addf %3, %612 : vector<16x128xf32>
    %617 = arith.subf %614, %612 : vector<16x128xf32>
    %618 = math.exp %617 : vector<16x128xf32>
    %cst_121 = arith.constant 1.000000e+00 : f32
    %619 = vector.broadcast %cst_121 : f32 to vector<16x128xf32>
    %620 = arith.addf %619, %618 : vector<16x128xf32>
    %621 = arith.subf %615, %612 : vector<16x128xf32>
    %622 = math.exp %621 : vector<16x128xf32>
    %623 = arith.addf %620, %622 : vector<16x128xf32>
    %624 = math.log %623 : vector<16x128xf32>
    %625 = arith.addf %616, %624 : vector<16x128xf32>
    %c27_i32 = arith.constant 27 : i32
    %c1_i32_122 = arith.constant 1 : i32
    %626 = tpu.dynamic_rotate %625 by %c1_i32_122 dim 0 : vector<16x128xf32>, i32 -> vector<16x128xf32>
    %627 = arith.select %7, %28, %626 : vector<16x128xi1>, vector<16x128xf32>
    %c1_i32_123 = arith.constant 1 : i32
    %628 = tpu.dynamic_rotate %625 by %c1_i32_123 dim 1 : vector<16x128xf32>, i32 -> vector<16x128xf32>
    %629 = arith.select %25, %28, %628 : vector<16x128xi1>, vector<16x128xf32>
    %c1_i32_124 = arith.constant 1 : i32
    %630 = tpu.dynamic_rotate %626 by %c1_i32_124 dim 1 : vector<16x128xf32>, i32 -> vector<16x128xf32>
    %631 = arith.select %26, %30, %630 : vector<16x128xi1>, vector<16x128xf32>
    %632 = arith.maximumf %627, %629 : vector<16x128xf32>
    %633 = arith.minimumf %627, %629 : vector<16x128xf32>
    %634 = arith.maximumf %632, %631 : vector<16x128xf32>
    %635 = arith.maximumf %633, %631 : vector<16x128xf32>
    %636 = arith.minimumf %632, %635 : vector<16x128xf32>
    %637 = arith.minimumf %633, %631 : vector<16x128xf32>
    %638 = arith.addf %3, %634 : vector<16x128xf32>
    %639 = arith.subf %636, %634 : vector<16x128xf32>
    %640 = math.exp %639 : vector<16x128xf32>
    %cst_125 = arith.constant 1.000000e+00 : f32
    %641 = vector.broadcast %cst_125 : f32 to vector<16x128xf32>
    %642 = arith.addf %641, %640 : vector<16x128xf32>
    %643 = arith.subf %637, %634 : vector<16x128xf32>
    %644 = math.exp %643 : vector<16x128xf32>
    %645 = arith.addf %642, %644 : vector<16x128xf32>
    %646 = math.log %645 : vector<16x128xf32>
    %647 = arith.addf %638, %646 : vector<16x128xf32>
    %c28_i32 = arith.constant 28 : i32
    %c1_i32_126 = arith.constant 1 : i32
    %648 = tpu.dynamic_rotate %647 by %c1_i32_126 dim 0 : vector<16x128xf32>, i32 -> vector<16x128xf32>
    %649 = arith.select %7, %28, %648 : vector<16x128xi1>, vector<16x128xf32>
    %c1_i32_127 = arith.constant 1 : i32
    %650 = tpu.dynamic_rotate %647 by %c1_i32_127 dim 1 : vector<16x128xf32>, i32 -> vector<16x128xf32>
    %651 = arith.select %25, %28, %650 : vector<16x128xi1>, vector<16x128xf32>
    %c1_i32_128 = arith.constant 1 : i32
    %652 = tpu.dynamic_rotate %648 by %c1_i32_128 dim 1 : vector<16x128xf32>, i32 -> vector<16x128xf32>
    %653 = arith.select %26, %30, %652 : vector<16x128xi1>, vector<16x128xf32>
    %654 = arith.maximumf %649, %651 : vector<16x128xf32>
    %655 = arith.minimumf %649, %651 : vector<16x128xf32>
    %656 = arith.maximumf %654, %653 : vector<16x128xf32>
    %657 = arith.maximumf %655, %653 : vector<16x128xf32>
    %658 = arith.minimumf %654, %657 : vector<16x128xf32>
    %659 = arith.minimumf %655, %653 : vector<16x128xf32>
    %660 = arith.addf %3, %656 : vector<16x128xf32>
    %661 = arith.subf %658, %656 : vector<16x128xf32>
    %662 = math.exp %661 : vector<16x128xf32>
    %cst_129 = arith.constant 1.000000e+00 : f32
    %663 = vector.broadcast %cst_129 : f32 to vector<16x128xf32>
    %664 = arith.addf %663, %662 : vector<16x128xf32>
    %665 = arith.subf %659, %656 : vector<16x128xf32>
    %666 = math.exp %665 : vector<16x128xf32>
    %667 = arith.addf %664, %666 : vector<16x128xf32>
    %668 = math.log %667 : vector<16x128xf32>
    %669 = arith.addf %660, %668 : vector<16x128xf32>
    %c29_i32 = arith.constant 29 : i32
    %c1_i32_130 = arith.constant 1 : i32
    %670 = tpu.dynamic_rotate %669 by %c1_i32_130 dim 0 : vector<16x128xf32>, i32 -> vector<16x128xf32>
    %671 = arith.select %7, %28, %670 : vector<16x128xi1>, vector<16x128xf32>
    %c1_i32_131 = arith.constant 1 : i32
    %672 = tpu.dynamic_rotate %669 by %c1_i32_131 dim 1 : vector<16x128xf32>, i32 -> vector<16x128xf32>
    %673 = arith.select %25, %28, %672 : vector<16x128xi1>, vector<16x128xf32>
    %c1_i32_132 = arith.constant 1 : i32
    %674 = tpu.dynamic_rotate %670 by %c1_i32_132 dim 1 : vector<16x128xf32>, i32 -> vector<16x128xf32>
    %675 = arith.select %26, %30, %674 : vector<16x128xi1>, vector<16x128xf32>
    %676 = arith.maximumf %671, %673 : vector<16x128xf32>
    %677 = arith.minimumf %671, %673 : vector<16x128xf32>
    %678 = arith.maximumf %676, %675 : vector<16x128xf32>
    %679 = arith.maximumf %677, %675 : vector<16x128xf32>
    %680 = arith.minimumf %676, %679 : vector<16x128xf32>
    %681 = arith.minimumf %677, %675 : vector<16x128xf32>
    %682 = arith.addf %3, %678 : vector<16x128xf32>
    %683 = arith.subf %680, %678 : vector<16x128xf32>
    %684 = math.exp %683 : vector<16x128xf32>
    %cst_133 = arith.constant 1.000000e+00 : f32
    %685 = vector.broadcast %cst_133 : f32 to vector<16x128xf32>
    %686 = arith.addf %685, %684 : vector<16x128xf32>
    %687 = arith.subf %681, %678 : vector<16x128xf32>
    %688 = math.exp %687 : vector<16x128xf32>
    %689 = arith.addf %686, %688 : vector<16x128xf32>
    %690 = math.log %689 : vector<16x128xf32>
    %691 = arith.addf %682, %690 : vector<16x128xf32>
    %c30_i32 = arith.constant 30 : i32
    %c1_i32_134 = arith.constant 1 : i32
    %692 = tpu.dynamic_rotate %691 by %c1_i32_134 dim 0 : vector<16x128xf32>, i32 -> vector<16x128xf32>
    %693 = arith.select %7, %28, %692 : vector<16x128xi1>, vector<16x128xf32>
    %c1_i32_135 = arith.constant 1 : i32
    %694 = tpu.dynamic_rotate %691 by %c1_i32_135 dim 1 : vector<16x128xf32>, i32 -> vector<16x128xf32>
    %695 = arith.select %25, %28, %694 : vector<16x128xi1>, vector<16x128xf32>
    %c1_i32_136 = arith.constant 1 : i32
    %696 = tpu.dynamic_rotate %692 by %c1_i32_136 dim 1 : vector<16x128xf32>, i32 -> vector<16x128xf32>
    %697 = arith.select %26, %30, %696 : vector<16x128xi1>, vector<16x128xf32>
    %698 = arith.maximumf %693, %695 : vector<16x128xf32>
    %699 = arith.minimumf %693, %695 : vector<16x128xf32>
    %700 = arith.maximumf %698, %697 : vector<16x128xf32>
    %701 = arith.maximumf %699, %697 : vector<16x128xf32>
    %702 = arith.minimumf %698, %701 : vector<16x128xf32>
    %703 = arith.minimumf %699, %697 : vector<16x128xf32>
    %704 = arith.addf %3, %700 : vector<16x128xf32>
    %705 = arith.subf %702, %700 : vector<16x128xf32>
    %706 = math.exp %705 : vector<16x128xf32>
    %cst_137 = arith.constant 1.000000e+00 : f32
    %707 = vector.broadcast %cst_137 : f32 to vector<16x128xf32>
    %708 = arith.addf %707, %706 : vector<16x128xf32>
    %709 = arith.subf %703, %700 : vector<16x128xf32>
    %710 = math.exp %709 : vector<16x128xf32>
    %711 = arith.addf %708, %710 : vector<16x128xf32>
    %712 = math.log %711 : vector<16x128xf32>
    %713 = arith.addf %704, %712 : vector<16x128xf32>
    %c0_138 = arith.constant 0 : index
    %c0_139 = arith.constant 0 : index
    %714 = vector.load %arg4[%c0_138, %c0_139] : memref<16x128xf32, #tpu.memory_space<vmem>>, vector<16x128xf32>
    tpu.vector_store %arg4[%c0_138, %c0_139], %713 {strides = array<i32>} : memref<16x128xf32, #tpu.memory_space<vmem>>, vector<16x128xf32>,
    %c1_i32_140 = arith.constant 1 : i32
    %715 = tpu.dynamic_rotate %713 by %c1_i32_140 dim 0 : vector<16x128xf32>, i32 -> vector<16x128xf32>
    %716 = arith.select %7, %28, %715 : vector<16x128xi1>, vector<16x128xf32>
    %c1_i32_141 = arith.constant 1 : i32
    %717 = tpu.dynamic_rotate %713 by %c1_i32_141 dim 1 : vector<16x128xf32>, i32 -> vector<16x128xf32>
    %718 = arith.select %25, %28, %717 : vector<16x128xi1>, vector<16x128xf32>
    %c1_i32_142 = arith.constant 1 : i32
    %719 = tpu.dynamic_rotate %715 by %c1_i32_142 dim 1 : vector<16x128xf32>, i32 -> vector<16x128xf32>
    %720 = arith.select %26, %30, %719 : vector<16x128xi1>, vector<16x128xf32>
    %721 = arith.maximumf %716, %718 : vector<16x128xf32>
    %722 = arith.maximumf %721, %720 : vector<16x128xf32>
    %723 = arith.subf %716, %722 : vector<16x128xf32>
    %724 = math.exp %723 : vector<16x128xf32>
    %725 = arith.subf %718, %722 : vector<16x128xf32>
    %726 = math.exp %725 : vector<16x128xf32>
    %727 = arith.subf %720, %722 : vector<16x128xf32>
    %728 = math.exp %727 : vector<16x128xf32>
    %729 = arith.addf %724, %726 : vector<16x128xf32>
    %730 = arith.addf %729, %728 : vector<16x128xf32>
    %cst_143 = arith.constant 1.000000e+00 : f32
    %731 = vector.broadcast %cst_143 : f32 to vector<16x128xf32>
    %732 = arith.divf %731, %730 : vector<16x128xf32>
    %733 = arith.mulf %724, %732 : vector<16x128xf32>
    %734 = arith.mulf %733, %1 : vector<16x128xf32>
    %c0_144 = arith.constant 0 : index
    %c0_145 = arith.constant 0 : index
    %735 = vector.load %arg5[%c0_144, %c0_145] : memref<16x128xf32, #tpu.memory_space<vmem>>, vector<16x128xf32>
    tpu.vector_store %arg5[%c0_144, %c0_145], %734 {strides = array<i32>} : memref<16x128xf32, #tpu.memory_space<vmem>>, vector<16x128xf32>,
    %736 = arith.mulf %726, %732 : vector<16x128xf32>
    %737 = arith.mulf %736, %1 : vector<16x128xf32>
    %c0_146 = arith.constant 0 : index
    %c0_147 = arith.constant 0 : index
    %738 = vector.load %arg6[%c0_146, %c0_147] : memref<16x128xf32, #tpu.memory_space<vmem>>, vector<16x128xf32>
    tpu.vector_store %arg6[%c0_146, %c0_147], %737 {strides = array<i32>} : memref<16x128xf32, #tpu.memory_space<vmem>>, vector<16x128xf32>,
    %739 = arith.mulf %728, %732 : vector<16x128xf32>
    %740 = arith.mulf %739, %1 : vector<16x128xf32>
    %c0_148 = arith.constant 0 : index
    %c0_149 = arith.constant 0 : index
    %741 = vector.load %arg7[%c0_148, %c0_149] : memref<16x128xf32, #tpu.memory_space<vmem>>, vector<16x128xf32>
    tpu.vector_store %arg7[%c0_148, %c0_149], %740 {strides = array<i32>} : memref<16x128xf32, #tpu.memory_space<vmem>>, vector<16x128xf32>,
    return
  }
  func.func @transform_0(%arg0: i32, %arg1: memref<2xi32, #tpu.memory_space<smem>>) -> (i32, i32) {
    %c0_i32 = arith.constant 0 : i32
    %c0_i32_0 = arith.constant 0 : i32
    return %c0_i32, %arg0 : i32, i32
  }
  func.func @transform_1(%arg0: i32, %arg1: memref<2xi32, #tpu.memory_space<smem>>) -> (i32, i32) {
    %c0_i32 = arith.constant 0 : i32
    %c0_i32_0 = arith.constant 0 : i32
    return %c0_i32, %arg0 : i32, i32
  }
  func.func @transform_2(%arg0: i32, %arg1: memref<2xi32, #tpu.memory_space<smem>>) -> (i32, i32) {
    %c0_i32 = arith.constant 0 : i32
    %c0_i32_0 = arith.constant 0 : i32
    return %c0_i32, %arg0 : i32, i32
  }
  func.func @transform_3(%arg0: i32, %arg1: memref<2xi32, #tpu.memory_space<smem>>) -> (i32, i32) {
    %c0_i32 = arith.constant 0 : i32
    %c0_i32_0 = arith.constant 0 : i32
    return %c0_i32, %arg0 : i32, i32
  }
  func.func @transform_4(%arg0: i32, %arg1: memref<2xi32, #tpu.memory_space<smem>>) -> (i32, i32) {
    %c0_i32 = arith.constant 0 : i32
    %c0_i32_0 = arith.constant 0 : i32
    return %c0_i32, %arg0 : i32, i32
  }
  func.func @transform_5(%arg0: i32, %arg1: memref<2xi32, #tpu.memory_space<smem>>) -> (i32, i32) {
    %c0_i32 = arith.constant 0 : i32
    %c0_i32_0 = arith.constant 0 : i32
    return %c0_i32, %arg0 : i32, i32
  }
}

</mosaic_0001>

<llo_original>
// kernel: tpu_custom_call.1
$region0: #{tpu_custom_call.1}
  #allocation0 [shape = 'u32[]', space=smem, size = 0x4, offset = 0x4, fixed_abs, tag = 'smem constant byte address 0x4 - core index']
  #allocation1 [shape = 'u32[144,128]{1,0:T(1,128)}', space=vmem, size = 0x12000, scoped, tag = 'internal scratch']
  #allocation2 [shape = 's32[1]{0}', space=sflag, size = 0x4, scoped, tag = 'scoped memory for tpu_custom_call.1']
  #allocation3 [shape = 'u8[512]{0}', space=smem, size = 0x200, scoped, tag = 'prefetched SMEM operand 0']
  %s0 = inlined_call_operand.hbm [shape: s32[2], index: 0, kind: input, shape index: {}]
  %s1 = inlined_call_operand.hbm [shape: f32[16,256], index: 1, kind: input, shape index: {}]
  %s2 = inlined_call_operand.hbm [shape: f32[16,256], index: 2, kind: input, shape index: {}]
  %s3 = inlined_call_operand.hbm [shape: f32[16,256], index: 3, kind: output, shape index: {0}]
  %s4 = inlined_call_operand.hbm [shape: f32[16,256], index: 4, kind: output, shape index: {1}]
  %s5 = inlined_call_operand.hbm [shape: f32[16,256], index: 5, kind: output, shape index: {2}]
  %s6 = inlined_call_operand.hbm [shape: f32[16,256], index: 6, kind: output, shape index: {3}]
  %7 = xla_tuple %s3, %s4, %s5, %s6
  %s8 = sld [smem:[#allocation0]]
  $region73: #{tpu_custom_call.1} parent=0
    _
  %s10 = ssub.s32 1, %s8
  %s11 = scalar_select 0, %s10, %s8
  %13 = dma.hbm_to_smem %s0, 16, [#allocation3], [#allocation2]
  %14 = dma.done [#allocation2], 16
  %15 = sfence
  $region1: #{tpu_custom_call.1} parent=0
    #allocation4 [shape = 'u8[16384]{0}', space=vmem, size = 0x4000, scoped, tag = 'input window, operand 1']
    #allocation5 [shape = 's32[2]{0}', space=sflag, size = 0x8, scoped, tag = 'scoped memory for tpu_custom_call.1']
    #allocation6 [shape = 's32[2]{0}', space=sflag, size = 0x8, scoped, tag = 'scoped memory for tpu_custom_call.1']
    #allocation7 [shape = 'u8[16384]{0}', space=vmem, size = 0x4000, scoped, tag = 'input window, operand 2']
    #allocation8 [shape = 's32[2]{0}', space=sflag, size = 0x8, scoped, tag = 'scoped memory for tpu_custom_call.1']
    #allocation9 [shape = 'u8[16384]{0}', space=vmem, size = 0x4000, scoped, tag = 'output window, operand 0']
    #allocation10 [shape = 'u8[16384]{0}', space=vmem, size = 0x4000, scoped, tag = 'output window, operand 1']
    #allocation11 [shape = 's32[2]{0}', space=sflag, size = 0x8, scoped, tag = 'scoped memory for tpu_custom_call.1']
    #allocation12 [shape = 'u8[16384]{0}', space=vmem, size = 0x4000, scoped, tag = 'output window, operand 2']
    #allocation13 [shape = 'u8[16384]{0}', space=vmem, size = 0x4000, scoped, tag = 'output window, operand 3']
    #allocation14 [shape = 's32[2]{0}', space=sflag, size = 0x8, scoped, tag = 'scoped memory for tpu_custom_call.1']
    %16 = vsyncpa [#allocation5], 0
    %s17 = scalar_lea.sflag [#allocation5], 1
    %18 = vsyncpa %s17, 0
    %19 = vsyncpa [#allocation8], 0
    %s20 = scalar_lea.sflag [#allocation8], 1
    %21 = vsyncpa %s20, 0
    %22 = vsyncpa [#allocation6], 0
    %s23 = scalar_lea.sflag [#allocation6], 1
    %24 = vsyncpa %s23, 0
    %25 = vsyncpa [#allocation11], 0
    %s26 = scalar_lea.sflag [#allocation11], 1
    %27 = vsyncpa %s26, 0
    %28 = vsyncpa [#allocation14], 0
    %s29 = scalar_lea.sflag [#allocation14], 1
    %30 = vsyncpa %s29, 0
    loop: start=0, step=1, limit=4
    $region2: #{tpu_custom_call.1} parent=1 // loop_pre_header
      _
    $region3: #{tpu_custom_call.1} parent=1 // loop_header
      %s32 = sphi 0, %s36
      %p33 = scmp.ge.s32.totalorder %s32, 4
      %s42 = sphi 0, %s44
      %s45 = sphi 0, %s42
      %s46 = sphi 0, %s45
      %s62 = sphi 0, %s46
      %s68 = sphi 0, %s70
      %s71 = sphi 0, %s68
      %s72 = sphi 0, %s71
      %s88 = sphi 0, %s72
      %s94 = sphi 0, %s96
      %s97 = sphi 0, %s94
      %s98 = sphi 0, %s97
      %s114 = sphi 0, %s98
      %s120 = sphi 0, %s122
      %s123 = sphi 0, %s120
      %s124 = sphi 0, %s123
      %s140 = sphi 0, %s124
      %s146 = sphi 0, %s148
      %s149 = sphi 0, %s146
      %s150 = sphi 0, %s149
      %s166 = sphi 0, %s150
      %s172 = sphi 0, %s174
      %s175 = sphi 0, %s172
      %s176 = sphi 0, %s175
      %s192 = sphi 0, %s176
    $region4: #{tpu_custom_call.1} parent=1 // loop_header_branch
      %35 = sbr.rel (%p33) target = $region8
    $region5: #{tpu_custom_call.1} parent=1 // loop_body
      %s37 = ssub.s32 %s32, 1
      %s38 = ssub.s32 %s32, 2
      %s39 = sadd.s32 %s32, 1
      %s40 = ssub.s32 %s32, %s39
      %p41 = scmp.eq.s32.totalorder %s40, 0
      %s43 = sadd.s32 %s42, 1
      %s44 = scalar_select %p41, %s42, %s43
      %p47 = pneg %p41
      %p48 = scmp.eq.s32.totalorder %s32, 1
      %p49 = por %p47, %p48
      %p50 = scmp.ne.s32.totalorder %s42, %s45
      %p51 = scmp.eq.s32.totalorder %s32, 0
      %p52 = por %p50, %p51
      %p53 = scmp.ne.s32.totalorder %s42, %s45
      %p54 = scmp.eq.s32.totalorder %s37, 1
      %p55 = por %p53, %p54
      %p56 = scmp.ne.s32.totalorder %s45, %s46
      %p57 = scmp.eq.s32.totalorder %s37, 0
      %p58 = por %p56, %p57
      %p59 = scmp.ne.s32.totalorder %s45, %s46
      %p60 = scmp.eq.s32.totalorder %s38, 1
      %p61 = por %p59, %p60
      %p63 = scmp.ne.s32.totalorder %s46, %s62
      %p64 = scmp.eq.s32.totalorder %s38, 0
      %p65 = por %p63, %p64
      %s66 = ssub.s32 %s32, %s39
      %p67 = scmp.eq.s32.totalorder %s66, 0
      %s69 = sadd.s32 %s68, 1
      %s70 = scalar_select %p67, %s68, %s69
      %p73 = pneg %p67
      %p74 = scmp.eq.s32.totalorder %s32, 1
      %p75 = por %p73, %p74
      %p76 = scmp.ne.s32.totalorder %s68, %s71
      %p77 = scmp.eq.s32.totalorder %s32, 0
      %p78 = por %p76, %p77
      %p79 = scmp.ne.s32.totalorder %s68, %s71
      %p80 = scmp.eq.s32.totalorder %s37, 1
      %p81 = por %p79, %p80
      %p82 = scmp.ne.s32.totalorder %s71, %s72
      %p83 = scmp.eq.s32.totalorder %s37, 0
      %p84 = por %p82, %p83
      %p85 = scmp.ne.s32.totalorder %s71, %s72
      %p86 = scmp.eq.s32.totalorder %s38, 1
      %p87 = por %p85, %p86
      %p89 = scmp.ne.s32.totalorder %s72, %s88
      %p90 = scmp.eq.s32.totalorder %s38, 0
      %p91 = por %p89, %p90
      %s92 = ssub.s32 %s32, %s39
      %p93 = scmp.eq.s32.totalorder %s92, 0
      %s95 = sadd.s32 %s94, 1
      %s96 = scalar_select %p93, %s94, %s95
      %p99 = pneg %p93
      %p100 = scmp.eq.s32.totalorder %s32, 1
      %p101 = por %p99, %p100
      %p102 = scmp.ne.s32.totalorder %s94, %s97
      %p103 = scmp.eq.s32.totalorder %s32, 0
      %p104 = por %p102, %p103
      %p105 = scmp.ne.s32.totalorder %s94, %s97
      %p106 = scmp.eq.s32.totalorder %s37, 1
      %p107 = por %p105, %p106
      %p108 = scmp.ne.s32.totalorder %s97, %s98
      %p109 = scmp.eq.s32.totalorder %s37, 0
      %p110 = por %p108, %p109
      %p111 = scmp.ne.s32.totalorder %s97, %s98
      %p112 = scmp.eq.s32.totalorder %s38, 1
      %p113 = por %p111, %p112
      %p115 = scmp.ne.s32.totalorder %s98, %s114
      %p116 = scmp.eq.s32.totalorder %s38, 0
      %p117 = por %p115, %p116
      %s118 = ssub.s32 %s32, %s39
      %p119 = scmp.eq.s32.totalorder %s118, 0
      %s121 = sadd.s32 %s120, 1
      %s122 = scalar_select %p119, %s120, %s121
      %p125 = pneg %p119
      %p126 = scmp.eq.s32.totalorder %s32, 1
      %p127 = por %p125, %p126
      %p128 = scmp.ne.s32.totalorder %s120, %s123
      %p129 = scmp.eq.s32.totalorder %s32, 0
      %p130 = por %p128, %p129
      %p131 = scmp.ne.s32.totalorder %s120, %s123
      %p132 = scmp.eq.s32.totalorder %s37, 1
      %p133 = por %p131, %p132
      %p134 = scmp.ne.s32.totalorder %s123, %s124
      %p135 = scmp.eq.s32.totalorder %s37, 0
      %p136 = por %p134, %p135
      %p137 = scmp.ne.s32.totalorder %s123, %s124
      %p138 = scmp.eq.s32.totalorder %s38, 1
      %p139 = por %p137, %p138
      %p141 = scmp.ne.s32.totalorder %s124, %s140
      %p142 = scmp.eq.s32.totalorder %s38, 0
      %p143 = por %p141, %p142
      %s144 = ssub.s32 %s32, %s39
      %p145 = scmp.eq.s32.totalorder %s144, 0
      %s147 = sadd.s32 %s146, 1
      %s148 = scalar_select %p145, %s146, %s147
      %p151 = pneg %p145
      %p152 = scmp.eq.s32.totalorder %s32, 1
      %p153 = por %p151, %p152
      %p154 = scmp.ne.s32.totalorder %s146, %s149
      %p155 = scmp.eq.s32.totalorder %s32, 0
      %p156 = por %p154, %p155
      %p157 = scmp.ne.s32.totalorder %s146, %s149
      %p158 = scmp.eq.s32.totalorder %s37, 1
      %p159 = por %p157, %p158
      %p160 = scmp.ne.s32.totalorder %s149, %s150
      %p161 = scmp.eq.s32.totalorder %s37, 0
      %p162 = por %p160, %p161
      %p163 = scmp.ne.s32.totalorder %s149, %s150
      %p164 = scmp.eq.s32.totalorder %s38, 1
      %p165 = por %p163, %p164
      %p167 = scmp.ne.s32.totalorder %s150, %s166
      %p168 = scmp.eq.s32.totalorder %s38, 0
      %p169 = por %p167, %p168
      %s170 = ssub.s32 %s32, %s39
      %p171 = scmp.eq.s32.totalorder %s170, 0
      %s173 = sadd.s32 %s172, 1
      %s174 = scalar_select %p171, %s172, %s173
      %p177 = pneg %p171
      %p178 = scmp.eq.s32.totalorder %s32, 1
      %p179 = por %p177, %p178
      %p180 = scmp.ne.s32.totalorder %s172, %s175
      %p181 = scmp.eq.s32.totalorder %s32, 0
      %p182 = por %p180, %p181
      %p183 = scmp.ne.s32.totalorder %s172, %s175
      %p184 = scmp.eq.s32.totalorder %s37, 1
      %p185 = por %p183, %p184
      %p186 = scmp.ne.s32.totalorder %s175, %s176
      %p187 = scmp.eq.s32.totalorder %s37, 0
      %p188 = por %p186, %p187
      %p189 = scmp.ne.s32.totalorder %s175, %s176
      %p190 = scmp.eq.s32.totalorder %s38, 1
      %p191 = por %p189, %p190
      %p193 = scmp.ne.s32.totalorder %s176, %s192
      %p194 = scmp.eq.s32.totalorder %s38, 0
      %p195 = por %p193, %p194
      %p196 = scmp.le.s32.totalorder 1, %s32
      %p197 = scmp.lt.s32.totalorder %s32, 3
      %p198 = pnand %p196, %p197
      %p199 = pneg %p198
      // Predicated region
      $region9: #{tpu_custom_call.1} parent=5 // pred_check
        _
      $region10: #{tpu_custom_call.1} parent=5 // pred_check_branch
        %201 = sbr.rel (%p198) target = $region12
      $region11: #{tpu_custom_call.1} parent=5 // pred_region
        %s202 = ssub.s32 %s32, 1
      $region12: #{tpu_custom_call.1} parent=5 // pred_fallthru
        _
      %p203 = scmp.lt.s32.totalorder %s32, 2
      // Predicated region
      $region13: #{tpu_custom_call.1} parent=5 // pred_check
        %p204 = pneg %p203
      $region14: #{tpu_custom_call.1} parent=5 // pred_check_branch
        %206 = sbr.rel (%p204) target = $region16
      $region15: #{tpu_custom_call.1} parent=5 // pred_region
        // Predicated region
        $region17: #{tpu_custom_call.1} parent=15 // pred_check
          %p207 = pneg %p52
        $region18: #{tpu_custom_call.1} parent=15 // pred_check_branch
          %209 = sbr.rel (%p207) target = $region20
        $region19: #{tpu_custom_call.1} parent=15 // pred_region
          %s210 = sand.u32 %s42, 1
          %s211 = scalar_lea.sflag [#allocation5], %s210
          %s212 = sand.u32 %s42, 1
          %s213 = smul.addr %s212, 16
          %s214 = scalar_lea.vmem [#allocation4], %s213
          %s216 = ssub.s32 256, 256
          %217 = vsyncadd %s211, %s216
          %s218 = smul.addr %s32, 128
          %s219 = scalar_lea.hbm %s1, %s218
          %s220 = sshll.u32 %s214, 4
          %s221 = int_to_ptr.vmem [resolvable:$true] %s220
          %226 = dma.hbm_to_vmem [thread:$0]  %s219, 256, %s221, %s211, 256, 128, 8
        $region20: #{tpu_custom_call.1} parent=15 // pred_fallthru
          _
        // Predicated region
        $region21: #{tpu_custom_call.1} parent=15 // pred_check
          %p227 = pneg %p78
        $region22: #{tpu_custom_call.1} parent=15 // pred_check_branch
          %229 = sbr.rel (%p227) target = $region24
        $region23: #{tpu_custom_call.1} parent=15 // pred_region
          %s230 = sand.u32 %s68, 1
          %s231 = scalar_lea.sflag [#allocation8], %s230
          %s232 = sand.u32 %s68, 1
          %s233 = smul.addr %s232, 16
          %s234 = scalar_lea.vmem [#allocation7], %s233
          %s236 = ssub.s32 256, 256
          %237 = vsyncadd %s231, %s236
          %s238 = smul.addr %s32, 128
          %s239 = scalar_lea.hbm %s2, %s238
          %s240 = sshll.u32 %s234, 4
          %s241 = int_to_ptr.vmem [resolvable:$true] %s240
          %246 = dma.hbm_to_vmem [thread:$0]  %s239, 256, %s241, %s231, 256, 128, 8
        $region24: #{tpu_custom_call.1} parent=15 // pred_fallthru
          _
      $region16: #{tpu_custom_call.1} parent=5 // pred_fallthru
        _
      %p247 = scmp.le.s32.totalorder 1, %s32
      %p248 = scmp.lt.s32.totalorder %s32, 3
      %p249 = pnand %p247, %p248
      %p250 = pneg %p249
      // Predicated region
      $region25: #{tpu_custom_call.1} parent=5 // pred_check
        _
      $region26: #{tpu_custom_call.1} parent=5 // pred_check_branch
        %252 = sbr.rel (%p249) target = $region28
      $region27: #{tpu_custom_call.1} parent=5 // pred_region
        %s253 = ssub.s32 %s32, 1
        %s254 = sand.u32 %s45, 1
        %s255 = scalar_lea.sflag [#allocation5], %s254
        %s256 = sand.u32 %s45, 1
        %s257 = smul.addr %s256, 16
        %s258 = scalar_lea.vmem [#allocation4], %s257
        // Predicated region
        $region29: #{tpu_custom_call.1} parent=27 // pred_check
          %p259 = pneg %p58
        $region30: #{tpu_custom_call.1} parent=27 // pred_check_branch
          %261 = sbr.rel (%p259) target = $region32
        $region31: #{tpu_custom_call.1} parent=27 // pred_region
          %262 = dma.done %s255, 256
        $region32: #{tpu_custom_call.1} parent=27 // pred_fallthru
          _
        %s263 = sand.u32 %s71, 1
        %s264 = scalar_lea.sflag [#allocation8], %s263
        %s265 = sand.u32 %s71, 1
        %s266 = smul.addr %s265, 16
        %s267 = scalar_lea.vmem [#allocation7], %s266
        // Predicated region
        $region33: #{tpu_custom_call.1} parent=27 // pred_check
          %p268 = pneg %p84
        $region34: #{tpu_custom_call.1} parent=27 // pred_check_branch
          %270 = sbr.rel (%p268) target = $region36
        $region35: #{tpu_custom_call.1} parent=27 // pred_region
          %271 = dma.done %s264, 256
        $region36: #{tpu_custom_call.1} parent=27 // pred_fallthru
          _
        %s272 = sand.u32 %s45, 1
        %s273 = scalar_lea.sflag [#allocation5], %s272
        %s274 = sand.u32 %s45, 1
        %s275 = smul.addr %s274, 16
        %s276 = scalar_lea.vmem [#allocation4], %s275
        %p277 = pneg %p58
        %p278 = pneg %p55
        %s279 = sand.u32 %s71, 1
        %s280 = scalar_lea.sflag [#allocation8], %s279
        %s281 = sand.u32 %s71, 1
        %s282 = smul.addr %s281, 16
        %s283 = scalar_lea.vmem [#allocation7], %s282
        %p284 = pneg %p84
        %p285 = pneg %p81
        %p286 = pneg %p110
        %p287 = pneg %p107
        %s288 = sand.u32 %s97, 1
        %s289 = scalar_lea.sflag [#allocation6], %s288
        %s290 = sand.u32 %s97, 1
        %s291 = smul.addr %s290, 16
        %s292 = scalar_lea.vmem [#allocation9], %s291
        %p293 = pneg %p136
        %p294 = pneg %p133
        %s295 = sand.u32 %s37, 1
        %s296 = scalar_lea.sflag [#allocation11], %s295
        %s297 = sand.u32 %s123, 1
        %s298 = smul.addr %s297, 16
        %s299 = scalar_lea.vmem [#allocation10], %s298
        %p300 = pneg %p162
        %p301 = pneg %p159
        %s302 = sand.u32 %s37, 1
        %s303 = scalar_lea.sflag [#allocation11], %s302
        %s304 = sand.u32 %s149, 1
        %s305 = smul.addr %s304, 16
        %s306 = scalar_lea.vmem [#allocation12], %s305
        %p307 = pneg %p188
        %p308 = pneg %p185
        %s309 = sand.u32 %s175, 1
        %s310 = scalar_lea.sflag [#allocation14], %s309
        %s311 = sand.u32 %s175, 1
        %s312 = smul.addr %s311, 16
        %s313 = scalar_lea.vmem [#allocation13], %s312
        %v314 = vld [vmem:[%s258] sm:$0xff]
        %v315 = vld [vmem:[%s258 + $0x8] sm:$0xff]
        %v316 = vld [vmem:[%s267] sm:$0xff]
        %v317 = vld [vmem:[%s267 + $0x8] sm:$0xff]
        %v318 = vmul.f32 %v314, 1.5
        %v319 = vmul.f32 %v315, 1.5
        %v320 = vlaneseq
        %v321 = vshrl.u32 %v320, 7
        %v322 = vadd.s32 %v321, 8
        %v323 = vlaneseq
        %v324 = vand.u32 %v323, 127
        %vm325 = vcmp.eq.s32.totalorder %v321, 0
        %vm326 = vcmp.eq.s32.totalorder %v322, 0
        %vm327 = vcmp.lt.s32.totalorder %v324, 0
        %v328 = vsub.s32 0, %v324
        %v329 = vsel %vm327, %v328, %v324
        %v330 = vshrl.u32 %v329, 4
        %v331 = vand.u32 %v329, 15
        %v332 = vsub.s32 0, %v331
        %v333 = vsel %vm327, %v332, %v331
        %vm334 = vcmp.ne.s32.totalorder %v333, 0
        %vm335 = vcmp.lt.s32.totalorder %v333, 0
        %vm336 = vmand %vm335, %vm334
        %v337 = vadd.s32 %v333, 16
        %v338 = vsel %vm336, %v337, %v333
        %vm339 = vcmp.eq.s32.totalorder %v338, 0
        %vm340 = vmor %vm325, %vm339
        %vm341 = vmor %vm326, %vm339
        %vm342 = vmand %vm325, %vm339
        %vm343 = vmand %vm326, %vm339
        %v344 = vsel %vm342, 0.0, -1e+20
        %v345 = vsel %vm343, 0.0, -1e+20
        %vm346 = vcmp.lt.s32.totalorder %v321, 1
        %v347 = vsel %vm325, -1e+20, 0.0
        %v348 = vsel %vm326, -1e+20, 0.0
        %349 = vrot.lane.b32.xlu0 0.0, 1
        %v350 = vpop.permute.xlu0 %349
        %v351 = vsel %vm339, -1e+20, %v350
        %352 = vrot.lane.b32.xlu0 0.0, 1
        %v353 = vpop.permute.xlu0 %352
        %v354 = vsel %vm340, %v344, %v353
        %v355 = vsel %vm341, %v345, %v353
        %v356 = vmax.f32 %v347, %v351
        %v357 = vmax.f32 %v348, %v351
        %v358 = vmin.f32 %v347, %v351
        %v359 = vmin.f32 %v348, %v351
        %v360 = vmax.f32 %v356, %v354
        %v361 = vmax.f32 %v357, %v355
        %v362 = vmax.f32 %v358, %v354
        %v363 = vmax.f32 %v359, %v355
        %v364 = vmin.f32 %v356, %v362
        %v365 = vmin.f32 %v357, %v363
        %v366 = vmin.f32 %v358, %v354
        %v367 = vmin.f32 %v359, %v355
        %v368 = vadd.f32 %v318, %v360
        %v369 = vadd.f32 %v319, %v361
        %v370 = vsub.f32 %v364, %v360
        %v371 = vsub.f32 %v365, %v361
        %v372 = vmul.f32 %v370, 1.442695
        %v373 = vpow.pop %v372
        %v374 = vmul.f32 %v371, 1.442695
        %v375 = vpow.pop %v374
        %v376 = vadd.f32 %v373, 1.0
        %v377 = vadd.f32 %v375, 1.0
        %v378 = vsub.f32 %v366, %v360
        %v379 = vsub.f32 %v367, %v361
        %v380 = vmul.f32 %v378, 1.442695
        %v381 = vpow.pop %v380
        %v382 = vmul.f32 %v379, 1.442695
        %v383 = vpow.pop %v382
        %v384 = vadd.f32 %v376, %v381
        %v385 = vadd.f32 %v377, %v383
        %v386 = vlog2.pop %v384
        %v387 = vmul.f32 %v386, 0.6931472
        %v388 = vlog2.pop %v385
        %v389 = vmul.f32 %v388, 0.6931472
        %v390 = vadd.f32 %v368, %v387
        %v391 = vadd.f32 %v369, %v389
        %v392 = vrot.slane %v390, 7
        %v393 = vrot.slane %v391, 7
        %v394 = vsel %vm346, %v392, %v393
        %v395 = vsel %vm346, %v393, %v392
        %v396 = vsel %vm325, -1e+20, %v395
        %v397 = vsel %vm326, -1e+20, %v394
        %398 = vrot.lane.b32.xlu0 %v390, 1
        %v399 = vpop.permute.xlu0 %398
        %400 = vrot.lane.b32.xlu0 %v391, 1
        %v401 = vpop.permute.xlu0 %400
        %v402 = vsel %vm339, -1e+20, %v399
        %v403 = vsel %vm339, -1e+20, %v401
        %404 = vrot.lane.b32.xlu0 %v395, 1
        %v405 = vpop.permute.xlu0 %404
        %406 = vrot.lane.b32.xlu0 %v394, 1
        %v407 = vpop.permute.xlu0 %406
        %v408 = vsel %vm340, %v344, %v405
        %v409 = vsel %vm341, %v345, %v407
        %v410 = vmax.f32 %v396, %v402
        %v411 = vmax.f32 %v397, %v403
        %v412 = vmin.f32 %v396, %v402
        %v413 = vmin.f32 %v397, %v403
        %v414 = vmax.f32 %v410, %v408
        %v415 = vmax.f32 %v411, %v409
        %v416 = vmax.f32 %v412, %v408
        %v417 = vmax.f32 %v413, %v409
        %v418 = vmin.f32 %v410, %v416
        %v419 = vmin.f32 %v411, %v417
        %v420 = vmin.f32 %v412, %v408
        %v421 = vmin.f32 %v413, %v409
        %v422 = vadd.f32 %v318, %v414
        %v423 = vadd.f32 %v319, %v415
        %v424 = vsub.f32 %v418, %v414
        %v425 = vsub.f32 %v419, %v415
        %v426 = vmul.f32 %v424, 1.442695
        %v427 = vpow.pop %v426
        %v428 = vmul.f32 %v425, 1.442695
        %v429 = vpow.pop %v428
        %v430 = vadd.f32 %v427, 1.0
        %v431 = vadd.f32 %v429, 1.0
        %v432 = vsub.f32 %v420, %v414
        %v433 = vsub.f32 %v421, %v415
        %v434 = vmul.f32 %v432, 1.442695
        %v435 = vpow.pop %v434
        %v436 = vmul.f32 %v433, 1.442695
        %v437 = vpow.pop %v436
        %v438 = vadd.f32 %v430, %v435
        %v439 = vadd.f32 %v431, %v437
        %v440 = vlog2.pop %v438
        %v441 = vmul.f32 %v440, 0.6931472
        %v442 = vlog2.pop %v439
        %v443 = vmul.f32 %v442, 0.6931472
        %v444 = vadd.f32 %v422, %v441
        %v445 = vadd.f32 %v423, %v443
        %v446 = vrot.slane %v444, 7
        %v447 = vrot.slane %v445, 7
        %v448 = vsel %vm346, %v446, %v447
        %v449 = vsel %vm346, %v447, %v446
        %v450 = vsel %vm325, -1e+20, %v449
        %v451 = vsel %vm326, -1e+20, %v448
        %452 = vrot.lane.b32.xlu0 %v444, 1
        %v453 = vpop.permute.xlu0 %452
        %454 = vrot.lane.b32.xlu0 %v445, 1
        %v455 = vpop.permute.xlu0 %454
        %v456 = vsel %vm339, -1e+20, %v453
        %v457 = vsel %vm339, -1e+20, %v455
        %458 = vrot.lane.b32.xlu0 %v449, 1
        %v459 = vpop.permute.xlu0 %458
        %460 = vrot.lane.b32.xlu0 %v448, 1
        %v461 = vpop.permute.xlu0 %460
        %v462 = vsel %vm340, %v344, %v459
        %v463 = vsel %vm341, %v345, %v461
        %v464 = vmax.f32 %v450, %v456
        %v465 = vmax.f32 %v451, %v457
        %v466 = vmin.f32 %v450, %v456
        %v467 = vmin.f32 %v451, %v457
        %v468 = vmax.f32 %v464, %v462
        %v469 = vmax.f32 %v465, %v463
        %v470 = vmax.f32 %v466, %v462
        %v471 = vmax.f32 %v467, %v463
        %v472 = vmin.f32 %v464, %v470
        %v473 = vmin.f32 %v465, %v471
        %v474 = vmin.f32 %v466, %v462
        %v475 = vmin.f32 %v467, %v463
        %v476 = vadd.f32 %v318, %v468
        %v477 = vadd.f32 %v319, %v469
        %v478 = vsub.f32 %v472, %v468
        %v479 = vsub.f32 %v473, %v469
        %v480 = vmul.f32 %v478, 1.442695
        %v481 = vpow.pop %v480
        %v482 = vmul.f32 %v479, 1.442695
        %v483 = vpow.pop %v482
        %v484 = vadd.f32 %v481, 1.0
        %v485 = vadd.f32 %v483, 1.0
        %v486 = vsub.f32 %v474, %v468
        %v487 = vsub.f32 %v475, %v469
        %v488 = vmul.f32 %v486, 1.442695
        %v489 = vpow.pop %v488
        %v490 = vmul.f32 %v487, 1.442695
        %v491 = vpow.pop %v490
        %v492 = vadd.f32 %v484, %v489
        %v493 = vadd.f32 %v485, %v491
        %v494 = vlog2.pop %v492
        %v495 = vmul.f32 %v494, 0.6931472
        %v496 = vlog2.pop %v493
        %v497 = vmul.f32 %v496, 0.6931472
        %v498 = vadd.f32 %v476, %v495
        %v499 = vadd.f32 %v477, %v497
        %v500 = vrot.slane %v498, 7
        %v501 = vrot.slane %v499, 7
        %v502 = vsel %vm346, %v500, %v501
        %v503 = vsel %vm346, %v501, %v500
        %v504 = vsel %vm325, -1e+20, %v503
        %v505 = vsel %vm326, -1e+20, %v502
        %506 = vrot.lane.b32.xlu0 %v498, 1
        %v507 = vpop.permute.xlu0 %506
        %508 = vrot.lane.b32.xlu0 %v499, 1
        %v509 = vpop.permute.xlu0 %508
        %v510 = vsel %vm339, -1e+20, %v507
        %v511 = vsel %vm339, -1e+20, %v509
        %512 = vrot.lane.b32.xlu0 %v503, 1
        %v513 = vpop.permute.xlu0 %512
        %514 = vrot.lane.b32.xlu0 %v502, 1
        %v515 = vpop.permute.xlu0 %514
        %v516 = vsel %vm340, %v344, %v513
        %v517 = vsel %vm341, %v345, %v515
        %v518 = vmax.f32 %v504, %v510
        %v519 = vmax.f32 %v505, %v511
        %v520 = vmin.f32 %v504, %v510
        %v521 = vmin.f32 %v505, %v511
        %v522 = vmax.f32 %v518, %v516
        %v523 = vmax.f32 %v519, %v517
        %v524 = vmax.f32 %v520, %v516
        %v525 = vmax.f32 %v521, %v517
        %v526 = vmin.f32 %v518, %v524
        %v527 = vmin.f32 %v519, %v525
        %v528 = vmin.f32 %v520, %v516
        %v529 = vmin.f32 %v521, %v517
        %v530 = vadd.f32 %v318, %v522
        %v531 = vadd.f32 %v319, %v523
        %v532 = vsub.f32 %v526, %v522
        %v533 = vsub.f32 %v527, %v523
        %v534 = vmul.f32 %v532, 1.442695
        %v535 = vpow.pop %v534
        %v536 = vmul.f32 %v533, 1.442695
        %v537 = vpow.pop %v536
        %v538 = vadd.f32 %v535, 1.0
        %v539 = vadd.f32 %v537, 1.0
        %v540 = vsub.f32 %v528, %v522
        %v541 = vsub.f32 %v529, %v523
        %v542 = vmul.f32 %v540, 1.442695
        %v543 = vpow.pop %v542
        %v544 = vmul.f32 %v541, 1.442695
        %v545 = vpow.pop %v544
        %v546 = vadd.f32 %v538, %v543
        %v547 = vadd.f32 %v539, %v545
        %v548 = vlog2.pop %v546
        %v549 = vmul.f32 %v548, 0.6931472
        %v550 = vlog2.pop %v547
        %v551 = vmul.f32 %v550, 0.6931472
        %v552 = vadd.f32 %v530, %v549
        %v553 = vadd.f32 %v531, %v551
        %v554 = vrot.slane %v552, 7
        %v555 = vrot.slane %v553, 7
        %v556 = vsel %vm346, %v554, %v555
        %v557 = vsel %vm346, %v555, %v554
        %v558 = vsel %vm325, -1e+20, %v557
        %v559 = vsel %vm326, -1e+20, %v556
        %560 = vrot.lane.b32.xlu0 %v552, 1
        %v561 = vpop.permute.xlu0 %560
        %562 = vrot.lane.b32.xlu0 %v553, 1
        %v563 = vpop.permute.xlu0 %562
        %v564 = vsel %vm339, -1e+20, %v561
        %v565 = vsel %vm339, -1e+20, %v563
        %566 = vrot.lane.b32.xlu0 %v557, 1
        %v567 = vpop.permute.xlu0 %566
        %568 = vrot.lane.b32.xlu0 %v556, 1
        %v569 = vpop.permute.xlu0 %568
        %v570 = vsel %vm340, %v344, %v567
        %v571 = vsel %vm341, %v345, %v569
        %v572 = vmax.f32 %v558, %v564
        %v573 = vmax.f32 %v559, %v565
        %v574 = vmin.f32 %v558, %v564
        %v575 = vmin.f32 %v559, %v565
        %v576 = vmax.f32 %v572, %v570
        %v577 = vmax.f32 %v573, %v571
        %v578 = vmax.f32 %v574, %v570
        %v579 = vmax.f32 %v575, %v571
        %v580 = vmin.f32 %v572, %v578
        %v581 = vmin.f32 %v573, %v579
        %v582 = vmin.f32 %v574, %v570
        %v583 = vmin.f32 %v575, %v571
        %v584 = vadd.f32 %v318, %v576
        %v585 = vadd.f32 %v319, %v577
        %v586 = vsub.f32 %v580, %v576
        %v587 = vsub.f32 %v581, %v577
        %v588 = vmul.f32 %v586, 1.442695
        %v589 = vpow.pop %v588
        %v590 = vmul.f32 %v587, 1.442695
        %v591 = vpow.pop %v590
        %v592 = vadd.f32 %v589, 1.0
        %v593 = vadd.f32 %v591, 1.0
        %v594 = vsub.f32 %v582, %v576
        %v595 = vsub.f32 %v583, %v577
        %v596 = vmul.f32 %v594, 1.442695
        %v597 = vpow.pop %v596
        %v598 = vmul.f32 %v595, 1.442695
        %v599 = vpow.pop %v598
        %v600 = vadd.f32 %v592, %v597
        %v601 = vadd.f32 %v593, %v599
        %v602 = vlog2.pop %v600
        %v603 = vmul.f32 %v602, 0.6931472
        %v604 = vlog2.pop %v601
        %v605 = vmul.f32 %v604, 0.6931472
        %v606 = vadd.f32 %v584, %v603
        %v607 = vadd.f32 %v585, %v605
        %v608 = vrot.slane %v606, 7
        %v609 = vrot.slane %v607, 7
        %v610 = vsel %vm346, %v608, %v609
        %v611 = vsel %vm346, %v609, %v608
        %v612 = vsel %vm325, -1e+20, %v611
        %v613 = vsel %vm326, -1e+20, %v610
        %614 = vrot.lane.b32.xlu0 %v606, 1
        %v615 = vpop.permute.xlu0 %614
        %616 = vrot.lane.b32.xlu0 %v607, 1
        %v617 = vpop.permute.xlu0 %616
        %v618 = vsel %vm339, -1e+20, %v615
        %v619 = vsel %vm339, -1e+20, %v617
        %620 = vrot.lane.b32.xlu0 %v611, 1
        %v621 = vpop.permute.xlu0 %620
        %622 = vrot.lane.b32.xlu0 %v610, 1
        %v623 = vpop.permute.xlu0 %622
        %v624 = vsel %vm340, %v344, %v621
        %v625 = vsel %vm341, %v345, %v623
        %v626 = vmax.f32 %v612, %v618
        %v627 = vmax.f32 %v613, %v619
        %v628 = vmin.f32 %v612, %v618
        %v629 = vmin.f32 %v613, %v619
        %v630 = vmax.f32 %v626, %v624
        %v631 = vmax.f32 %v627, %v625
        %v632 = vmax.f32 %v628, %v624
        %v633 = vmax.f32 %v629, %v625
        %v634 = vmin.f32 %v626, %v632
        %v635 = vmin.f32 %v627, %v633
        %v636 = vmin.f32 %v628, %v624
        %v637 = vmin.f32 %v629, %v625
        %v638 = vadd.f32 %v318, %v630
        %v639 = vadd.f32 %v319, %v631
        %v640 = vsub.f32 %v634, %v630
        %v641 = vsub.f32 %v635, %v631
        %v642 = vmul.f32 %v640, 1.442695
        %v643 = vpow.pop %v642
        %v644 = vmul.f32 %v641, 1.442695
        %v645 = vpow.pop %v644
        %v646 = vadd.f32 %v643, 1.0
        %v647 = vadd.f32 %v645, 1.0
        %v648 = vsub.f32 %v636, %v630
        %v649 = vsub.f32 %v637, %v631
        %v650 = vmul.f32 %v648, 1.442695
        %v651 = vpow.pop %v650
        %v652 = vmul.f32 %v649, 1.442695
        %v653 = vpow.pop %v652
        %v654 = vadd.f32 %v646, %v651
        %v655 = vadd.f32 %v647, %v653
        %v656 = vlog2.pop %v654
        %v657 = vmul.f32 %v656, 0.6931472
        %v658 = vlog2.pop %v655
        %v659 = vmul.f32 %v658, 0.6931472
        %v660 = vadd.f32 %v638, %v657
        %v661 = vadd.f32 %v639, %v659
        %v662 = vrot.slane %v660, 7
        %v663 = vrot.slane %v661, 7
        %v664 = vsel %vm346, %v662, %v663
        %v665 = vsel %vm346, %v663, %v662
        %v666 = vsel %vm325, -1e+20, %v665
        %v667 = vsel %vm326, -1e+20, %v664
        %668 = vrot.lane.b32.xlu0 %v660, 1
        %v669 = vpop.permute.xlu0 %668
        %670 = vrot.lane.b32.xlu0 %v661, 1
        %v671 = vpop.permute.xlu0 %670
        %v672 = vsel %vm339, -1e+20, %v669
        %v673 = vsel %vm339, -1e+20, %v671
        %674 = vrot.lane.b32.xlu0 %v665, 1
        %v675 = vpop.permute.xlu0 %674
        %676 = vrot.lane.b32.xlu0 %v664, 1
        %v677 = vpop.permute.xlu0 %676
        %v678 = vsel %vm340, %v344, %v675
        %v679 = vsel %vm341, %v345, %v677
        %v680 = vmax.f32 %v666, %v672
        %v681 = vmax.f32 %v667, %v673
        %v682 = vmin.f32 %v666, %v672
        %v683 = vmin.f32 %v667, %v673
        %v684 = vmax.f32 %v680, %v678
        %v685 = vmax.f32 %v681, %v679
        %v686 = vmax.f32 %v682, %v678
        %v687 = vmax.f32 %v683, %v679
        %v688 = vmin.f32 %v680, %v686
        %v689 = vmin.f32 %v681, %v687
        %v690 = vmin.f32 %v682, %v678
        %v691 = vmin.f32 %v683, %v679
        %v692 = vadd.f32 %v318, %v684
        %v693 = vadd.f32 %v319, %v685
        %v694 = vsub.f32 %v688, %v684
        %v695 = vsub.f32 %v689, %v685
        %v696 = vmul.f32 %v694, 1.442695
        %v697 = vpow.pop %v696
        %v698 = vmul.f32 %v695, 1.442695
        %v699 = vpow.pop %v698
        %v700 = vadd.f32 %v697, 1.0
        %v701 = vadd.f32 %v699, 1.0
        %v702 = vsub.f32 %v690, %v684
        %v703 = vsub.f32 %v691, %v685
        %v704 = vmul.f32 %v702, 1.442695
        %v705 = vpow.pop %v704
        %v706 = vmul.f32 %v703, 1.442695
        %v707 = vpow.pop %v706
        %v708 = vadd.f32 %v700, %v705
        %v709 = vadd.f32 %v701, %v707
        %v710 = vlog2.pop %v708
        %v711 = vmul.f32 %v710, 0.6931472
        %v712 = vlog2.pop %v709
        %v713 = vmul.f32 %v712, 0.6931472
        %v714 = vadd.f32 %v692, %v711
        %v715 = vadd.f32 %v693, %v713
        %v716 = vrot.slane %v714, 7
        %v717 = vrot.slane %v715, 7
        %v718 = vsel %vm346, %v716, %v717
        %v719 = vsel %vm346, %v717, %v716
        %v720 = vsel %vm325, -1e+20, %v719
        %v721 = vsel %vm326, -1e+20, %v718
        %722 = vrot.lane.b32.xlu0 %v714, 1
        %v723 = vpop.permute.xlu0 %722
        %724 = vrot.lane.b32.xlu0 %v715, 1
        %v725 = vpop.permute.xlu0 %724
        %v726 = vsel %vm339, -1e+20, %v723
        %v727 = vsel %vm339, -1e+20, %v725
        %728 = vrot.lane.b32.xlu0 %v719, 1
        %v729 = vpop.permute.xlu0 %728
        %730 = vrot.lane.b32.xlu0 %v718, 1
        %v731 = vpop.permute.xlu0 %730
        %v732 = vsel %vm340, %v344, %v729
        %v733 = vsel %vm341, %v345, %v731
        %v734 = vmax.f32 %v720, %v726
        %v735 = vmax.f32 %v721, %v727
        %v736 = vmin.f32 %v720, %v726
        %v737 = vmin.f32 %v721, %v727
        %v738 = vmax.f32 %v734, %v732
        %v739 = vmax.f32 %v735, %v733
        %v740 = vmax.f32 %v736, %v732
        %v741 = vmax.f32 %v737, %v733
        %v742 = vmin.f32 %v734, %v740
        %v743 = vmin.f32 %v735, %v741
        %v744 = vmin.f32 %v736, %v732
        %v745 = vmin.f32 %v737, %v733
        %v746 = vadd.f32 %v318, %v738
        %v747 = vadd.f32 %v319, %v739
        %v748 = vsub.f32 %v742, %v738
        %v749 = vsub.f32 %v743, %v739
        %v750 = vmul.f32 %v748, 1.442695
        %v751 = vpow.pop %v750
        %v752 = vmul.f32 %v749, 1.442695
        %v753 = vpow.pop %v752
        %v754 = vadd.f32 %v751, 1.0
        %v755 = vadd.f32 %v753, 1.0
        %v756 = vsub.f32 %v744, %v738
        %v757 = vsub.f32 %v745, %v739
        %v758 = vmul.f32 %v756, 1.442695
        %v759 = vpow.pop %v758
        %v760 = vmul.f32 %v757, 1.442695
        %v761 = vpow.pop %v760
        %v762 = vadd.f32 %v754, %v759
        %v763 = vadd.f32 %v755, %v761
        %v764 = vlog2.pop %v762
        %v765 = vmul.f32 %v764, 0.6931472
        %v766 = vlog2.pop %v763
        %v767 = vmul.f32 %v766, 0.6931472
        %v768 = vadd.f32 %v746, %v765
        %v769 = vadd.f32 %v747, %v767
        %v770 = vrot.slane %v768, 7
        %v771 = vrot.slane %v769, 7
        %v772 = vsel %vm346, %v770, %v771
        %v773 = vsel %vm346, %v771, %v770
        %v774 = vsel %vm325, -1e+20, %v773
        %v775 = vsel %vm326, -1e+20, %v772
        %776 = vrot.lane.b32.xlu0 %v768, 1
        %v777 = vpop.permute.xlu0 %776
        %778 = vrot.lane.b32.xlu0 %v769, 1
        %v779 = vpop.permute.xlu0 %778
        %v780 = vsel %vm339, -1e+20, %v777
        %v781 = vsel %vm339, -1e+20, %v779
        %782 = vrot.lane.b32.xlu0 %v773, 1
        %v783 = vpop.permute.xlu0 %782
        %784 = vrot.lane.b32.xlu0 %v772, 1
        %v785 = vpop.permute.xlu0 %784
        %v786 = vsel %vm340, %v344, %v783
        %v787 = vsel %vm341, %v345, %v785
        %v788 = vmax.f32 %v774, %v780
        %v789 = vmax.f32 %v775, %v781
        %v790 = vmin.f32 %v774, %v780
        %v791 = vmin.f32 %v775, %v781
        %v792 = vmax.f32 %v788, %v786
        %v793 = vmax.f32 %v789, %v787
        %v794 = vmax.f32 %v790, %v786
        %v795 = vmax.f32 %v791, %v787
        %v796 = vmin.f32 %v788, %v794
        %v797 = vmin.f32 %v789, %v795
        %v798 = vmin.f32 %v790, %v786
        %v799 = vmin.f32 %v791, %v787
        %v800 = vadd.f32 %v318, %v792
        %v801 = vadd.f32 %v319, %v793
        %v802 = vsub.f32 %v796, %v792
        %v803 = vsub.f32 %v797, %v793
        %v804 = vmul.f32 %v802, 1.442695
        %v805 = vpow.pop %v804
        %v806 = vmul.f32 %v803, 1.442695
        %v807 = vpow.pop %v806
        %v808 = vadd.f32 %v805, 1.0
        %v809 = vadd.f32 %v807, 1.0
        %v810 = vsub.f32 %v798, %v792
        %v811 = vsub.f32 %v799, %v793
        %v812 = vmul.f32 %v810, 1.442695
        %v813 = vpow.pop %v812
        %v814 = vmul.f32 %v811, 1.442695
        %v815 = vpow.pop %v814
        %v816 = vadd.f32 %v808, %v813
        %v817 = vadd.f32 %v809, %v815
        %v818 = vlog2.pop %v816
        %v819 = vmul.f32 %v818, 0.6931472
        %v820 = vlog2.pop %v817
        %v821 = vmul.f32 %v820, 0.6931472
        %v822 = vadd.f32 %v800, %v819
        %v823 = vadd.f32 %v801, %v821
        %v824 = vrot.slane %v822, 7
        %v825 = vrot.slane %v823, 7
        %v826 = vsel %vm346, %v824, %v825
        %v827 = vsel %vm346, %v825, %v824
        %v828 = vsel %vm325, -1e+20, %v827
        %v829 = vsel %vm326, -1e+20, %v826
        %830 = vrot.lane.b32.xlu0 %v822, 1
        %v831 = vpop.permute.xlu0 %830
        %832 = vrot.lane.b32.xlu0 %v823, 1
        %v833 = vpop.permute.xlu0 %832
        %v834 = vsel %vm339, -1e+20, %v831
        %v835 = vsel %vm339, -1e+20, %v833
        %836 = vrot.lane.b32.xlu0 %v827, 1
        %v837 = vpop.permute.xlu0 %836
        %838 = vrot.lane.b32.xlu0 %v826, 1
        %v839 = vpop.permute.xlu0 %838
        %v840 = vsel %vm340, %v344, %v837
        %v841 = vsel %vm341, %v345, %v839
        %v842 = vmax.f32 %v828, %v834
        %v843 = vmax.f32 %v829, %v835
        %v844 = vmin.f32 %v828, %v834
        %v845 = vmin.f32 %v829, %v835
        %v846 = vmax.f32 %v842, %v840
        %v847 = vmax.f32 %v843, %v841
        %v848 = vmax.f32 %v844, %v840
        %v849 = vmax.f32 %v845, %v841
        %v850 = vmin.f32 %v842, %v848
        %v851 = vmin.f32 %v843, %v849
        %v852 = vmin.f32 %v844, %v840
        %v853 = vmin.f32 %v845, %v841
        %v854 = vadd.f32 %v318, %v846
        %v855 = vadd.f32 %v319, %v847
        %v856 = vsub.f32 %v850, %v846
        %v857 = vsub.f32 %v851, %v847
        %v858 = vmul.f32 %v856, 1.442695
        %v859 = vpow.pop %v858
        %v860 = vmul.f32 %v857, 1.442695
        %v861 = vpow.pop %v860
        %v862 = vadd.f32 %v859, 1.0
        %v863 = vadd.f32 %v861, 1.0
        %v864 = vsub.f32 %v852, %v846
        %v865 = vsub.f32 %v853, %v847
        %v866 = vmul.f32 %v864, 1.442695
        %v867 = vpow.pop %v866
        %v868 = vmul.f32 %v865, 1.442695
        %v869 = vpow.pop %v868
        %v870 = vadd.f32 %v862, %v867
        %v871 = vadd.f32 %v863, %v869
        %v872 = vlog2.pop %v870
        %v873 = vmul.f32 %v872, 0.6931472
        %v874 = vlog2.pop %v871
        %v875 = vmul.f32 %v874, 0.6931472
        %v876 = vadd.f32 %v854, %v873
        %v877 = vadd.f32 %v855, %v875
        %v878 = vrot.slane %v876, 7
        %v879 = vrot.slane %v877, 7
        %v880 = vsel %vm346, %v878, %v879
        %v881 = vsel %vm346, %v879, %v878
        %v882 = vsel %vm325, -1e+20, %v881
        %v883 = vsel %vm326, -1e+20, %v880
        %884 = vrot.lane.b32.xlu0 %v876, 1
        %v885 = vpop.permute.xlu0 %884
        %886 = vrot.lane.b32.xlu0 %v877, 1
        %v887 = vpop.permute.xlu0 %886
        %v888 = vsel %vm339, -1e+20, %v885
        %v889 = vsel %vm339, -1e+20, %v887
        %890 = vrot.lane.b32.xlu0 %v881, 1
        %v891 = vpop.permute.xlu0 %890
        %892 = vrot.lane.b32.xlu0 %v880, 1
        %v893 = vpop.permute.xlu0 %892
        %v894 = vsel %vm340, %v344, %v891
        %v895 = vsel %vm341, %v345, %v893
        %v896 = vmax.f32 %v882, %v888
        %v897 = vmax.f32 %v883, %v889
        %v898 = vmin.f32 %v882, %v888
        %v899 = vmin.f32 %v883, %v889
        %v900 = vmax.f32 %v896, %v894
        %v901 = vmax.f32 %v897, %v895
        %v902 = vmax.f32 %v898, %v894
        %v903 = vmax.f32 %v899, %v895
        %v904 = vmin.f32 %v896, %v902
        %v905 = vmin.f32 %v897, %v903
        %v906 = vmin.f32 %v898, %v894
        %v907 = vmin.f32 %v899, %v895
        %v908 = vadd.f32 %v318, %v900
        %v909 = vadd.f32 %v319, %v901
        %v910 = vsub.f32 %v904, %v900
        %v911 = vsub.f32 %v905, %v901
        %v912 = vmul.f32 %v910, 1.442695
        %v913 = vpow.pop %v912
        %v914 = vmul.f32 %v911, 1.442695
        %v915 = vpow.pop %v914
        %v916 = vadd.f32 %v913, 1.0
        %v917 = vadd.f32 %v915, 1.0
        %v918 = vsub.f32 %v906, %v900
        %v919 = vsub.f32 %v907, %v901
        %v920 = vmul.f32 %v918, 1.442695
        %v921 = vpow.pop %v920
        %v922 = vmul.f32 %v919, 1.442695
        %v923 = vpow.pop %v922
        %v924 = vadd.f32 %v916, %v921
        %v925 = vadd.f32 %v917, %v923
        %v926 = vlog2.pop %v924
        %v927 = vmul.f32 %v926, 0.6931472
        %v928 = vlog2.pop %v925
        %v929 = vmul.f32 %v928, 0.6931472
        %v930 = vadd.f32 %v908, %v927
        %v931 = vadd.f32 %v909, %v929
        %v932 = vrot.slane %v930, 7
        %v933 = vrot.slane %v931, 7
        %v934 = vsel %vm346, %v932, %v933
        %v935 = vsel %vm346, %v933, %v932
        %v936 = vsel %vm325, -1e+20, %v935
        %v937 = vsel %vm326, -1e+20, %v934
        %938 = vrot.lane.b32.xlu0 %v930, 1
        %v939 = vpop.permute.xlu0 %938
        %940 = vrot.lane.b32.xlu0 %v931, 1
        %v941 = vpop.permute.xlu0 %940
        %v942 = vsel %vm339, -1e+20, %v939
        %v943 = vsel %vm339, -1e+20, %v941
        %944 = vrot.lane.b32.xlu0 %v935, 1
        %v945 = vpop.permute.xlu0 %944
        %946 = vrot.lane.b32.xlu0 %v934, 1
        %v947 = vpop.permute.xlu0 %946
        %v948 = vsel %vm340, %v344, %v945
        %v949 = vsel %vm341, %v345, %v947
        %v950 = vmax.f32 %v936, %v942
        %v951 = vmax.f32 %v937, %v943
        %v952 = vmin.f32 %v936, %v942
        %v953 = vmin.f32 %v937, %v943
        %v954 = vmax.f32 %v950, %v948
        %v955 = vmax.f32 %v951, %v949
        %v956 = vmax.f32 %v952, %v948
        %v957 = vmax.f32 %v953, %v949
        %v958 = vmin.f32 %v950, %v956
        %v959 = vmin.f32 %v951, %v957
        %v960 = vmin.f32 %v952, %v948
        %v961 = vmin.f32 %v953, %v949
        %v962 = vadd.f32 %v318, %v954
        %v963 = vadd.f32 %v319, %v955
        %v964 = vsub.f32 %v958, %v954
        %v965 = vsub.f32 %v959, %v955
        %v966 = vmul.f32 %v964, 1.442695
        %v967 = vpow.pop %v966
        %v968 = vmul.f32 %v965, 1.442695
        %v969 = vpow.pop %v968
        %v970 = vadd.f32 %v967, 1.0
        %v971 = vadd.f32 %v969, 1.0
        %v972 = vsub.f32 %v960, %v954
        %v973 = vsub.f32 %v961, %v955
        %v974 = vmul.f32 %v972, 1.442695
        %v975 = vpow.pop %v974
        %v976 = vmul.f32 %v973, 1.442695
        %v977 = vpow.pop %v976
        %v978 = vadd.f32 %v970, %v975
        %v979 = vadd.f32 %v971, %v977
        %v980 = vlog2.pop %v978
        %v981 = vmul.f32 %v980, 0.6931472
        %v982 = vlog2.pop %v979
        %v983 = vmul.f32 %v982, 0.6931472
        %v984 = vadd.f32 %v962, %v981
        %v985 = vadd.f32 %v963, %v983
        %v986 = vrot.slane %v984, 7
        %v987 = vrot.slane %v985, 7
        %v988 = vsel %vm346, %v986, %v987
        %v989 = vsel %vm346, %v987, %v986
        %v990 = vsel %vm325, -1e+20, %v989
        %v991 = vsel %vm326, -1e+20, %v988
        %992 = vrot.lane.b32.xlu0 %v984, 1
        %v993 = vpop.permute.xlu0 %992
        %994 = vrot.lane.b32.xlu0 %v985, 1
        %v995 = vpop.permute.xlu0 %994
        %v996 = vsel %vm339, -1e+20, %v993
        %v997 = vsel %vm339, -1e+20, %v995
        %998 = vrot.lane.b32.xlu0 %v989, 1
        %v999 = vpop.permute.xlu0 %998
        %1000 = vrot.lane.b32.xlu0 %v988, 1
        %v1001 = vpop.permute.xlu0 %1000
        %v1002 = vsel %vm340, %v344, %v999
        %v1003 = vsel %vm341, %v345, %v1001
        %v1004 = vmax.f32 %v990, %v996
        %v1005 = vmax.f32 %v991, %v997
        %v1006 = vmin.f32 %v990, %v996
        %v1007 = vmin.f32 %v991, %v997
        %v1008 = vmax.f32 %v1004, %v1002
        %v1009 = vmax.f32 %v1005, %v1003
        %v1010 = vmax.f32 %v1006, %v1002
        %v1011 = vmax.f32 %v1007, %v1003
        %v1012 = vmin.f32 %v1004, %v1010
        %v1013 = vmin.f32 %v1005, %v1011
        %v1014 = vmin.f32 %v1006, %v1002
        %v1015 = vmin.f32 %v1007, %v1003
        %v1016 = vadd.f32 %v318, %v1008
        %v1017 = vadd.f32 %v319, %v1009
        %v1018 = vsub.f32 %v1012, %v1008
        %v1019 = vsub.f32 %v1013, %v1009
        %v1020 = vmul.f32 %v1018, 1.442695
        %v1021 = vpow.pop %v1020
        %v1022 = vmul.f32 %v1019, 1.442695
        %v1023 = vpow.pop %v1022
        %v1024 = vadd.f32 %v1021, 1.0
        %v1025 = vadd.f32 %v1023, 1.0
        %v1026 = vsub.f32 %v1014, %v1008
        %v1027 = vsub.f32 %v1015, %v1009
        %v1028 = vmul.f32 %v1026, 1.442695
        %v1029 = vpow.pop %v1028
        %v1030 = vmul.f32 %v1027, 1.442695
        %v1031 = vpow.pop %v1030
        %v1032 = vadd.f32 %v1024, %v1029
        %v1033 = vadd.f32 %v1025, %v1031
        %v1034 = vlog2.pop %v1032
        %v1035 = vmul.f32 %v1034, 0.6931472
        %v1036 = vlog2.pop %v1033
        %v1037 = vmul.f32 %v1036, 0.6931472
        %v1038 = vadd.f32 %v1016, %v1035
        %v1039 = vadd.f32 %v1017, %v1037
        %v1040 = vrot.slane %v1038, 7
        %v1041 = vrot.slane %v1039, 7
        %v1042 = vsel %vm346, %v1040, %v1041
        %v1043 = vsel %vm346, %v1041, %v1040
        %v1044 = vsel %vm325, -1e+20, %v1043
        %v1045 = vsel %vm326, -1e+20, %v1042
        %1046 = vrot.lane.b32.xlu0 %v1038, 1
        %v1047 = vpop.permute.xlu0 %1046
        %1048 = vrot.lane.b32.xlu0 %v1039, 1
        %v1049 = vpop.permute.xlu0 %1048
        %v1050 = vsel %vm339, -1e+20, %v1047
        %v1051 = vsel %vm339, -1e+20, %v1049
        %1052 = vrot.lane.b32.xlu0 %v1043, 1
        %v1053 = vpop.permute.xlu0 %1052
        %1054 = vrot.lane.b32.xlu0 %v1042, 1
        %v1055 = vpop.permute.xlu0 %1054
        %v1056 = vsel %vm340, %v344, %v1053
        %v1057 = vsel %vm341, %v345, %v1055
        %v1058 = vmax.f32 %v1044, %v1050
        %v1059 = vmax.f32 %v1045, %v1051
        %v1060 = vmin.f32 %v1044, %v1050
        %v1061 = vmin.f32 %v1045, %v1051
        %v1062 = vmax.f32 %v1058, %v1056
        %v1063 = vmax.f32 %v1059, %v1057
        %v1064 = vmax.f32 %v1060, %v1056
        %v1065 = vmax.f32 %v1061, %v1057
        %v1066 = vmin.f32 %v1058, %v1064
        %v1067 = vmin.f32 %v1059, %v1065
        %v1068 = vmin.f32 %v1060, %v1056
        %v1069 = vmin.f32 %v1061, %v1057
        %v1070 = vadd.f32 %v318, %v1062
        %v1071 = vadd.f32 %v319, %v1063
        %v1072 = vsub.f32 %v1066, %v1062
        %v1073 = vsub.f32 %v1067, %v1063
        %v1074 = vmul.f32 %v1072, 1.442695
        %v1075 = vpow.pop %v1074
        %v1076 = vmul.f32 %v1073, 1.442695
        %v1077 = vpow.pop %v1076
        %v1078 = vadd.f32 %v1075, 1.0
        %v1079 = vadd.f32 %v1077, 1.0
        %v1080 = vsub.f32 %v1068, %v1062
        %v1081 = vsub.f32 %v1069, %v1063
        %v1082 = vmul.f32 %v1080, 1.442695
        %v1083 = vpow.pop %v1082
        %v1084 = vmul.f32 %v1081, 1.442695
        %v1085 = vpow.pop %v1084
        %v1086 = vadd.f32 %v1078, %v1083
        %v1087 = vadd.f32 %v1079, %v1085
        %v1088 = vlog2.pop %v1086
        %v1089 = vmul.f32 %v1088, 0.6931472
        %v1090 = vlog2.pop %v1087
        %v1091 = vmul.f32 %v1090, 0.6931472
        %v1092 = vadd.f32 %v1070, %v1089
        %v1093 = vadd.f32 %v1071, %v1091
        %v1094 = vrot.slane %v1092, 7
        %v1095 = vrot.slane %v1093, 7
        %v1096 = vsel %vm346, %v1094, %v1095
        %v1097 = vsel %vm346, %v1095, %v1094
        %v1098 = vsel %vm325, -1e+20, %v1097
        %v1099 = vsel %vm326, -1e+20, %v1096
        %1100 = vrot.lane.b32.xlu0 %v1092, 1
        %v1101 = vpop.permute.xlu0 %1100
        %1102 = vrot.lane.b32.xlu0 %v1093, 1
        %v1103 = vpop.permute.xlu0 %1102
        %v1104 = vsel %vm339, -1e+20, %v1101
        %v1105 = vsel %vm339, -1e+20, %v1103
        %1106 = vrot.lane.b32.xlu0 %v1097, 1
        %v1107 = vpop.permute.xlu0 %1106
        %1108 = vrot.lane.b32.xlu0 %v1096, 1
        %v1109 = vpop.permute.xlu0 %1108
        %v1110 = vsel %vm340, %v344, %v1107
        %v1111 = vsel %vm341, %v345, %v1109
        %v1112 = vmax.f32 %v1098, %v1104
        %v1113 = vmax.f32 %v1099, %v1105
        %v1114 = vmin.f32 %v1098, %v1104
        %v1115 = vmin.f32 %v1099, %v1105
        %v1116 = vmax.f32 %v1112, %v1110
        %v1117 = vmax.f32 %v1113, %v1111
        %v1118 = vmax.f32 %v1114, %v1110
        %v1119 = vmax.f32 %v1115, %v1111
        %v1120 = vmin.f32 %v1112, %v1118
        %v1121 = vmin.f32 %v1113, %v1119
        %v1122 = vmin.f32 %v1114, %v1110
        %v1123 = vmin.f32 %v1115, %v1111
        %v1124 = vadd.f32 %v318, %v1116
        %v1125 = vadd.f32 %v319, %v1117
        %v1126 = vsub.f32 %v1120, %v1116
        %v1127 = vsub.f32 %v1121, %v1117
        %v1128 = vmul.f32 %v1126, 1.442695
        %v1129 = vpow.pop %v1128
        %v1130 = vmul.f32 %v1127, 1.442695
        %v1131 = vpow.pop %v1130
        %v1132 = vadd.f32 %v1129, 1.0
        %v1133 = vadd.f32 %v1131, 1.0
        %v1134 = vsub.f32 %v1122, %v1116
        %v1135 = vsub.f32 %v1123, %v1117
        %v1136 = vmul.f32 %v1134, 1.442695
        %v1137 = vpow.pop %v1136
        %v1138 = vmul.f32 %v1135, 1.442695
        %v1139 = vpow.pop %v1138
        %v1140 = vadd.f32 %v1132, %v1137
        %v1141 = vadd.f32 %v1133, %v1139
        %v1142 = vlog2.pop %v1140
        %v1143 = vmul.f32 %v1142, 0.6931472
        %v1144 = vlog2.pop %v1141
        %v1145 = vmul.f32 %v1144, 0.6931472
        %v1146 = vadd.f32 %v1124, %v1143
        %v1147 = vadd.f32 %v1125, %v1145
        %v1148 = vrot.slane %v1146, 7
        %v1149 = vrot.slane %v1147, 7
        %v1150 = vsel %vm346, %v1148, %v1149
        %v1151 = vsel %vm346, %v1149, %v1148
        %v1152 = vsel %vm325, -1e+20, %v1151
        %v1153 = vsel %vm326, -1e+20, %v1150
        %1154 = vrot.lane.b32.xlu0 %v1146, 1
        %v1155 = vpop.permute.xlu0 %1154
        %1156 = vrot.lane.b32.xlu0 %v1147, 1
        %v1157 = vpop.permute.xlu0 %1156
        %v1158 = vsel %vm339, -1e+20, %v1155
        %v1159 = vsel %vm339, -1e+20, %v1157
        %1160 = vrot.lane.b32.xlu0 %v1151, 1
        %v1161 = vpop.permute.xlu0 %1160
        %1162 = vrot.lane.b32.xlu0 %v1150, 1
        %v1163 = vpop.permute.xlu0 %1162
        %v1164 = vsel %vm340, %v344, %v1161
        %v1165 = vsel %vm341, %v345, %v1163
        %v1166 = vmax.f32 %v1152, %v1158
        %v1167 = vmax.f32 %v1153, %v1159
        %v1168 = vmin.f32 %v1152, %v1158
        %v1169 = vmin.f32 %v1153, %v1159
        %v1170 = vmax.f32 %v1166, %v1164
        %v1171 = vmax.f32 %v1167, %v1165
        %v1172 = vmax.f32 %v1168, %v1164
        %v1173 = vmax.f32 %v1169, %v1165
        %v1174 = vmin.f32 %v1166, %v1172
        %v1175 = vmin.f32 %v1167, %v1173
        %v1176 = vmin.f32 %v1168, %v1164
        %v1177 = vmin.f32 %v1169, %v1165
        %v1178 = vadd.f32 %v318, %v1170
        %v1179 = vadd.f32 %v319, %v1171
        %v1180 = vsub.f32 %v1174, %v1170
        %v1181 = vsub.f32 %v1175, %v1171
        %v1182 = vmul.f32 %v1180, 1.442695
        %v1183 = vpow.pop %v1182
        %v1184 = vmul.f32 %v1181, 1.442695
        %v1185 = vpow.pop %v1184
        %v1186 = vadd.f32 %v1183, 1.0
        %v1187 = vadd.f32 %v1185, 1.0
        %v1188 = vsub.f32 %v1176, %v1170
        %v1189 = vsub.f32 %v1177, %v1171
        %v1190 = vmul.f32 %v1188, 1.442695
        %v1191 = vpow.pop %v1190
        %v1192 = vmul.f32 %v1189, 1.442695
        %v1193 = vpow.pop %v1192
        %v1194 = vadd.f32 %v1186, %v1191
        %v1195 = vadd.f32 %v1187, %v1193
        %v1196 = vlog2.pop %v1194
        %v1197 = vmul.f32 %v1196, 0.6931472
        %v1198 = vlog2.pop %v1195
        %v1199 = vmul.f32 %v1198, 0.6931472
        %v1200 = vadd.f32 %v1178, %v1197
        %v1201 = vadd.f32 %v1179, %v1199
        %v1202 = vrot.slane %v1200, 7
        %v1203 = vrot.slane %v1201, 7
        %v1204 = vsel %vm346, %v1202, %v1203
        %v1205 = vsel %vm346, %v1203, %v1202
        %v1206 = vsel %vm325, -1e+20, %v1205
        %v1207 = vsel %vm326, -1e+20, %v1204
        %1208 = vrot.lane.b32.xlu0 %v1200, 1
        %v1209 = vpop.permute.xlu0 %1208
        %1210 = vrot.lane.b32.xlu0 %v1201, 1
        %v1211 = vpop.permute.xlu0 %1210
        %v1212 = vsel %vm339, -1e+20, %v1209
        %v1213 = vsel %vm339, -1e+20, %v1211
        %1214 = vrot.lane.b32.xlu0 %v1205, 1
        %v1215 = vpop.permute.xlu0 %1214
        %1216 = vrot.lane.b32.xlu0 %v1204, 1
        %v1217 = vpop.permute.xlu0 %1216
        %v1218 = vsel %vm340, %v344, %v1215
        %v1219 = vsel %vm341, %v345, %v1217
        %v1220 = vmax.f32 %v1206, %v1212
        %v1221 = vmax.f32 %v1207, %v1213
        %v1222 = vmin.f32 %v1206, %v1212
        %v1223 = vmin.f32 %v1207, %v1213
        %v1224 = vmax.f32 %v1220, %v1218
        %v1225 = vmax.f32 %v1221, %v1219
        %v1226 = vmax.f32 %v1222, %v1218
        %v1227 = vmax.f32 %v1223, %v1219
        %v1228 = vmin.f32 %v1220, %v1226
        %v1229 = vmin.f32 %v1221, %v1227
        %v1230 = vmin.f32 %v1222, %v1218
        %v1231 = vmin.f32 %v1223, %v1219
        %v1232 = vadd.f32 %v318, %v1224
        %v1233 = vadd.f32 %v319, %v1225
        %v1234 = vsub.f32 %v1228, %v1224
        %v1235 = vsub.f32 %v1229, %v1225
        %v1236 = vmul.f32 %v1234, 1.442695
        %v1237 = vpow.pop %v1236
        %v1238 = vmul.f32 %v1235, 1.442695
        %v1239 = vpow.pop %v1238
        %v1240 = vadd.f32 %v1237, 1.0
        %v1241 = vadd.f32 %v1239, 1.0
        %v1242 = vsub.f32 %v1230, %v1224
        %v1243 = vsub.f32 %v1231, %v1225
        %v1244 = vmul.f32 %v1242, 1.442695
        %v1245 = vpow.pop %v1244
        %v1246 = vmul.f32 %v1243, 1.442695
        %v1247 = vpow.pop %v1246
        %v1248 = vadd.f32 %v1240, %v1245
        %v1249 = vadd.f32 %v1241, %v1247
        %v1250 = vlog2.pop %v1248
        %v1251 = vmul.f32 %v1250, 0.6931472
        %v1252 = vlog2.pop %v1249
        %v1253 = vmul.f32 %v1252, 0.6931472
        %v1254 = vadd.f32 %v1232, %v1251
        %v1255 = vadd.f32 %v1233, %v1253
        %v1256 = vrot.slane %v1254, 7
        %v1257 = vrot.slane %v1255, 7
        %v1258 = vsel %vm346, %v1256, %v1257
        %v1259 = vsel %vm346, %v1257, %v1256
        %v1260 = vsel %vm325, -1e+20, %v1259
        %v1261 = vsel %vm326, -1e+20, %v1258
        %1262 = vrot.lane.b32.xlu0 %v1254, 1
        %v1263 = vpop.permute.xlu0 %1262
        %1264 = vrot.lane.b32.xlu0 %v1255, 1
        %v1265 = vpop.permute.xlu0 %1264
        %v1266 = vsel %vm339, -1e+20, %v1263
        %v1267 = vsel %vm339, -1e+20, %v1265
        %1268 = vrot.lane.b32.xlu0 %v1259, 1
        %v1269 = vpop.permute.xlu0 %1268
        %1270 = vrot.lane.b32.xlu0 %v1258, 1
        %v1271 = vpop.permute.xlu0 %1270
        %v1272 = vsel %vm340, %v344, %v1269
        %v1273 = vsel %vm341, %v345, %v1271
        %v1274 = vmax.f32 %v1260, %v1266
        %v1275 = vmax.f32 %v1261, %v1267
        %v1276 = vmin.f32 %v1260, %v1266
        %v1277 = vmin.f32 %v1261, %v1267
        %v1278 = vmax.f32 %v1274, %v1272
        %v1279 = vmax.f32 %v1275, %v1273
        %v1280 = vmax.f32 %v1276, %v1272
        %v1281 = vmax.f32 %v1277, %v1273
        %v1282 = vmin.f32 %v1274, %v1280
        %v1283 = vmin.f32 %v1275, %v1281
        %v1284 = vmin.f32 %v1276, %v1272
        %v1285 = vmin.f32 %v1277, %v1273
        %v1286 = vadd.f32 %v318, %v1278
        %v1287 = vadd.f32 %v319, %v1279
        %v1288 = vsub.f32 %v1282, %v1278
        %v1289 = vsub.f32 %v1283, %v1279
        %v1290 = vmul.f32 %v1288, 1.442695
        %v1291 = vpow.pop %v1290
        %v1292 = vmul.f32 %v1289, 1.442695
        %v1293 = vpow.pop %v1292
        %v1294 = vadd.f32 %v1291, 1.0
        %v1295 = vadd.f32 %v1293, 1.0
        %v1296 = vsub.f32 %v1284, %v1278
        %v1297 = vsub.f32 %v1285, %v1279
        %v1298 = vmul.f32 %v1296, 1.442695
        %v1299 = vpow.pop %v1298
        %v1300 = vmul.f32 %v1297, 1.442695
        %v1301 = vpow.pop %v1300
        %v1302 = vadd.f32 %v1294, %v1299
        %v1303 = vadd.f32 %v1295, %v1301
        %v1304 = vlog2.pop %v1302
        %v1305 = vmul.f32 %v1304, 0.6931472
        %v1306 = vlog2.pop %v1303
        %v1307 = vmul.f32 %v1306, 0.6931472
        %v1308 = vadd.f32 %v1286, %v1305
        %v1309 = vadd.f32 %v1287, %v1307
        %v1310 = vrot.slane %v1308, 7
        %v1311 = vrot.slane %v1309, 7
        %v1312 = vsel %vm346, %v1310, %v1311
        %v1313 = vsel %vm346, %v1311, %v1310
        %v1314 = vsel %vm325, -1e+20, %v1313
        %v1315 = vsel %vm326, -1e+20, %v1312
        %1316 = vrot.lane.b32.xlu0 %v1308, 1
        %v1317 = vpop.permute.xlu0 %1316
        %1318 = vrot.lane.b32.xlu0 %v1309, 1
        %v1319 = vpop.permute.xlu0 %1318
        %v1320 = vsel %vm339, -1e+20, %v1317
        %v1321 = vsel %vm339, -1e+20, %v1319
        %1322 = vrot.lane.b32.xlu0 %v1313, 1
        %v1323 = vpop.permute.xlu0 %1322
        %1324 = vrot.lane.b32.xlu0 %v1312, 1
        %v1325 = vpop.permute.xlu0 %1324
        %v1326 = vsel %vm340, %v344, %v1323
        %v1327 = vsel %vm341, %v345, %v1325
        %v1328 = vmax.f32 %v1314, %v1320
        %v1329 = vmax.f32 %v1315, %v1321
        %v1330 = vmin.f32 %v1314, %v1320
        %v1331 = vmin.f32 %v1315, %v1321
        %v1332 = vmax.f32 %v1328, %v1326
        %v1333 = vmax.f32 %v1329, %v1327
        %v1334 = vmax.f32 %v1330, %v1326
        %v1335 = vmax.f32 %v1331, %v1327
        %v1336 = vmin.f32 %v1328, %v1334
        %v1337 = vmin.f32 %v1329, %v1335
        %v1338 = vmin.f32 %v1330, %v1326
        %v1339 = vmin.f32 %v1331, %v1327
        %v1340 = vadd.f32 %v318, %v1332
        %v1341 = vadd.f32 %v319, %v1333
        %v1342 = vsub.f32 %v1336, %v1332
        %v1343 = vsub.f32 %v1337, %v1333
        %v1344 = vmul.f32 %v1342, 1.442695
        %v1345 = vpow.pop %v1344
        %v1346 = vmul.f32 %v1343, 1.442695
        %v1347 = vpow.pop %v1346
        %v1348 = vadd.f32 %v1345, 1.0
        %v1349 = vadd.f32 %v1347, 1.0
        %v1350 = vsub.f32 %v1338, %v1332
        %v1351 = vsub.f32 %v1339, %v1333
        %v1352 = vmul.f32 %v1350, 1.442695
        %v1353 = vpow.pop %v1352
        %v1354 = vmul.f32 %v1351, 1.442695
        %v1355 = vpow.pop %v1354
        %v1356 = vadd.f32 %v1348, %v1353
        %v1357 = vadd.f32 %v1349, %v1355
        %v1358 = vlog2.pop %v1356
        %v1359 = vmul.f32 %v1358, 0.6931472
        %v1360 = vlog2.pop %v1357
        %v1361 = vmul.f32 %v1360, 0.6931472
        %v1362 = vadd.f32 %v1340, %v1359
        %v1363 = vadd.f32 %v1341, %v1361
        %v1364 = vrot.slane %v1362, 7
        %v1365 = vrot.slane %v1363, 7
        %v1366 = vsel %vm346, %v1364, %v1365
        %v1367 = vsel %vm346, %v1365, %v1364
        %v1368 = vsel %vm325, -1e+20, %v1367
        %v1369 = vsel %vm326, -1e+20, %v1366
        %1370 = vrot.lane.b32.xlu0 %v1362, 1
        %v1371 = vpop.permute.xlu0 %1370
        %1372 = vrot.lane.b32.xlu0 %v1363, 1
        %v1373 = vpop.permute.xlu0 %1372
        %v1374 = vsel %vm339, -1e+20, %v1371
        %v1375 = vsel %vm339, -1e+20, %v1373
        %1376 = vrot.lane.b32.xlu0 %v1367, 1
        %v1377 = vpop.permute.xlu0 %1376
        %1378 = vrot.lane.b32.xlu0 %v1366, 1
        %v1379 = vpop.permute.xlu0 %1378
        %v1380 = vsel %vm340, %v344, %v1377
        %v1381 = vsel %vm341, %v345, %v1379
        %v1382 = vmax.f32 %v1368, %v1374
        %v1383 = vmax.f32 %v1369, %v1375
        %v1384 = vmin.f32 %v1368, %v1374
        %v1385 = vmin.f32 %v1369, %v1375
        %v1386 = vmax.f32 %v1382, %v1380
        %v1387 = vmax.f32 %v1383, %v1381
        %v1388 = vmax.f32 %v1384, %v1380
        %v1389 = vmax.f32 %v1385, %v1381
        %v1390 = vmin.f32 %v1382, %v1388
        %v1391 = vmin.f32 %v1383, %v1389
        %v1392 = vmin.f32 %v1384, %v1380
        %v1393 = vmin.f32 %v1385, %v1381
        %v1394 = vadd.f32 %v318, %v1386
        %v1395 = vadd.f32 %v319, %v1387
        %v1396 = vsub.f32 %v1390, %v1386
        %v1397 = vsub.f32 %v1391, %v1387
        %v1398 = vmul.f32 %v1396, 1.442695
        %v1399 = vpow.pop %v1398
        %v1400 = vmul.f32 %v1397, 1.442695
        %v1401 = vpow.pop %v1400
        %v1402 = vadd.f32 %v1399, 1.0
        %v1403 = vadd.f32 %v1401, 1.0
        %v1404 = vsub.f32 %v1392, %v1386
        %v1405 = vsub.f32 %v1393, %v1387
        %v1406 = vmul.f32 %v1404, 1.442695
        %v1407 = vpow.pop %v1406
        %v1408 = vmul.f32 %v1405, 1.442695
        %v1409 = vpow.pop %v1408
        %v1410 = vadd.f32 %v1402, %v1407
        %v1411 = vadd.f32 %v1403, %v1409
        %v1412 = vlog2.pop %v1410
        %v1413 = vmul.f32 %v1412, 0.6931472
        %v1414 = vlog2.pop %v1411
        %v1415 = vmul.f32 %v1414, 0.6931472
        %v1416 = vadd.f32 %v1394, %v1413
        %v1417 = vadd.f32 %v1395, %v1415
        %v1418 = vrot.slane %v1416, 7
        %v1419 = vrot.slane %v1417, 7
        %v1420 = vsel %vm346, %v1418, %v1419
        %v1421 = vsel %vm346, %v1419, %v1418
        %v1422 = vsel %vm325, -1e+20, %v1421
        %v1423 = vsel %vm326, -1e+20, %v1420
        %1424 = vrot.lane.b32.xlu0 %v1416, 1
        %v1425 = vpop.permute.xlu0 %1424
        %1426 = vrot.lane.b32.xlu0 %v1417, 1
        %v1427 = vpop.permute.xlu0 %1426
        %v1428 = vsel %vm339, -1e+20, %v1425
        %v1429 = vsel %vm339, -1e+20, %v1427
        %1430 = vrot.lane.b32.xlu0 %v1421, 1
        %v1431 = vpop.permute.xlu0 %1430
        %1432 = vrot.lane.b32.xlu0 %v1420, 1
        %v1433 = vpop.permute.xlu0 %1432
        %v1434 = vsel %vm340, %v344, %v1431
        %v1435 = vsel %vm341, %v345, %v1433
        %v1436 = vmax.f32 %v1422, %v1428
        %v1437 = vmax.f32 %v1423, %v1429
        %v1438 = vmin.f32 %v1422, %v1428
        %v1439 = vmin.f32 %v1423, %v1429
        %v1440 = vmax.f32 %v1436, %v1434
        %v1441 = vmax.f32 %v1437, %v1435
        %v1442 = vmax.f32 %v1438, %v1434
        %v1443 = vmax.f32 %v1439, %v1435
        %v1444 = vmin.f32 %v1436, %v1442
        %v1445 = vmin.f32 %v1437, %v1443
        %v1446 = vmin.f32 %v1438, %v1434
        %v1447 = vmin.f32 %v1439, %v1435
        %v1448 = vadd.f32 %v318, %v1440
        %v1449 = vadd.f32 %v319, %v1441
        %v1450 = vsub.f32 %v1444, %v1440
        %v1451 = vsub.f32 %v1445, %v1441
        %v1452 = vmul.f32 %v1450, 1.442695
        %v1453 = vpow.pop %v1452
        %v1454 = vmul.f32 %v1451, 1.442695
        %v1455 = vpow.pop %v1454
        %v1456 = vadd.f32 %v1453, 1.0
        %v1457 = vadd.f32 %v1455, 1.0
        %v1458 = vsub.f32 %v1446, %v1440
        %v1459 = vsub.f32 %v1447, %v1441
        %v1460 = vmul.f32 %v1458, 1.442695
        %v1461 = vpow.pop %v1460
        %v1462 = vmul.f32 %v1459, 1.442695
        %v1463 = vpow.pop %v1462
        %v1464 = vadd.f32 %v1456, %v1461
        %v1465 = vadd.f32 %v1457, %v1463
        %v1466 = vlog2.pop %v1464
        %v1467 = vmul.f32 %v1466, 0.6931472
        %v1468 = vlog2.pop %v1465
        %v1469 = vmul.f32 %v1468, 0.6931472
        %v1470 = vadd.f32 %v1448, %v1467
        %v1471 = vadd.f32 %v1449, %v1469
        %v1472 = vrot.slane %v1470, 7
        %v1473 = vrot.slane %v1471, 7
        %v1474 = vsel %vm346, %v1472, %v1473
        %v1475 = vsel %vm346, %v1473, %v1472
        %v1476 = vsel %vm325, -1e+20, %v1475
        %v1477 = vsel %vm326, -1e+20, %v1474
        %1478 = vrot.lane.b32.xlu0 %v1470, 1
        %v1479 = vpop.permute.xlu0 %1478
        %1480 = vrot.lane.b32.xlu0 %v1471, 1
        %v1481 = vpop.permute.xlu0 %1480
        %v1482 = vsel %vm339, -1e+20, %v1479
        %v1483 = vsel %vm339, -1e+20, %v1481
        %1484 = vrot.lane.b32.xlu0 %v1475, 1
        %v1485 = vpop.permute.xlu0 %1484
        %1486 = vrot.lane.b32.xlu0 %v1474, 1
        %v1487 = vpop.permute.xlu0 %1486
        %v1488 = vsel %vm340, %v344, %v1485
        %v1489 = vsel %vm341, %v345, %v1487
        %v1490 = vmax.f32 %v1476, %v1482
        %v1491 = vmax.f32 %v1477, %v1483
        %v1492 = vmin.f32 %v1476, %v1482
        %v1493 = vmin.f32 %v1477, %v1483
        %v1494 = vmax.f32 %v1490, %v1488
        %v1495 = vmax.f32 %v1491, %v1489
        %v1496 = vmax.f32 %v1492, %v1488
        %v1497 = vmax.f32 %v1493, %v1489
        %v1498 = vmin.f32 %v1490, %v1496
        %v1499 = vmin.f32 %v1491, %v1497
        %v1500 = vmin.f32 %v1492, %v1488
        %v1501 = vmin.f32 %v1493, %v1489
        %v1502 = vadd.f32 %v318, %v1494
        %v1503 = vadd.f32 %v319, %v1495
        %v1504 = vsub.f32 %v1498, %v1494
        %v1505 = vsub.f32 %v1499, %v1495
        %v1506 = vmul.f32 %v1504, 1.442695
        %v1507 = vpow.pop %v1506
        %v1508 = vmul.f32 %v1505, 1.442695
        %v1509 = vpow.pop %v1508
        %v1510 = vadd.f32 %v1507, 1.0
        %v1511 = vadd.f32 %v1509, 1.0
        %v1512 = vsub.f32 %v1500, %v1494
        %v1513 = vsub.f32 %v1501, %v1495
        %v1514 = vmul.f32 %v1512, 1.442695
        %v1515 = vpow.pop %v1514
        %v1516 = vmul.f32 %v1513, 1.442695
        %v1517 = vpow.pop %v1516
        %v1518 = vadd.f32 %v1510, %v1515
        %v1519 = vadd.f32 %v1511, %v1517
        %v1520 = vlog2.pop %v1518
        %v1521 = vmul.f32 %v1520, 0.6931472
        %v1522 = vlog2.pop %v1519
        %v1523 = vmul.f32 %v1522, 0.6931472
        %v1524 = vadd.f32 %v1502, %v1521
        %v1525 = vadd.f32 %v1503, %v1523
        %v1526 = vrot.slane %v1524, 7
        %v1527 = vrot.slane %v1525, 7
        %v1528 = vsel %vm346, %v1526, %v1527
        %v1529 = vsel %vm346, %v1527, %v1526
        %v1530 = vsel %vm325, -1e+20, %v1529
        %v1531 = vsel %vm326, -1e+20, %v1528
        %1532 = vrot.lane.b32.xlu0 %v1524, 1
        %v1533 = vpop.permute.xlu0 %1532
        %1534 = vrot.lane.b32.xlu0 %v1525, 1
        %v1535 = vpop.permute.xlu0 %1534
        %v1536 = vsel %vm339, -1e+20, %v1533
        %v1537 = vsel %vm339, -1e+20, %v1535
        %1538 = vrot.lane.b32.xlu0 %v1529, 1
        %v1539 = vpop.permute.xlu0 %1538
        %1540 = vrot.lane.b32.xlu0 %v1528, 1
        %v1541 = vpop.permute.xlu0 %1540
        %v1542 = vsel %vm340, %v344, %v1539
        %v1543 = vsel %vm341, %v345, %v1541
        %v1544 = vmax.f32 %v1530, %v1536
        %v1545 = vmax.f32 %v1531, %v1537
        %v1546 = vmin.f32 %v1530, %v1536
        %v1547 = vmin.f32 %v1531, %v1537
        %v1548 = vmax.f32 %v1544, %v1542
        %v1549 = vmax.f32 %v1545, %v1543
        %v1550 = vmax.f32 %v1546, %v1542
        %v1551 = vmax.f32 %v1547, %v1543
        %v1552 = vmin.f32 %v1544, %v1550
        %v1553 = vmin.f32 %v1545, %v1551
        %v1554 = vmin.f32 %v1546, %v1542
        %v1555 = vmin.f32 %v1547, %v1543
        %v1556 = vadd.f32 %v318, %v1548
        %v1557 = vadd.f32 %v319, %v1549
        %v1558 = vsub.f32 %v1552, %v1548
        %v1559 = vsub.f32 %v1553, %v1549
        %v1560 = vmul.f32 %v1558, 1.442695
        %v1561 = vpow.pop %v1560
        %v1562 = vmul.f32 %v1559, 1.442695
        %v1563 = vpow.pop %v1562
        %v1564 = vadd.f32 %v1561, 1.0
        %v1565 = vadd.f32 %v1563, 1.0
        %v1566 = vsub.f32 %v1554, %v1548
        %v1567 = vsub.f32 %v1555, %v1549
        %v1568 = vmul.f32 %v1566, 1.442695
        %v1569 = vpow.pop %v1568
        %v1570 = vmul.f32 %v1567, 1.442695
        %v1571 = vpow.pop %v1570
        %v1572 = vadd.f32 %v1564, %v1569
        %v1573 = vadd.f32 %v1565, %v1571
        %v1574 = vlog2.pop %v1572
        %v1575 = vmul.f32 %v1574, 0.6931472
        %v1576 = vlog2.pop %v1573
        %v1577 = vmul.f32 %v1576, 0.6931472
        %v1578 = vadd.f32 %v1556, %v1575
        %v1579 = vadd.f32 %v1557, %v1577
        %v1580 = vrot.slane %v1578, 7
        %v1581 = vrot.slane %v1579, 7
        %v1582 = vsel %vm346, %v1580, %v1581
        %v1583 = vsel %vm346, %v1581, %v1580
        %v1584 = vsel %vm325, -1e+20, %v1583
        %v1585 = vsel %vm326, -1e+20, %v1582
        %1586 = vrot.lane.b32.xlu0 %v1578, 1
        %v1587 = vpop.permute.xlu0 %1586
        %1588 = vrot.lane.b32.xlu0 %v1579, 1
        %v1589 = vpop.permute.xlu0 %1588
        %v1590 = vsel %vm339, -1e+20, %v1587
        %v1591 = vsel %vm339, -1e+20, %v1589
        %1592 = vrot.lane.b32.xlu0 %v1583, 1
        %v1593 = vpop.permute.xlu0 %1592
        %1594 = vrot.lane.b32.xlu0 %v1582, 1
        %v1595 = vpop.permute.xlu0 %1594
        %v1596 = vsel %vm340, %v344, %v1593
        %v1597 = vsel %vm341, %v345, %v1595
        %v1598 = vmax.f32 %v1584, %v1590
        %v1599 = vmax.f32 %v1585, %v1591
        %v1600 = vmin.f32 %v1584, %v1590
        %v1601 = vmin.f32 %v1585, %v1591
        %v1602 = vmax.f32 %v1598, %v1596
        %v1603 = vmax.f32 %v1599, %v1597
        %v1604 = vmax.f32 %v1600, %v1596
        %v1605 = vmax.f32 %v1601, %v1597
        %v1606 = vmin.f32 %v1598, %v1604
        %v1607 = vmin.f32 %v1599, %v1605
        %v1608 = vmin.f32 %v1600, %v1596
        %v1609 = vmin.f32 %v1601, %v1597
        %v1610 = vadd.f32 %v318, %v1602
        %v1611 = vadd.f32 %v319, %v1603
        %v1612 = vsub.f32 %v1606, %v1602
        %v1613 = vsub.f32 %v1607, %v1603
        %v1614 = vmul.f32 %v1612, 1.442695
        %v1615 = vpow.pop %v1614
        %v1616 = vmul.f32 %v1613, 1.442695
        %v1617 = vpow.pop %v1616
        %v1618 = vadd.f32 %v1615, 1.0
        %v1619 = vadd.f32 %v1617, 1.0
        %v1620 = vsub.f32 %v1608, %v1602
        %v1621 = vsub.f32 %v1609, %v1603
        %v1622 = vmul.f32 %v1620, 1.442695
        %v1623 = vpow.pop %v1622
        %v1624 = vmul.f32 %v1621, 1.442695
        %v1625 = vpow.pop %v1624
        %v1626 = vadd.f32 %v1618, %v1623
        %v1627 = vadd.f32 %v1619, %v1625
        %v1628 = vlog2.pop %v1626
        %v1629 = vmul.f32 %v1628, 0.6931472
        %v1630 = vlog2.pop %v1627
        %v1631 = vmul.f32 %v1630, 0.6931472
        %v1632 = vadd.f32 %v1610, %v1629
        %v1633 = vadd.f32 %v1611, %v1631
        %v1634 = vrot.slane %v1632, 7
        %v1635 = vrot.slane %v1633, 7
        %v1636 = vsel %vm346, %v1634, %v1635
        %v1637 = vsel %vm346, %v1635, %v1634
        %v1638 = vsel %vm325, -1e+20, %v1637
        %v1639 = vsel %vm326, -1e+20, %v1636
        %1640 = vrot.lane.b32.xlu0 %v1632, 1
        %v1641 = vpop.permute.xlu0 %1640
        %1642 = vrot.lane.b32.xlu0 %v1633, 1
        %v1643 = vpop.permute.xlu0 %1642
        %v1644 = vsel %vm339, -1e+20, %v1641
        %v1645 = vsel %vm339, -1e+20, %v1643
        %1646 = vrot.lane.b32.xlu0 %v1637, 1
        %v1647 = vpop.permute.xlu0 %1646
        %1648 = vrot.lane.b32.xlu0 %v1636, 1
        %v1649 = vpop.permute.xlu0 %1648
        %v1650 = vsel %vm340, %v344, %v1647
        %v1651 = vsel %vm341, %v345, %v1649
        %v1652 = vmax.f32 %v1638, %v1644
        %v1653 = vmax.f32 %v1639, %v1645
        %v1654 = vmin.f32 %v1638, %v1644
        %v1655 = vmin.f32 %v1639, %v1645
        %v1656 = vmax.f32 %v1652, %v1650
        %v1657 = vmax.f32 %v1653, %v1651
        %v1658 = vmax.f32 %v1654, %v1650
        %v1659 = vmax.f32 %v1655, %v1651
        %v1660 = vmin.f32 %v1652, %v1658
        %v1661 = vmin.f32 %v1653, %v1659
        %v1662 = vmin.f32 %v1654, %v1650
        %v1663 = vmin.f32 %v1655, %v1651
        %v1664 = vadd.f32 %v318, %v1656
        %v1665 = vadd.f32 %v319, %v1657
        %v1666 = vsub.f32 %v1660, %v1656
        %v1667 = vsub.f32 %v1661, %v1657
        %v1668 = vmul.f32 %v1666, 1.442695
        %v1669 = vpow.pop %v1668
        %v1670 = vmul.f32 %v1667, 1.442695
        %v1671 = vpow.pop %v1670
        %v1672 = vadd.f32 %v1669, 1.0
        %v1673 = vadd.f32 %v1671, 1.0
        %v1674 = vsub.f32 %v1662, %v1656
        %v1675 = vsub.f32 %v1663, %v1657
        %v1676 = vmul.f32 %v1674, 1.442695
        %v1677 = vpow.pop %v1676
        %v1678 = vmul.f32 %v1675, 1.442695
        %v1679 = vpow.pop %v1678
        %v1680 = vadd.f32 %v1672, %v1677
        %v1681 = vadd.f32 %v1673, %v1679
        %v1682 = vlog2.pop %v1680
        %v1683 = vmul.f32 %v1682, 0.6931472
        %v1684 = vlog2.pop %v1681
        %v1685 = vmul.f32 %v1684, 0.6931472
        %v1686 = vadd.f32 %v1664, %v1683
        %v1687 = vadd.f32 %v1665, %v1685
        %v1688 = vrot.slane %v1686, 7
        %v1689 = vrot.slane %v1687, 7
        %v1690 = vsel %vm346, %v1688, %v1689
        %v1691 = vsel %vm346, %v1689, %v1688
        %v1692 = vsel %vm325, -1e+20, %v1691
        %v1693 = vsel %vm326, -1e+20, %v1690
        %1694 = vrot.lane.b32.xlu0 %v1686, 1
        %v1695 = vpop.permute.xlu0 %1694
        %1696 = vrot.lane.b32.xlu0 %v1687, 1
        %v1697 = vpop.permute.xlu0 %1696
        %v1698 = vsel %vm339, -1e+20, %v1695
        %v1699 = vsel %vm339, -1e+20, %v1697
        %1700 = vrot.lane.b32.xlu0 %v1691, 1
        %v1701 = vpop.permute.xlu0 %1700
        %1702 = vrot.lane.b32.xlu0 %v1690, 1
        %v1703 = vpop.permute.xlu0 %1702
        %v1704 = vsel %vm340, %v344, %v1701
        %v1705 = vsel %vm341, %v345, %v1703
        %v1706 = vmax.f32 %v1692, %v1698
        %v1707 = vmax.f32 %v1693, %v1699
        %v1708 = vmin.f32 %v1692, %v1698
        %v1709 = vmin.f32 %v1693, %v1699
        %v1710 = vmax.f32 %v1706, %v1704
        %v1711 = vmax.f32 %v1707, %v1705
        %v1712 = vmax.f32 %v1708, %v1704
        %v1713 = vmax.f32 %v1709, %v1705
        %v1714 = vmin.f32 %v1706, %v1712
        %v1715 = vmin.f32 %v1707, %v1713
        %v1716 = vmin.f32 %v1708, %v1704
        %v1717 = vmin.f32 %v1709, %v1705
        %v1718 = vadd.f32 %v318, %v1710
        %v1719 = vadd.f32 %v319, %v1711
        %v1720 = vsub.f32 %v1714, %v1710
        %v1721 = vsub.f32 %v1715, %v1711
        %v1722 = vmul.f32 %v1720, 1.442695
        %v1723 = vpow.pop %v1722
        %v1724 = vmul.f32 %v1721, 1.442695
        %v1725 = vpow.pop %v1724
        %v1726 = vadd.f32 %v1723, 1.0
        %v1727 = vadd.f32 %v1725, 1.0
        %v1728 = vsub.f32 %v1716, %v1710
        %v1729 = vsub.f32 %v1717, %v1711
        %v1730 = vmul.f32 %v1728, 1.442695
        %v1731 = vpow.pop %v1730
        %v1732 = vmul.f32 %v1729, 1.442695
        %v1733 = vpow.pop %v1732
        %v1734 = vadd.f32 %v1726, %v1731
        %v1735 = vadd.f32 %v1727, %v1733
        %v1736 = vlog2.pop %v1734
        %v1737 = vmul.f32 %v1736, 0.6931472
        %v1738 = vlog2.pop %v1735
        %v1739 = vmul.f32 %v1738, 0.6931472
        %v1740 = vadd.f32 %v1718, %v1737
        %v1741 = vadd.f32 %v1719, %v1739
        %v1742 = vrot.slane %v1740, 7
        %v1743 = vrot.slane %v1741, 7
        %v1744 = vsel %vm346, %v1742, %v1743
        %v1745 = vsel %vm346, %v1743, %v1742
        %v1746 = vsel %vm325, -1e+20, %v1745
        %v1747 = vsel %vm326, -1e+20, %v1744
        %1748 = vrot.lane.b32.xlu0 %v1740, 1
        %v1749 = vpop.permute.xlu0 %1748
        %1750 = vrot.lane.b32.xlu0 %v1741, 1
        %v1751 = vpop.permute.xlu0 %1750
        %v1752 = vsel %vm339, -1e+20, %v1749
        %v1753 = vsel %vm339, -1e+20, %v1751
        %1754 = vrot.lane.b32.xlu0 %v1745, 1
        %v1755 = vpop.permute.xlu0 %1754
        %1756 = vrot.lane.b32.xlu0 %v1744, 1
        %v1757 = vpop.permute.xlu0 %1756
        %v1758 = vsel %vm340, %v344, %v1755
        %v1759 = vsel %vm341, %v345, %v1757
        %v1760 = vmax.f32 %v1746, %v1752
        %v1761 = vmax.f32 %v1747, %v1753
        %v1762 = vmin.f32 %v1746, %v1752
        %v1763 = vmin.f32 %v1747, %v1753
        %v1764 = vmax.f32 %v1760, %v1758
        %v1765 = vmax.f32 %v1761, %v1759
        %v1766 = vmax.f32 %v1762, %v1758
        %v1767 = vmax.f32 %v1763, %v1759
        %v1768 = vmin.f32 %v1760, %v1766
        %v1769 = vmin.f32 %v1761, %v1767
        %v1770 = vmin.f32 %v1762, %v1758
        %v1771 = vmin.f32 %v1763, %v1759
        %v1772 = vadd.f32 %v318, %v1764
        %v1773 = vadd.f32 %v319, %v1765
        %v1774 = vsub.f32 %v1768, %v1764
        %v1775 = vsub.f32 %v1769, %v1765
        %v1776 = vmul.f32 %v1774, 1.442695
        %v1777 = vpow.pop %v1776
        %v1778 = vmul.f32 %v1775, 1.442695
        %v1779 = vpow.pop %v1778
        %v1780 = vadd.f32 %v1777, 1.0
        %v1781 = vadd.f32 %v1779, 1.0
        %v1782 = vsub.f32 %v1770, %v1764
        %v1783 = vsub.f32 %v1771, %v1765
        %v1784 = vmul.f32 %v1782, 1.442695
        %v1785 = vpow.pop %v1784
        %v1786 = vmul.f32 %v1783, 1.442695
        %v1787 = vpow.pop %v1786
        %v1788 = vadd.f32 %v1780, %v1785
        %v1789 = vadd.f32 %v1781, %v1787
        %v1790 = vlog2.pop %v1788
        %v1791 = vmul.f32 %v1790, 0.6931472
        %v1792 = vlog2.pop %v1789
        %v1793 = vmul.f32 %v1792, 0.6931472
        %v1794 = vadd.f32 %v1772, %v1791
        %v1795 = vadd.f32 %v1773, %v1793
        %v1796 = vrot.slane %v1794, 7
        %v1797 = vrot.slane %v1795, 7
        %v1798 = vsel %vm346, %v1796, %v1797
        %v1799 = vsel %vm346, %v1797, %v1796
        %v1800 = vsel %vm325, -1e+20, %v1799
        %v1801 = vsel %vm326, -1e+20, %v1798
        %1802 = vrot.lane.b32.xlu0 %v1794, 1
        %v1803 = vpop.permute.xlu0 %1802
        %1804 = vrot.lane.b32.xlu0 %v1795, 1
        %v1805 = vpop.permute.xlu0 %1804
        %v1806 = vsel %vm339, -1e+20, %v1803
        %v1807 = vsel %vm339, -1e+20, %v1805
        %1808 = vrot.lane.b32.xlu0 %v1799, 1
        %v1809 = vpop.permute.xlu0 %1808
        %1810 = vrot.lane.b32.xlu0 %v1798, 1
        %v1811 = vpop.permute.xlu0 %1810
        %v1812 = vsel %vm340, %v344, %v1809
        %v1813 = vsel %vm341, %v345, %v1811
        %v1814 = vmax.f32 %v1800, %v1806
        %v1815 = vmax.f32 %v1801, %v1807
        %v1816 = vmin.f32 %v1800, %v1806
        %v1817 = vmin.f32 %v1801, %v1807
        %v1818 = vmax.f32 %v1814, %v1812
        %v1819 = vmax.f32 %v1815, %v1813
        %v1820 = vmax.f32 %v1816, %v1812
        %v1821 = vmax.f32 %v1817, %v1813
        %v1822 = vmin.f32 %v1814, %v1820
        %v1823 = vmin.f32 %v1815, %v1821
        %v1824 = vmin.f32 %v1816, %v1812
        %v1825 = vmin.f32 %v1817, %v1813
        %v1826 = vadd.f32 %v318, %v1818
        %v1827 = vadd.f32 %v319, %v1819
        %v1828 = vsub.f32 %v1822, %v1818
        %v1829 = vsub.f32 %v1823, %v1819
        %v1830 = vmul.f32 %v1828, 1.442695
        %v1831 = vpow.pop %v1830
        %v1832 = vmul.f32 %v1829, 1.442695
        %v1833 = vpow.pop %v1832
        %v1834 = vadd.f32 %v1831, 1.0
        %v1835 = vadd.f32 %v1833, 1.0
        %v1836 = vsub.f32 %v1824, %v1818
        %v1837 = vsub.f32 %v1825, %v1819
        %v1838 = vmul.f32 %v1836, 1.442695
        %v1839 = vpow.pop %v1838
        %v1840 = vmul.f32 %v1837, 1.442695
        %v1841 = vpow.pop %v1840
        %v1842 = vadd.f32 %v1834, %v1839
        %v1843 = vadd.f32 %v1835, %v1841
        %v1844 = vlog2.pop %v1842
        %v1845 = vmul.f32 %v1844, 0.6931472
        %v1846 = vlog2.pop %v1843
        %v1847 = vmul.f32 %v1846, 0.6931472
        %v1848 = vadd.f32 %v1826, %v1845
        %v1849 = vadd.f32 %v1827, %v1847
        %v1850 = vrot.slane %v1848, 7
        %v1851 = vrot.slane %v1849, 7
        %v1852 = vsel %vm346, %v1850, %v1851
        %v1853 = vsel %vm346, %v1851, %v1850
        %v1854 = vsel %vm325, -1e+20, %v1853
        %v1855 = vsel %vm326, -1e+20, %v1852
        %1856 = vrot.lane.b32.xlu0 %v1848, 1
        %v1857 = vpop.permute.xlu0 %1856
        %1858 = vrot.lane.b32.xlu0 %v1849, 1
        %v1859 = vpop.permute.xlu0 %1858
        %v1860 = vsel %vm339, -1e+20, %v1857
        %v1861 = vsel %vm339, -1e+20, %v1859
        %1862 = vrot.lane.b32.xlu0 %v1853, 1
        %v1863 = vpop.permute.xlu0 %1862
        %1864 = vrot.lane.b32.xlu0 %v1852, 1
        %v1865 = vpop.permute.xlu0 %1864
        %v1866 = vsel %vm340, %v344, %v1863
        %v1867 = vsel %vm341, %v345, %v1865
        %v1868 = vmax.f32 %v1854, %v1860
        %v1869 = vmax.f32 %v1855, %v1861
        %v1870 = vmin.f32 %v1854, %v1860
        %v1871 = vmin.f32 %v1855, %v1861
        %v1872 = vmax.f32 %v1868, %v1866
        %v1873 = vmax.f32 %v1869, %v1867
        %v1874 = vmax.f32 %v1870, %v1866
        %v1875 = vmax.f32 %v1871, %v1867
        %v1876 = vmin.f32 %v1868, %v1874
        %v1877 = vmin.f32 %v1869, %v1875
        %v1878 = vmin.f32 %v1870, %v1866
        %v1879 = vmin.f32 %v1871, %v1867
        %v1880 = vadd.f32 %v318, %v1872
        %v1881 = vadd.f32 %v319, %v1873
        %v1882 = vsub.f32 %v1876, %v1872
        %v1883 = vsub.f32 %v1877, %v1873
        %v1884 = vmul.f32 %v1882, 1.442695
        %v1885 = vpow.pop %v1884
        %v1886 = vmul.f32 %v1883, 1.442695
        %v1887 = vpow.pop %v1886
        %v1888 = vadd.f32 %v1885, 1.0
        %v1889 = vadd.f32 %v1887, 1.0
        %v1890 = vsub.f32 %v1878, %v1872
        %v1891 = vsub.f32 %v1879, %v1873
        %v1892 = vmul.f32 %v1890, 1.442695
        %v1893 = vpow.pop %v1892
        %v1894 = vmul.f32 %v1891, 1.442695
        %v1895 = vpow.pop %v1894
        %v1896 = vadd.f32 %v1888, %v1893
        %v1897 = vadd.f32 %v1889, %v1895
        %v1898 = vlog2.pop %v1896
        %v1899 = vmul.f32 %v1898, 0.6931472
        %v1900 = vlog2.pop %v1897
        %v1901 = vmul.f32 %v1900, 0.6931472
        %v1902 = vadd.f32 %v1880, %v1899
        %v1903 = vadd.f32 %v1881, %v1901
        %v1904 = vrot.slane %v1902, 7
        %v1905 = vrot.slane %v1903, 7
        %v1906 = vsel %vm346, %v1904, %v1905
        %v1907 = vsel %vm346, %v1905, %v1904
        %v1908 = vsel %vm325, -1e+20, %v1907
        %v1909 = vsel %vm326, -1e+20, %v1906
        %1910 = vrot.lane.b32.xlu0 %v1902, 1
        %v1911 = vpop.permute.xlu0 %1910
        %1912 = vrot.lane.b32.xlu0 %v1903, 1
        %v1913 = vpop.permute.xlu0 %1912
        %v1914 = vsel %vm339, -1e+20, %v1911
        %v1915 = vsel %vm339, -1e+20, %v1913
        %1916 = vrot.lane.b32.xlu0 %v1907, 1
        %v1917 = vpop.permute.xlu0 %1916
        %1918 = vrot.lane.b32.xlu0 %v1906, 1
        %v1919 = vpop.permute.xlu0 %1918
        %v1920 = vsel %vm340, %v344, %v1917
        %v1921 = vsel %vm341, %v345, %v1919
        %v1922 = vmax.f32 %v1908, %v1914
        %v1923 = vmax.f32 %v1909, %v1915
        %v1924 = vmin.f32 %v1908, %v1914
        %v1925 = vmin.f32 %v1909, %v1915
        %v1926 = vmax.f32 %v1922, %v1920
        %v1927 = vmax.f32 %v1923, %v1921
        %v1928 = vmax.f32 %v1924, %v1920
        %v1929 = vmax.f32 %v1925, %v1921
        %v1930 = vmin.f32 %v1922, %v1928
        %v1931 = vmin.f32 %v1923, %v1929
        %v1932 = vmin.f32 %v1924, %v1920
        %v1933 = vmin.f32 %v1925, %v1921
        %v1934 = vadd.f32 %v318, %v1926
        %v1935 = vadd.f32 %v319, %v1927
        %v1936 = vsub.f32 %v1930, %v1926
        %v1937 = vsub.f32 %v1931, %v1927
        %v1938 = vmul.f32 %v1936, 1.442695
        %v1939 = vpow.pop %v1938
        %v1940 = vmul.f32 %v1937, 1.442695
        %v1941 = vpow.pop %v1940
        %v1942 = vadd.f32 %v1939, 1.0
        %v1943 = vadd.f32 %v1941, 1.0
        %v1944 = vsub.f32 %v1932, %v1926
        %v1945 = vsub.f32 %v1933, %v1927
        %v1946 = vmul.f32 %v1944, 1.442695
        %v1947 = vpow.pop %v1946
        %v1948 = vmul.f32 %v1945, 1.442695
        %v1949 = vpow.pop %v1948
        %v1950 = vadd.f32 %v1942, %v1947
        %v1951 = vadd.f32 %v1943, %v1949
        %v1952 = vlog2.pop %v1950
        %v1953 = vmul.f32 %v1952, 0.6931472
        %v1954 = vlog2.pop %v1951
        %v1955 = vmul.f32 %v1954, 0.6931472
        %v1956 = vadd.f32 %v1934, %v1953
        %v1957 = vadd.f32 %v1935, %v1955
        %v1958 = vrot.slane %v1956, 7
        %v1959 = vrot.slane %v1957, 7
        %v1960 = vsel %vm346, %v1958, %v1959
        %v1961 = vsel %vm346, %v1959, %v1958
        %v1962 = vsel %vm325, -1e+20, %v1961
        %v1963 = vsel %vm326, -1e+20, %v1960
        %1964 = vrot.lane.b32.xlu0 %v1956, 1
        %v1965 = vpop.permute.xlu0 %1964
        %1966 = vrot.lane.b32.xlu0 %v1957, 1
        %v1967 = vpop.permute.xlu0 %1966
        %v1968 = vsel %vm339, -1e+20, %v1965
        %v1969 = vsel %vm339, -1e+20, %v1967
        %1970 = vrot.lane.b32.xlu0 %v1961, 1
        %v1971 = vpop.permute.xlu0 %1970
        %1972 = vrot.lane.b32.xlu0 %v1960, 1
        %v1973 = vpop.permute.xlu0 %1972
        %v1974 = vsel %vm340, %v344, %v1971
        %v1975 = vsel %vm341, %v345, %v1973
        %v1976 = vmax.f32 %v1962, %v1968
        %v1977 = vmax.f32 %v1963, %v1969
        %v1978 = vmin.f32 %v1962, %v1968
        %v1979 = vmin.f32 %v1963, %v1969
        %v1980 = vmax.f32 %v1976, %v1974
        %v1981 = vmax.f32 %v1977, %v1975
        %v1982 = vmax.f32 %v1978, %v1974
        %v1983 = vmax.f32 %v1979, %v1975
        %v1984 = vmin.f32 %v1976, %v1982
        %v1985 = vmin.f32 %v1977, %v1983
        %v1986 = vmin.f32 %v1978, %v1974
        %v1987 = vmin.f32 %v1979, %v1975
        %v1988 = vadd.f32 %v318, %v1980
        %v1989 = vadd.f32 %v319, %v1981
        %v1990 = vsub.f32 %v1984, %v1980
        %v1991 = vsub.f32 %v1985, %v1981
        %v1992 = vmul.f32 %v1990, 1.442695
        %v1993 = vpow.pop %v1992
        %v1994 = vmul.f32 %v1991, 1.442695
        %v1995 = vpow.pop %v1994
        %v1996 = vadd.f32 %v1993, 1.0
        %v1997 = vadd.f32 %v1995, 1.0
        %v1998 = vsub.f32 %v1986, %v1980
        %v1999 = vsub.f32 %v1987, %v1981
        %v2000 = vmul.f32 %v1998, 1.442695
        %v2001 = vpow.pop %v2000
        %v2002 = vmul.f32 %v1999, 1.442695
        %v2003 = vpow.pop %v2002
        %v2004 = vadd.f32 %v1996, %v2001
        %v2005 = vadd.f32 %v1997, %v2003
        %v2006 = vlog2.pop %v2004
        %v2007 = vmul.f32 %v2006, 0.6931472
        %v2008 = vlog2.pop %v2005
        %v2009 = vmul.f32 %v2008, 0.6931472
        %v2010 = vadd.f32 %v1988, %v2007
        %v2011 = vadd.f32 %v1989, %v2009
        %2012 = vst [vmem:[%s292] sm:$0xff] %v2010
        %2013 = vst [vmem:[%s292 + $0x8] sm:$0xff] %v2011
        %v2014 = vrot.slane %v2010, 7
        %v2015 = vrot.slane %v2011, 7
        %v2016 = vsel %vm346, %v2014, %v2015
        %v2017 = vsel %vm346, %v2015, %v2014
        %v2018 = vsel %vm325, -1e+20, %v2017
        %v2019 = vsel %vm326, -1e+20, %v2016
        %2020 = vrot.lane.b32.xlu0 %v2010, 1
        %v2021 = vpop.permute.xlu0 %2020
        %2022 = vrot.lane.b32.xlu0 %v2011, 1
        %v2023 = vpop.permute.xlu0 %2022
        %v2024 = vsel %vm339, -1e+20, %v2021
        %v2025 = vsel %vm339, -1e+20, %v2023
        %2026 = vrot.lane.b32.xlu0 %v2017, 1
        %v2027 = vpop.permute.xlu0 %2026
        %2028 = vrot.lane.b32.xlu0 %v2016, 1
        %v2029 = vpop.permute.xlu0 %2028
        %v2030 = vsel %vm340, %v344, %v2027
        %v2031 = vsel %vm341, %v345, %v2029
        %v2032 = vmax.f32 %v2018, %v2024
        %v2033 = vmax.f32 %v2019, %v2025
        %v2034 = vmax.f32 %v2032, %v2030
        %v2035 = vmax.f32 %v2033, %v2031
        %v2036 = vsub.f32 %v2018, %v2034
        %v2037 = vsub.f32 %v2019, %v2035
        %v2038 = vmul.f32 %v2036, 1.442695
        %v2039 = vpow.pop %v2038
        %v2040 = vmul.f32 %v2037, 1.442695
        %v2041 = vpow.pop %v2040
        %v2042 = vsub.f32 %v2024, %v2034
        %v2043 = vsub.f32 %v2025, %v2035
        %v2044 = vmul.f32 %v2042, 1.442695
        %v2045 = vpow.pop %v2044
        %v2046 = vmul.f32 %v2043, 1.442695
        %v2047 = vpow.pop %v2046
        %v2048 = vsub.f32 %v2030, %v2034
        %v2049 = vsub.f32 %v2031, %v2035
        %v2050 = vmul.f32 %v2048, 1.442695
        %v2051 = vpow.pop %v2050
        %v2052 = vmul.f32 %v2049, 1.442695
        %v2053 = vpow.pop %v2052
        %v2054 = vadd.f32 %v2039, %v2045
        %v2055 = vadd.f32 %v2041, %v2047
        %v2056 = vadd.f32 %v2054, %v2051
        %v2057 = vadd.f32 %v2055, %v2053
        %v2058 = vrcp.pop %v2056
        %v2059 = vmul.f32 1.0, %v2058
        %v2060 = vrcp.pop %v2057
        %v2061 = vmul.f32 1.0, %v2060
        %v2062 = vmul.f32 %v2039, %v2059
        %v2063 = vmul.f32 %v2041, %v2061
        %v2064 = vmul.f32 %v2062, %v316
        %v2065 = vmul.f32 %v2063, %v317
        %2066 = vst [vmem:[%s299] sm:$0xff] %v2064
        %2067 = vst [vmem:[%s299 + $0x8] sm:$0xff] %v2065
        %v2068 = vmul.f32 %v2045, %v2059
        %v2069 = vmul.f32 %v2047, %v2061
        %v2070 = vmul.f32 %v2068, %v316
        %v2071 = vmul.f32 %v2069, %v317
        %2072 = vst [vmem:[%s306] sm:$0xff] %v2070
        %2073 = vst [vmem:[%s306 + $0x8] sm:$0xff] %v2071
        %v2074 = vmul.f32 %v2051, %v2059
        %v2075 = vmul.f32 %v2053, %v2061
        %v2076 = vmul.f32 %v2074, %v316
        %v2077 = vmul.f32 %v2075, %v317
        %2078 = vst [vmem:[%s313] sm:$0xff] %v2076
        %2079 = vst [vmem:[%s313 + $0x8] sm:$0xff] %v2077
        %s2080 = sand.u32 %s97, 1
        %s2081 = scalar_lea.sflag [#allocation6], %s2080
        %s2082 = sand.u32 %s97, 1
        %s2083 = smul.addr %s2082, 16
        %s2084 = scalar_lea.vmem [#allocation9], %s2083
        %s2085 = sand.u32 %s37, 1
        %s2086 = scalar_lea.sflag [#allocation11], %s2085
        %s2087 = sand.u32 %s123, 1
        %s2088 = smul.addr %s2087, 16
        %s2089 = scalar_lea.vmem [#allocation10], %s2088
        %s2090 = sand.u32 %s37, 1
        %s2091 = scalar_lea.sflag [#allocation11], %s2090
        %s2092 = sand.u32 %s149, 1
        %s2093 = smul.addr %s2092, 16
        %s2094 = scalar_lea.vmem [#allocation12], %s2093
        %s2095 = sand.u32 %s175, 1
        %s2096 = scalar_lea.sflag [#allocation14], %s2095
        %s2097 = sand.u32 %s175, 1
        %s2098 = smul.addr %s2097, 16
        %s2099 = scalar_lea.vmem [#allocation13], %s2098
        // Predicated region
        $region37: #{tpu_custom_call.1} parent=27 // pred_check
          %p2100 = pneg %p107
        $region38: #{tpu_custom_call.1} parent=27 // pred_check_branch
          %2102 = sbr.rel (%p2100) target = $region40
        $region39: #{tpu_custom_call.1} parent=27 // pred_region
          %s2104 = ssub.s32 256, 256
          %2105 = vsyncadd %s2081, %s2104
          %s2106 = smul.addr %s37, 128
          %s2107 = scalar_lea.hbm %s3, %s2106
          %s2108 = sshll.u32 %s2084, 4
          %s2109 = int_to_ptr.vmem [resolvable:$true] %s2108
          %2114 = dma.vmem_to_hbm [thread:$0]  %s2109, 256, %s2107, %s2081, 128, 256, 8
        $region40: #{tpu_custom_call.1} parent=27 // pred_fallthru
          _
        // Predicated region
        $region41: #{tpu_custom_call.1} parent=27 // pred_check
          %p2115 = pneg %p133
        $region42: #{tpu_custom_call.1} parent=27 // pred_check_branch
          %2117 = sbr.rel (%p2115) target = $region44
        $region43: #{tpu_custom_call.1} parent=27 // pred_region
          %s2119 = ssub.s32 256, 256
          %2120 = vsyncadd %s2086, %s2119
          %s2121 = smul.addr %s37, 128
          %s2122 = scalar_lea.hbm %s4, %s2121
          %s2123 = sshll.u32 %s2089, 4
          %s2124 = int_to_ptr.vmem [resolvable:$true] %s2123
          %2129 = dma.vmem_to_hbm [thread:$0]  %s2124, 256, %s2122, %s2086, 128, 256, 8
        $region44: #{tpu_custom_call.1} parent=27 // pred_fallthru
          _
        // Predicated region
        $region45: #{tpu_custom_call.1} parent=27 // pred_check
          %p2130 = pneg %p159
        $region46: #{tpu_custom_call.1} parent=27 // pred_check_branch
          %2132 = sbr.rel (%p2130) target = $region48
        $region47: #{tpu_custom_call.1} parent=27 // pred_region
          %s2134 = ssub.s32 256, 256
          %2135 = vsyncadd %s2091, %s2134
          %s2136 = smul.addr %s37, 128
          %s2137 = scalar_lea.hbm %s5, %s2136
          %s2138 = sshll.u32 %s2094, 4
          %s2139 = int_to_ptr.vmem [resolvable:$true] %s2138
          %2144 = dma.vmem_to_hbm [thread:$0]  %s2139, 256, %s2137, %s2091, 128, 256, 8
        $region48: #{tpu_custom_call.1} parent=27 // pred_fallthru
          _
        // Predicated region
        $region49: #{tpu_custom_call.1} parent=27 // pred_check
          %p2145 = pneg %p185
        $region50: #{tpu_custom_call.1} parent=27 // pred_check_branch
          %2147 = sbr.rel (%p2145) target = $region52
        $region51: #{tpu_custom_call.1} parent=27 // pred_region
          %s2149 = ssub.s32 256, 256
          %2150 = vsyncadd %s2096, %s2149
          %s2151 = smul.addr %s37, 128
          %s2152 = scalar_lea.hbm %s6, %s2151
          %s2153 = sshll.u32 %s2099, 4
          %s2154 = int_to_ptr.vmem [resolvable:$true] %s2153
          %2159 = dma.vmem_to_hbm [thread:$0]  %s2154, 256, %s2152, %s2096, 128, 256, 8
        $region52: #{tpu_custom_call.1} parent=27 // pred_fallthru
          _
      $region28: #{tpu_custom_call.1} parent=5 // pred_fallthru
        _
      %p2160 = scmp.le.s32.totalorder 2, %s32
      // Predicated region
      $region53: #{tpu_custom_call.1} parent=5 // pred_check
        %p2161 = pneg %p2160
      $region54: #{tpu_custom_call.1} parent=5 // pred_check_branch
        %2163 = sbr.rel (%p2161) target = $region56
      $region55: #{tpu_custom_call.1} parent=5 // pred_region
        %s2164 = ssub.s32 %s32, 2
        // Predicated region
        $region57: #{tpu_custom_call.1} parent=55 // pred_check
          %p2165 = pneg %p113
        $region58: #{tpu_custom_call.1} parent=55 // pred_check_branch
          %2167 = sbr.rel (%p2165) target = $region60
        $region59: #{tpu_custom_call.1} parent=55 // pred_region
          %s2168 = sand.u32 %s98, 1
          %s2169 = scalar_lea.sflag [#allocation6], %s2168
          %s2170 = sand.u32 %s98, 1
          %s2171 = smul.addr %s2170, 16
          %s2172 = scalar_lea.vmem [#allocation9], %s2171
          %2173 = dma.done %s2169, 256
        $region60: #{tpu_custom_call.1} parent=55 // pred_fallthru
          _
        // Predicated region
        $region61: #{tpu_custom_call.1} parent=55 // pred_check
          %p2174 = pneg %p139
        $region62: #{tpu_custom_call.1} parent=55 // pred_check_branch
          %2176 = sbr.rel (%p2174) target = $region64
        $region63: #{tpu_custom_call.1} parent=55 // pred_region
          %s2177 = sand.u32 %s38, 1
          %s2178 = scalar_lea.sflag [#allocation11], %s2177
          %s2179 = sand.u32 %s124, 1
          %s2180 = smul.addr %s2179, 16
          %s2181 = scalar_lea.vmem [#allocation10], %s2180
          %2182 = dma.done %s2178, 256
        $region64: #{tpu_custom_call.1} parent=55 // pred_fallthru
          _
        // Predicated region
        $region65: #{tpu_custom_call.1} parent=55 // pred_check
          %p2183 = pneg %p165
        $region66: #{tpu_custom_call.1} parent=55 // pred_check_branch
          %2185 = sbr.rel (%p2183) target = $region68
        $region67: #{tpu_custom_call.1} parent=55 // pred_region
          %s2186 = sand.u32 %s38, 1
          %s2187 = scalar_lea.sflag [#allocation11], %s2186
          %s2188 = sand.u32 %s150, 1
          %s2189 = smul.addr %s2188, 16
          %s2190 = scalar_lea.vmem [#allocation12], %s2189
          %2191 = dma.done %s2187, 256
        $region68: #{tpu_custom_call.1} parent=55 // pred_fallthru
          _
        // Predicated region
        $region69: #{tpu_custom_call.1} parent=55 // pred_check
          %p2192 = pneg %p191
        $region70: #{tpu_custom_call.1} parent=55 // pred_check_branch
          %2194 = sbr.rel (%p2192) target = $region72
        $region71: #{tpu_custom_call.1} parent=55 // pred_region
          %s2195 = sand.u32 %s176, 1
          %s2196 = scalar_lea.sflag [#allocation14], %s2195
          %s2197 = sand.u32 %s176, 1
          %s2198 = smul.addr %s2197, 16
          %s2199 = scalar_lea.vmem [#allocation13], %s2198
          %2200 = dma.done %s2196, 256
        $region72: #{tpu_custom_call.1} parent=55 // pred_fallthru
          _
      $region56: #{tpu_custom_call.1} parent=5 // pred_fallthru
        _
    $region6: #{tpu_custom_call.1} parent=1 // loop_footer
      %s36 = sadd.s32 1, %s32
    $region7: #{tpu_custom_call.1} parent=1 // loop_footer_branch
      %31 = sbr.rel target = $region3
    $region8: #{tpu_custom_call.1} parent=1 // loop_exit
      _
    %2201 = vsyncpa [#allocation5], 1
    %s2202 = scalar_lea.sflag [#allocation5], 1
    %2203 = vsyncpa %s2202, 1
    %2204 = vsyncpa [#allocation8], 1
    %s2205 = scalar_lea.sflag [#allocation8], 1
    %2206 = vsyncpa %s2205, 1
    %2207 = vsyncpa [#allocation6], 1
    %s2208 = scalar_lea.sflag [#allocation6], 1
    %2209 = vsyncpa %s2208, 1
    %2210 = vsyncpa [#allocation11], 1
    %s2211 = scalar_lea.sflag [#allocation11], 1
    %2212 = vsyncpa %s2211, 1
    %2213 = vsyncpa [#allocation14], 1
    %s2214 = scalar_lea.sflag [#allocation14], 1
    %2215 = vsyncpa %s2214, 1

</llo_original>
